<compile_context>
chip_gen: v5e
topology: v5e:2x2
jax: 0.10.0
libtpu: 0.0.40
codegen_flags: <defaults>
</compile_context>

<pallas_src>
import functools

import jax
import jax.numpy as jnp
import numpy as np
from jax.experimental import pallas as pl
from jax.experimental.pallas import tpu as pltpu


# ----------------------------------------------------------------------------- kernel 1
def _gegnn_edge_stats_kernel(av_ref, ub_ref, e_ref, x0_ref, x1_ref, x0i_ref, x1i_ref,
                             mask_ref,
                             Cw_ref, Cdb_ref, dw_ref, ew_ref, eb_ref,
                             h_pre_ref, xagg_ref, stats_ref,
                             *, v_actual, padded):
    """Pass 1: gated node aggregation, coordinate aggregation, per-block BN stats.

    e_new is formed and consumed entirely in VMEM -- it is never stored to HBM.
    """
    f32 = jnp.float32
    H = av_ref.shape[2] // 2
    TI = e_ref.shape[1]
    V = e_ref.shape[2]
    hp = x0_ref.shape[2]

    av = av_ref[0]                                   # (V, 2H)  [A h | V h], all nodes (j side)
    Ah, Vh = av[:, :H], av[:, H:]
    ub = ub_ref[0]                                   # (TI, 2H) [U h | B h], i-tile
    Uh_i, Bh_i = ub[:, :H], ub[:, H:]
    mask = mask_ref[0]                               # (TI, V)  1.0 = keep, 0.0 = masked

    x0 = x0_ref[0]                                   # (V, hp)
    x1 = x1_ref[0]
    x0i = x0i_ref[0]                                 # (TI, hp)
    x1i = x1i_ref[0]

    # pairwise differences for this i-tile: d[ti, j, p] = x_j[p] - x_i[p]
    d0 = x0[None, :, :] - x0i[:, None, :]            # (TI, V, hp)
    d1 = x1[None, :, :] - x1i[:, None, :]
    # torch: sqrt(sum(1e-8 + diff**2, dim=-1)) over a size-2 last dim -> 2e-8 + |diff|^2
    dist = jnp.sqrt(2e-8 + d0 * d0 + d1 * d1)        # (TI, V, hp)

    # e_ij = A h_j + B h_i + C e_ij + d(|x_i - x_j|); C and d on the MXU, Cb+db folded
    ced = (jnp.dot(e_ref[0].reshape(TI * V, H), Cw_ref[...], preferred_element_type=f32)
           + jnp.dot(dist.reshape(TI * V, hp), dw_ref[...], preferred_element_type=f32)
           + Cdb_ref[...])
    e_new = Ah[None, :, :] + Bh_i[:, None, :] + ced.reshape(TI, V, H)

    # gated neighborhood aggregation: h_i <- U h_i + sum_j m_ij * sigmoid(e_ij) * (V h_j)
    gates = jax.nn.sigmoid(e_new)
    agg = jnp.sum((mask[:, :, None] * gates) * Vh[None, :, :], axis=1)     # (TI, H)
    h_pre_ref[0] = Uh_i + agg

    # equivariant coordinate aggregation:
    # pa_ij = sigmoid(e(e_ij)) masked by graph; x_i <- sum_j pa_ij * (x_i - x_j)
    ef = e_new.reshape(TI * V, H)
    pa = jax.nn.sigmoid(jnp.dot(ef, ew_ref[...], preferred_element_type=f32)
                        + eb_ref[...]).reshape(TI, V, hp)
    pa = pa * mask[:, :, None]
    xagg_ref[0, 0] = jnp.sum(pa * (-d0), axis=1)     # (TI, hp)  (x_to - x_from = -d)
    xagg_ref[0, 1] = jnp.sum(pa * (-d1), axis=1)

    # per-block centered batch-norm statistics (combined in glue via Chan's formula)
    if padded:
        it = pl.program_id(1)
        row = jax.lax.broadcasted_iota(jnp.int32, (TI, 1), 0) + it * TI
        valid = (row < v_actual).astype(f32)         # (TI, 1)
        vm3 = valid[:, :, None]                      # (TI, 1, 1)
        nb = jnp.maximum(jnp.sum(valid), 1.0) * V
        m_b = jnp.sum(e_new * vm3, axis=(0, 1)) / nb
        M2_b = jnp.sum(((e_new - m_b) ** 2) * vm3, axis=(0, 1))
    else:
        nb = float(TI * V)
        m_b = jnp.sum(ef, axis=0) / nb
        M2_b = jnp.sum((ef - m_b) ** 2, axis=0)
    stats_ref[0, 0, 0:1, :] = m_b.reshape(1, H)
    stats_ref[0, 0, 1:2, :] = M2_b.reshape(1, H)


# ----------------------------------------------------------------------------- kernel 2
def _gegnn_edge_out_kernel(av_ref, ub_ref, e_ref, x0_ref, x1_ref, x0i_ref, x1i_ref,
                           Cw_ref, Cdb_ref, dw_ref, scale_ref, shift_ref,
                           out_ref):
    """Pass 2: recompute e_new from e (still in VMEM) and apply folded BN affine +
    ReLU + residual.  One HBM read of e, one HBM write of the output."""
    f32 = jnp.float32
    H = av_ref.shape[2] // 2
    TI = e_ref.shape[1]
    V = e_ref.shape[2]
    hp = x0_ref.shape[2]

    Ah = av_ref[0][:, :H]                            # (V, H)
    Bh_i = ub_ref[0][:, H:]                          # (TI, H)
    x0 = x0_ref[0]
    x1 = x1_ref[0]
    x0i = x0i_ref[0]
    x1i = x1i_ref[0]

    d0 = x0[None, :, :] - x0i[:, None, :]
    d1 = x1[None, :, :] - x1i[:, None, :]
    dist = jnp.sqrt(2e-8 + d0 * d0 + d1 * d1)        # (TI, V, hp)

    e3 = e_ref[0]                                    # (TI, V, H) -- also the residual input
    ced = (jnp.dot(e3.reshape(TI * V, H), Cw_ref[...], preferred_element_type=f32)
           + jnp.dot(dist.reshape(TI * V, hp), dw_ref[...], preferred_element_type=f32)
           + Cdb_ref[...])
    e_new = Ah[None, :, :] + Bh_i[:, None, :] + ced.reshape(TI, V, H)

    y = e_new * scale_ref[0] + shift_ref[0]          # BN batch stats + affine, folded
    out_ref[0] = e3 + jnp.maximum(y, 0.0)            # residual + ReLU


# ----------------------------------------------------------------------------- tiling
def _pick_i_tile(V, H, batch, budget_bytes):
    """Largest i-tile (multiple of 8, or V itself) whose working set fits the budget.

    Accounts for the minor-dim lane padding of the H-minor edge blocks (H < 128 pads
    to 128 lanes) and ~10 live f32 copies of a (1, V, H) row slab (DMA double-buffers
    plus in-kernel temporaries).  If V is not a multiple of 8 and does not fit whole,
    the caller pads the i-dimension instead of blowing VMEM.
    """
    lane_h = ((max(H, 1) + 127) // 128) * 128
    sub_v = ((V + 7) // 8) * 8
    per_row = 10 * sub_v * lane_h * 4
    cap = max(1, budget_bytes // per_row)
    if V <= cap:
        # whole i-range fits in one block; split once so a 2-TensorCore chip (v7x)
        # still gets an even parallel grid when the batch alone does not provide one
        if batch < 2 and V >= 16 and V % 16 == 0:
            return V // 2
        return V
    best = 0
    t = 8
    while t <= cap:
        if V % t == 0:
            best = t
        t += 8
    if best:
        return best
    return max(8, (cap // 8) * 8)      # i-dimension will be padded to a multiple of this


# ----------------------------------------------------------------------------- wrapper
def gegnn_layer_pallas(params, h, e, pos, graph):
    B, V, H = h.shape
    hp = pos.shape[2]
    f32 = jnp.float32
    eps = 1e-5

    mask = 1.0 - graph.astype(f32)                   # 1 = keep, 0 = masked
    x0 = pos[..., 0]
    x1 = pos[..., 1]

    # ---- hoisted node projections (tiny matmuls, done once by XLA, not per grid step)
    W_av = jnp.concatenate([params['Aw'], params['Vw']], axis=1)     # (H, 2H)
    b_av = jnp.concatenate([params['Ab'], params['Vb']])
    W_ub = jnp.concatenate([params['Uw'], params['Bw']], axis=1)     # (H, 2H)
    b_ub = jnp.concatenate([params['Ub'], params['Bb']])
    av = h @ W_av + b_av                                             # (B, V, 2H) = [A h | V h]
    ub = h @ W_ub + b_ub                                             # (B, V, 2H) = [U h | B h]

    Cw = params['Cw']
    Cdb = (params['Cb'] + params['db']).reshape(1, H)                # Cb + db fused
    dw = params['dw']
    ew = params['ew']
    eb = params['eb'].reshape(1, -1)

    # ---- generation-aware VMEM budgeting (128 MiB on v5e/v6e, 64 MiB on v7x)
    try:
        vmem_cap = int(getattr(pltpu.get_tpu_info(), "vmem_capacity_bytes"))
    except Exception:
        vmem_cap = 64 * 1024 * 1024                  # v7x-safe default
    tile_budget = vmem_cap // 4
    vmem_limit = (vmem_cap * 3) // 4

    TI = _pick_i_tile(V, H, B, tile_budget)
    nI = -(-V // TI)
    Vp = nI * TI
    padded = Vp != V

    ub_p, x0i, x1i, mask_p, e_p = ub, x0, x1, mask, e
    if padded:
        pad2 = ((0, 0), (0, Vp - V), (0, 0))
        ub_p = jnp.pad(ub, pad2)
        x0i = jnp.pad(x0, pad2)
        x1i = jnp.pad(x1, pad2)
        mask_p = jnp.pad(mask, ((0, 0), (0, Vp - V), (0, 0)))
        e_p = jnp.pad(e, ((0, 0), (0, Vp - V), (0, 0), (0, 0)))

    def full_spec(arr):
        nd = arr.ndim
        return pl.BlockSpec(arr.shape, lambda b, it, _nd=nd: (0,) * _nd)

    # ------------------------------------------------------------------ pass 1
    w1 = [Cw, Cdb, dw, ew, eb]
    in_specs1 = [
        pl.BlockSpec((1, V, 2 * H), lambda b, it: (b, 0, 0)),          # av (all nodes, j side)
        pl.BlockSpec((1, TI, 2 * H), lambda b, it: (b, it, 0)),        # ub (i-tile)
        pl.BlockSpec((1, TI, V, H), lambda b, it: (b, it, 0, 0)),      # e  (i-tile)
        pl.BlockSpec((1, V, hp), lambda b, it: (b, 0, 0)),             # x0 (all)
        pl.BlockSpec((1, V, hp), lambda b, it: (b, 0, 0)),             # x1 (all)
        pl.BlockSpec((1, TI, hp), lambda b, it: (b, it, 0)),           # x0 (i-tile)
        pl.BlockSpec((1, TI, hp), lambda b, it: (b, it, 0)),           # x1 (i-tile)
        pl.BlockSpec((1, TI, V), lambda b, it: (b, it, 0)),            # mask (i-tile)
    ] + [full_spec(w) for w in w1]

    out_shape1 = [
        jax.ShapeDtypeStruct((B, Vp, H), f32),       # Uh + gated aggregate
        jax.ShapeDtypeStruct((B, 2, Vp, hp), f32),   # packed coordinate aggregation (x0 | x1)
        jax.ShapeDtypeStruct((B, nI, 2, H), f32),    # packed per-block BN stats [mean | M2]
    ]
    out_specs1 = [
        pl.BlockSpec((1, TI, H), lambda b, it: (b, it, 0)),
        pl.BlockSpec((1, 2, TI, hp), lambda b, it: (b, 0, it, 0)),
        pl.BlockSpec((1, 1, 2, H), lambda b, it: (b, it, 0, 0)),
    ]

    k1 = functools.partial(_gegnn_edge_stats_kernel, v_actual=V, padded=padded)
    h_pre, xagg, stats = pl.pallas_call(
        k1,
        out_shape=out_shape1,
        grid=(B, nI),
        in_specs=in_specs1,
        out_specs=out_specs1,
        compiler_params=pltpu.CompilerParams(
            dimension_semantics=("parallel", "parallel"),
            vmem_limit_bytes=vmem_limit),
    )(av, ub_p, e_p, x0, x1, x0i, x1i, mask_p, *w1)

    # ---- node branch: batch-norm (training-mode batch stats) + ReLU + residual (small glue)
    h_pre = h_pre[:, :V] if padded else h_pre
    hf = h_pre.reshape(B * V, H)
    mh, vh = jnp.mean(hf, axis=0), jnp.var(hf, axis=0)
    h_norm = (hf - mh) / jnp.sqrt(vh + eps) * params['gamma_h'] + params['beta_h']
    h_out = h + jax.nn.relu(h_norm).reshape(B, V, H)

    # ---- edge branch: combine per-block centered stats (Chan) -> BN scale/shift fold
    counts = np.maximum(np.minimum(TI, V - np.arange(nI) * TI), 0) * V   # elems per block
    cnts = jnp.asarray(counts, f32)[None, :, None]                       # (1, nI, 1)
    N = float(B * V * V)
    m_b = stats[:, :, 0, :]                                              # (B, nI, H)
    M2_b = stats[:, :, 1, :]
    mean_e = jnp.sum(m_b * cnts, axis=(0, 1)) / N
    M2 = jnp.sum(M2_b + cnts * (m_b - mean_e) ** 2, axis=(0, 1))
    var_e = jnp.maximum(M2 / N, 0.0)
    inv = 1.0 / jnp.sqrt(var_e + eps)
    scale_vec = params['gamma_e'] * inv                                  # (H,)
    shift_vec = params['beta_e'] - mean_e * scale_vec                    # (H,)
    scale2 = scale_vec.reshape(1, H)
    shift2 = shift_vec.reshape(1, H)

    # ------------------------------------------------------------------ pass 2
    w2 = [Cw, Cdb, dw, scale2, shift2]
    in_specs2 = [
        pl.BlockSpec((1, V, 2 * H), lambda b, it: (b, 0, 0)),
        pl.BlockSpec((1, TI, 2 * H), lambda b, it: (b, it, 0)),
        pl.BlockSpec((1, TI, V, H), lambda b, it: (b, it, 0, 0)),
        pl.BlockSpec((1, V, hp), lambda b, it: (b, 0, 0)),
        pl.BlockSpec((1, V, hp), lambda b, it: (b, 0, 0)),
        pl.BlockSpec((1, TI, hp), lambda b, it: (b, it, 0)),
        pl.BlockSpec((1, TI, hp), lambda b, it: (b, it, 0)),
    ] + [full_spec(w) for w in w2]

    e_out_p = pl.pallas_call(
        _gegnn_edge_out_kernel,
        out_shape=jax.ShapeDtypeStruct((B, Vp, V, H), f32),
        grid=(B, nI),
        in_specs=in_specs2,
        out_specs=pl.BlockSpec((1, TI, V, H), lambda b, it: (b, it, 0, 0)),
        compiler_params=pltpu.CompilerParams(
            dimension_semantics=("parallel", "parallel"),
            vmem_limit_bytes=vmem_limit),
    )(av, ub_p, e_p, x0, x1, x0i, x1i, *w2)
    e_out = e_out_p[:, :V] if padded else e_out_p

    # ---- coordinate branch (small tail, glue)
    xagg = xagg[:, :, :V] if padded else xagg                        # (B, 2, V, hp)
    x_new = jnp.moveaxis(xagg, 1, -1)                                # (B, V, hp, 2)
    Dx = jnp.einsum('bvqc,qp->bvpc', x_new, params['Dw'])            # per-component D
    d2 = jnp.sqrt(jnp.sum(x_new * x_new, axis=-1) + 1e-4)            # (B, V, hp)
    g2 = jax.nn.sigmoid(jnp.concatenate([d2, h], axis=-1) @ params['Hw'] + params['Hb'])
    x_out = pos + Dx * g2[..., None]
    return h_out, e_out, x_out


# ----------------------------------------------------------------------------- reference (pure JAX)
def reference_forward(p, h, e, pos, graph):
    B, V, H = h.shape
    eps = 1e-5
    Uh = h @ p['Uw'] + p['Ub']
    Vh = h @ p['Vw'] + p['Vb']
    Ah = h @ p['Aw'] + p['Ab']
    Bh = h @ p['Bw'] + p['Bb']
    Ce = e @ p['Cw'] + p['Cb']
    x_from = pos[:, None, :, :, :]
    x_to = pos[:, :, None, :, :]
    dist = jnp.sqrt(jnp.sum(1e-8 + (x_from - x_to) ** 2, axis=-1))
    e_new = Ah[:, None, :, :] + Bh[:, :, None, :] + Ce + (dist @ p['dw'] + p['db'])
    gates = jax.nn.sigmoid(e_new)
    pa = jnp.where(graph[..., None], 0.0, jax.nn.sigmoid(e_new @ p['ew'] + p['eb']))
    x_new = jnp.sum(pa[..., None] * (x_to - x_from), axis=2)
    Vh_e = jnp.where(graph[..., None], 0.0, gates * Vh[:, None, :, :])
    h2 = Uh + jnp.sum(Vh_e, axis=2)
    hf = h2.reshape(B * V, H)
    h2 = ((hf - hf.mean(0)) / jnp.sqrt(hf.var(0) + eps) * p['gamma_h'] + p['beta_h']).reshape(B, V, H)
    ef = e_new.reshape(B * V * V, H)
    e2 = ((ef - ef.mean(0)) / jnp.sqrt(ef.var(0) + eps) * p['gamma_e'] + p['beta_e']).reshape(B, V, V, H)
    h2 = jax.nn.relu(h2)
    e2 = jax.nn.relu(e2)
    Dx = jnp.stack([x_new[..., 0] @ p['Dw'], x_new[..., 1] @ p['Dw']], axis=-1)
    d2 = jnp.sqrt(jnp.sum(x_new * x_new, axis=-1) + 1e-4)
    g2 = jax.nn.sigmoid(jnp.concatenate([d2, h], axis=-1) @ p['Hw'] + p['Hb'])
    return h + h2, e + e2, pos + Dx * g2[..., None]


# ----------------------------------------------------------------------------- params / main
def init_params(key, H, hp):
    ks = jax.random.split(key, 17)
    w = lambda k, i, o: jax.random.normal(k, (i, o), jnp.float32) * 0.1
    b = lambda k, o: jax.random.normal(k, (o,), jnp.float32) * 0.05
    return dict(
        Uw=w(ks[0], H, H), Ub=b(ks[1], H),
        Vw=w(ks[2], H, H), Vb=b(ks[3], H),
        Aw=w(ks[4], H, H), Ab=b(ks[5], H),
        Bw=w(ks[6], H, H), Bb=b(ks[7], H),
        Cw=w(ks[8], H, H), Cb=b(ks[9], H),
        dw=w(ks[10], hp, H), db=b(ks[11], H),
        Dw=w(ks[12], hp, hp),
        Hw=w(ks[13], hp + H, hp), Hb=b(ks[14], hp),
        ew=w(ks[15], H, hp), eb=b(ks[16], hp),
        gamma_h=jnp.ones((H,), jnp.float32), beta_h=jnp.zeros((H,), jnp.float32),
        gamma_e=jnp.ones((H,), jnp.float32), beta_e=jnp.zeros((H,), jnp.float32),
    )


if __name__ == "__main__":
    B, V, H, HP = 2, 8, 32, 2   # batch, nodes, hidden_dim, num_coordinates
    key = jax.random.PRNGKey(0)
    k_h, k_e, k_x, k_g, k_p = jax.random.split(key, 5)
    h = jax.random.normal(k_h, (B, V, H), jnp.float32)
    e = jax.random.normal(k_e, (B, V, V, H), jnp.float32)
    pos = jax.random.normal(k_x, (B, V, HP, 2), jnp.float32)
    graph = jax.random.bernoulli(k_g, 0.3, (B, V, V))      # True => masked edge
    params = init_params(k_p, H, HP)

    h_out, e_out, x_out = jax.block_until_ready(
        jax.jit(gegnn_layer_pallas)(params, h, e, pos, graph))
    h_ref, e_ref, x_ref = jax.block_until_ready(
        jax.jit(reference_forward)(params, h, e, pos, graph))

    assert h_out.shape == (B, V, H)
    assert e_out.shape == (B, V, V, H)
    assert x_out.shape == (B, V, HP, 2)
    for name, a, b in (("h", h_out, h_ref), ("e", e_out, e_ref), ("x", x_out, x_ref)):
        err = float(jnp.max(jnp.abs(a - b)))
        assert err < 1e-2, f"{name} mismatch: max abs err = {err}"
    print("KERNEL_OK")
</pallas_src>

<mosaic_0001>
module attributes {stable_mosaic.version = 11 : i64} {
  func.func @_gegnn_edge_stats_kernel(%arg0: i32, %arg1: i32, %arg2: memref<1x8x64xf32, #tpu.memory_space<vmem>>, %arg3: memref<1x8x64xf32, #tpu.memory_space<vmem>>, %arg4: memref<1x8x8x32xf32, #tpu.memory_space<vmem>>, %arg5: memref<1x8x2xf32, #tpu.memory_space<vmem>>, %arg6: memref<1x8x2xf32, #tpu.memory_space<vmem>>, %arg7: memref<1x8x2xf32, #tpu.memory_space<vmem>>, %arg8: memref<1x8x2xf32, #tpu.memory_space<vmem>>, %arg9: memref<1x8x8xf32, #tpu.memory_space<vmem>>, %arg10: memref<32x32xf32, #tpu.memory_space<vmem>>, %arg11: memref<1x32xf32, #tpu.memory_space<vmem>>, %arg12: memref<2x32xf32, #tpu.memory_space<vmem>>, %arg13: memref<32x2xf32, #tpu.memory_space<vmem>>, %arg14: memref<1x2xf32, #tpu.memory_space<vmem>>, %arg15: memref<1x8x32xf32, #tpu.memory_space<vmem>>, %arg16: memref<1x2x8x2xf32, #tpu.memory_space<vmem>>, %arg17: memref<1x1x2x32xf32, #tpu.memory_space<vmem>>) attributes {dimension_semantics = [#tpu.dimension_semantics<parallel>, #tpu.dimension_semantics<parallel>], iteration_bounds = array<i64: 2, 1>, scalar_prefetch = 0 : i64, scratch_operands = 0 : i64, tpu.core_type = #tpu.core_type<tc>, window_params = [{transform_indices = @transform_0, window_bounds = array<i64: 1, 8, 64>}, {transform_indices = @transform_1, window_bounds = array<i64: 1, 8, 64>}, {transform_indices = @transform_2, window_bounds = array<i64: 1, 8, 8, 32>}, {transform_indices = @transform_3, window_bounds = array<i64: 1, 8, 2>}, {transform_indices = @transform_4, window_bounds = array<i64: 1, 8, 2>}, {transform_indices = @transform_5, window_bounds = array<i64: 1, 8, 2>}, {transform_indices = @transform_6, window_bounds = array<i64: 1, 8, 2>}, {transform_indices = @transform_7, window_bounds = array<i64: 1, 8, 8>}, {pipeline_mode = #tpu.pipeline_mode<synchronous>, transform_indices = @transform_8, window_bounds = array<i64: 32, 32>}, {pipeline_mode = #tpu.pipeline_mode<synchronous>, transform_indices = @transform_9, window_bounds = array<i64: 1, 32>}, {pipeline_mode = #tpu.pipeline_mode<synchronous>, transform_indices = @transform_10, window_bounds = array<i64: 2, 32>}, {pipeline_mode = #tpu.pipeline_mode<synchronous>, transform_indices = @transform_11, window_bounds = array<i64: 32, 2>}, {pipeline_mode = #tpu.pipeline_mode<synchronous>, transform_indices = @transform_12, window_bounds = array<i64: 1, 2>}, {transform_indices = @transform_13, window_bounds = array<i64: 1, 8, 32>}, {transform_indices = @transform_14, window_bounds = array<i64: 1, 2, 8, 2>}, {transform_indices = @transform_15, window_bounds = array<i64: 1, 1, 2, 32>}]} {
    %c0 = arith.constant 0 : index
    %c0_0 = arith.constant 0 : index
    %c0_1 = arith.constant 0 : index
    %0 = vector.load %arg2[%c0, %c0_0, %c0_1] : memref<1x8x64xf32, #tpu.memory_space<vmem>>, vector<1x8x64xf32>
    %1 = vector.shape_cast %0 : vector<1x8x64xf32> to vector<8x64xf32>
    %2 = vector.extract_strided_slice %1 {offsets = [0, 0], sizes = [8, 32], strides = [1, 1]} : vector<8x64xf32> to vector<8x32xf32>
    %3 = vector.extract_strided_slice %1 {offsets = [0, 32], sizes = [8, 32], strides = [1, 1]} : vector<8x64xf32> to vector<8x32xf32>
    %c0_2 = arith.constant 0 : index
    %c0_3 = arith.constant 0 : index
    %c0_4 = arith.constant 0 : index
    %4 = vector.load %arg3[%c0_2, %c0_3, %c0_4] : memref<1x8x64xf32, #tpu.memory_space<vmem>>, vector<1x8x64xf32>
    %5 = vector.shape_cast %4 : vector<1x8x64xf32> to vector<8x64xf32>
    %6 = vector.extract_strided_slice %5 {offsets = [0, 0], sizes = [8, 32], strides = [1, 1]} : vector<8x64xf32> to vector<8x32xf32>
    %7 = vector.extract_strided_slice %5 {offsets = [0, 32], sizes = [8, 32], strides = [1, 1]} : vector<8x64xf32> to vector<8x32xf32>
    %c0_5 = arith.constant 0 : index
    %c0_6 = arith.constant 0 : index
    %c0_7 = arith.constant 0 : index
    %8 = vector.load %arg9[%c0_5, %c0_6, %c0_7] : memref<1x8x8xf32, #tpu.memory_space<vmem>>, vector<1x8x8xf32>
    %9 = vector.shape_cast %8 : vector<1x8x8xf32> to vector<8x8xf32>
    %c0_8 = arith.constant 0 : index
    %c0_9 = arith.constant 0 : index
    %c0_10 = arith.constant 0 : index
    %10 = vector.load %arg5[%c0_8, %c0_9, %c0_10] : memref<1x8x2xf32, #tpu.memory_space<vmem>>, vector<1x8x2xf32>
    %11 = vector.shape_cast %10 : vector<1x8x2xf32> to vector<8x2xf32>
    %c0_11 = arith.constant 0 : index
    %c0_12 = arith.constant 0 : index
    %c0_13 = arith.constant 0 : index
    %12 = vector.load %arg6[%c0_11, %c0_12, %c0_13] : memref<1x8x2xf32, #tpu.memory_space<vmem>>, vector<1x8x2xf32>
    %13 = vector.shape_cast %12 : vector<1x8x2xf32> to vector<8x2xf32>
    %c0_14 = arith.constant 0 : index
    %c0_15 = arith.constant 0 : index
    %c0_16 = arith.constant 0 : index
    %14 = vector.load %arg7[%c0_14, %c0_15, %c0_16] : memref<1x8x2xf32, #tpu.memory_space<vmem>>, vector<1x8x2xf32>
    %15 = vector.shape_cast %14 : vector<1x8x2xf32> to vector<8x2xf32>
    %c0_17 = arith.constant 0 : index
    %c0_18 = arith.constant 0 : index
    %c0_19 = arith.constant 0 : index
    %16 = vector.load %arg8[%c0_17, %c0_18, %c0_19] : memref<1x8x2xf32, #tpu.memory_space<vmem>>, vector<1x8x2xf32>
    %17 = vector.shape_cast %16 : vector<1x8x2xf32> to vector<8x2xf32>
    %18 = vector.shape_cast %11 : vector<8x2xf32> to vector<1x8x2xf32>
    %19 = vector.shape_cast %15 : vector<8x2xf32> to vector<8x1x2xf32>
    %20 = vector.broadcast %18 : vector<1x8x2xf32> to vector<8x8x2xf32>
    %21 = vector.broadcast %19 : vector<8x1x2xf32> to vector<8x8x2xf32>
    %22 = arith.subf %20, %21 : vector<8x8x2xf32>
    %23 = vector.shape_cast %13 : vector<8x2xf32> to vector<1x8x2xf32>
    %24 = vector.shape_cast %17 : vector<8x2xf32> to vector<8x1x2xf32>
    %25 = vector.broadcast %23 : vector<1x8x2xf32> to vector<8x8x2xf32>
    %26 = vector.broadcast %24 : vector<8x1x2xf32> to vector<8x8x2xf32>
    %27 = arith.subf %25, %26 : vector<8x8x2xf32>
    %28 = arith.mulf %22, %22 : vector<8x8x2xf32>
    %cst = arith.constant 2.000000e-08 : f32
    %29 = vector.broadcast %cst : f32 to vector<8x8x2xf32>
    %30 = arith.addf %29, %28 : vector<8x8x2xf32>
    %31 = arith.mulf %27, %27 : vector<8x8x2xf32>
    %32 = arith.addf %30, %31 : vector<8x8x2xf32>
    %33 = math.sqrt %32 : vector<8x8x2xf32>
    %c0_20 = arith.constant 0 : index
    %c0_21 = arith.constant 0 : index
    %c0_22 = arith.constant 0 : index
    %c0_23 = arith.constant 0 : index
    %34 = vector.load %arg4[%c0_20, %c0_21, %c0_22, %c0_23] : memref<1x8x8x32xf32, #tpu.memory_space<vmem>>, vector<1x8x8x32xf32>
    %35 = vector.shape_cast %34 : vector<1x8x8x32xf32> to vector<8x8x32xf32>
    %36 = vector.shape_cast %35 : vector<8x8x32xf32> to vector<64x32xf32>
    %c0_24 = arith.constant 0 : index
    %c0_25 = arith.constant 0 : index
    %37 = vector.load %arg10[%c0_24, %c0_25] : memref<32x32xf32, #tpu.memory_space<vmem>>, vector<32x32xf32>
    %cst_26 = arith.constant dense<0.000000e+00> : vector<64x32xf32>
    %38 = tpu.matmul %36, %37, %cst_26 {dimension_numbers = #tpu.dot_dimension_numbers<[1], [0], [0], [1], [0, 0, 1, 1], [], []>} : vector<64x32xf32>, vector<32x32xf32>, vector<64x32xf32> -> vector<64x32xf32>
    %39 = vector.shape_cast %33 : vector<8x8x2xf32> to vector<64x2xf32>
    %c0_27 = arith.constant 0 : index
    %c0_28 = arith.constant 0 : index
    %40 = vector.load %arg12[%c0_27, %c0_28] : memref<2x32xf32, #tpu.memory_space<vmem>>, vector<2x32xf32>
    %cst_29 = arith.constant dense<0.000000e+00> : vector<64x32xf32>
    %41 = tpu.matmul %39, %40, %cst_29 {dimension_numbers = #tpu.dot_dimension_numbers<[1], [0], [0], [1], [0, 0, 1, 1], [], []>} : vector<64x2xf32>, vector<2x32xf32>, vector<64x32xf32> -> vector<64x32xf32>
    %42 = arith.addf %38, %41 : vector<64x32xf32>
    %c0_30 = arith.constant 0 : index
    %c0_31 = arith.constant 0 : index
    %43 = vector.load %arg11[%c0_30, %c0_31] : memref<1x32xf32, #tpu.memory_space<vmem>>, vector<1x32xf32>
    %44 = vector.broadcast %43 : vector<1x32xf32> to vector<64x32xf32>
    %45 = arith.addf %42, %44 : vector<64x32xf32>
    %46 = vector.shape_cast %2 : vector<8x32xf32> to vector<1x8x32xf32>
    %47 = vector.shape_cast %7 : vector<8x32xf32> to vector<8x1x32xf32>
    %48 = vector.broadcast %46 : vector<1x8x32xf32> to vector<8x8x32xf32>
    %49 = vector.broadcast %47 : vector<8x1x32xf32> to vector<8x8x32xf32>
    %50 = arith.addf %48, %49 : vector<8x8x32xf32>
    %51 = vector.shape_cast %45 : vector<64x32xf32> to vector<8x8x32xf32>
    %52 = arith.addf %50, %51 : vector<8x8x32xf32>
    %53 = arith.negf %52 : vector<8x8x32xf32>
    %54 = math.exp %53 : vector<8x8x32xf32>
    %cst_32 = arith.constant 1.000000e+00 : f32
    %55 = vector.broadcast %cst_32 : f32 to vector<8x8x32xf32>
    %56 = arith.addf %55, %54 : vector<8x8x32xf32>
    %57 = arith.divf %55, %56 : vector<8x8x32xf32>
    %58 = vector.shape_cast %9 : vector<8x8xf32> to vector<8x8x1xf32>
    %59 = vector.broadcast %58 : vector<8x8x1xf32> to vector<8x8x32xf32>
    %60 = arith.mulf %59, %57 : vector<8x8x32xf32>
    %61 = vector.shape_cast %3 : vector<8x32xf32> to vector<1x8x32xf32>
    %62 = vector.broadcast %61 : vector<1x8x32xf32> to vector<8x8x32xf32>
    %63 = arith.mulf %60, %62 : vector<8x8x32xf32>
    %cst_33 = arith.constant dense<0.000000e+00> : vector<8x32xf32>
    %64 = vector.multi_reduction <add>, %63, %cst_33 [1] : vector<8x8x32xf32> to vector<8x32xf32>
    %65 = arith.addf %6, %64 : vector<8x32xf32>
    %c0_34 = arith.constant 0 : index
    %c0_35 = arith.constant 0 : index
    %c0_36 = arith.constant 0 : index
    %66 = vector.load %arg15[%c0_34, %c0_35, %c0_36] : memref<1x8x32xf32, #tpu.memory_space<vmem>>, vector<1x8x32xf32>
    %67 = vector.shape_cast %66 : vector<1x8x32xf32> to vector<8x32xf32>
    %68 = vector.shape_cast %65 : vector<8x32xf32> to vector<1x8x32xf32>
    tpu.vector_store %arg15[%c0_34, %c0_35, %c0_36], %68 {strides = array<i32>} : memref<1x8x32xf32, #tpu.memory_space<vmem>>, vector<1x8x32xf32>,
    %69 = vector.shape_cast %52 : vector<8x8x32xf32> to vector<64x32xf32>
    %c0_37 = arith.constant 0 : index
    %c0_38 = arith.constant 0 : index
    %70 = vector.load %arg13[%c0_37, %c0_38] : memref<32x2xf32, #tpu.memory_space<vmem>>, vector<32x2xf32>
    %cst_39 = arith.constant dense<0.000000e+00> : vector<64x2xf32>
    %71 = tpu.matmul %69, %70, %cst_39 {dimension_numbers = #tpu.dot_dimension_numbers<[1], [0], [0], [1], [0, 0, 1, 1], [], []>} : vector<64x32xf32>, vector<32x2xf32>, vector<64x2xf32> -> vector<64x2xf32>
    %c0_40 = arith.constant 0 : index
    %c0_41 = arith.constant 0 : index
    %72 = vector.load %arg14[%c0_40, %c0_41] : memref<1x2xf32, #tpu.memory_space<vmem>>, vector<1x2xf32>
    %73 = vector.broadcast %72 : vector<1x2xf32> to vector<64x2xf32>
    %74 = arith.addf %71, %73 : vector<64x2xf32>
    %75 = arith.negf %74 : vector<64x2xf32>
    %76 = math.exp %75 : vector<64x2xf32>
    %cst_42 = arith.constant 1.000000e+00 : f32
    %77 = vector.broadcast %cst_42 : f32 to vector<64x2xf32>
    %78 = arith.addf %77, %76 : vector<64x2xf32>
    %79 = arith.divf %77, %78 : vector<64x2xf32>
    %80 = vector.shape_cast %79 : vector<64x2xf32> to vector<8x8x2xf32>
    %81 = vector.shape_cast %9 : vector<8x8xf32> to vector<8x8x1xf32>
    %82 = vector.broadcast %81 : vector<8x8x1xf32> to vector<8x8x2xf32>
    %83 = arith.mulf %80, %82 : vector<8x8x2xf32>
    %cst_43 = arith.constant 0.000000e+00 : f32
    %84 = vector.broadcast %cst_43 : f32 to vector<8x8x2xf32>
    %85 = arith.subf %84, %22 : vector<8x8x2xf32>
    %86 = arith.mulf %83, %85 : vector<8x8x2xf32>
    %cst_44 = arith.constant dense<0.000000e+00> : vector<8x2xf32>
    %87 = vector.multi_reduction <add>, %86, %cst_44 [1] : vector<8x8x2xf32> to vector<8x2xf32>
    %c0_45 = arith.constant 0 : index
    %c0_46 = arith.constant 0 : index
    %c0_47 = arith.constant 0 : index
    %c0_48 = arith.constant 0 : index
    %88 = vector.load %arg16[%c0_45, %c0_46, %c0_47, %c0_48] : memref<1x2x8x2xf32, #tpu.memory_space<vmem>>, vector<1x1x8x2xf32>
    %89 = vector.shape_cast %88 : vector<1x1x8x2xf32> to vector<8x2xf32>
    %90 = vector.shape_cast %87 : vector<8x2xf32> to vector<1x1x8x2xf32>
    tpu.vector_store %arg16[%c0_45, %c0_46, %c0_47, %c0_48], %90 {strides = array<i32>} : memref<1x2x8x2xf32, #tpu.memory_space<vmem>>, vector<1x1x8x2xf32>,
    %cst_49 = arith.constant 0.000000e+00 : f32
    %91 = vector.broadcast %cst_49 : f32 to vector<8x8x2xf32>
    %92 = arith.subf %91, %27 : vector<8x8x2xf32>
    %93 = arith.mulf %83, %92 : vector<8x8x2xf32>
    %cst_50 = arith.constant dense<0.000000e+00> : vector<8x2xf32>
    %94 = vector.multi_reduction <add>, %93, %cst_50 [1] : vector<8x8x2xf32> to vector<8x2xf32>
    %c0_51 = arith.constant 0 : index
    %c1 = arith.constant 1 : index
    %c0_52 = arith.constant 0 : index
    %c0_53 = arith.constant 0 : index
    %95 = vector.load %arg16[%c0_51, %c1, %c0_52, %c0_53] : memref<1x2x8x2xf32, #tpu.memory_space<vmem>>, vector<1x1x8x2xf32>
    %96 = vector.shape_cast %95 : vector<1x1x8x2xf32> to vector<8x2xf32>
    %97 = vector.shape_cast %94 : vector<8x2xf32> to vector<1x1x8x2xf32>
    tpu.vector_store %arg16[%c0_51, %c1, %c0_52, %c0_53], %97 {strides = array<i32>} : memref<1x2x8x2xf32, #tpu.memory_space<vmem>>, vector<1x1x8x2xf32>,
    %cst_54 = arith.constant dense<0.000000e+00> : vector<32xf32>
    %98 = vector.multi_reduction <add>, %69, %cst_54 [0] : vector<64x32xf32> to vector<32xf32>
    %cst_55 = arith.constant 6.400000e+01 : f32
    %99 = vector.broadcast %cst_55 : f32 to vector<32xf32>
    %100 = arith.divf %98, %99 : vector<32xf32>
    %101 = vector.shape_cast %100 : vector<32xf32> to vector<1x32xf32>
    %102 = vector.broadcast %101 : vector<1x32xf32> to vector<64x32xf32>
    %103 = arith.subf %69, %102 : vector<64x32xf32>
    %104 = arith.mulf %103, %103 : vector<64x32xf32>
    %cst_56 = arith.constant dense<0.000000e+00> : vector<32xf32>
    %105 = vector.multi_reduction <add>, %104, %cst_56 [0] : vector<64x32xf32> to vector<32xf32>
    %106 = vector.shape_cast %100 : vector<32xf32> to vector<1x32xf32>
    %c0_57 = arith.constant 0 : index
    %c0_58 = arith.constant 0 : index
    %c0_59 = arith.constant 0 : index
    %c0_60 = arith.constant 0 : index
    %107 = vector.load %arg17[%c0_57, %c0_58, %c0_59, %c0_60] : memref<1x1x2x32xf32, #tpu.memory_space<vmem>>, vector<1x1x1x32xf32>
    %108 = vector.shape_cast %107 : vector<1x1x1x32xf32> to vector<1x32xf32>
    %109 = vector.shape_cast %106 : vector<1x32xf32> to vector<1x1x1x32xf32>
    tpu.vector_store %arg17[%c0_57, %c0_58, %c0_59, %c0_60], %109 {strides = array<i32>} : memref<1x1x2x32xf32, #tpu.memory_space<vmem>>, vector<1x1x1x32xf32>,
    %110 = vector.shape_cast %105 : vector<32xf32> to vector<1x32xf32>
    %c0_61 = arith.constant 0 : index
    %c0_62 = arith.constant 0 : index
    %c1_63 = arith.constant 1 : index
    %c0_64 = arith.constant 0 : index
    %111 = vector.load %arg17[%c0_61, %c0_62, %c1_63, %c0_64] : memref<1x1x2x32xf32, #tpu.memory_space<vmem>>, vector<1x1x1x32xf32>
    %112 = vector.shape_cast %111 : vector<1x1x1x32xf32> to vector<1x32xf32>
    %113 = vector.shape_cast %110 : vector<1x32xf32> to vector<1x1x1x32xf32>
    tpu.vector_store %arg17[%c0_61, %c0_62, %c1_63, %c0_64], %113 {strides = array<i32>} : memref<1x1x2x32xf32, #tpu.memory_space<vmem>>, vector<1x1x1x32xf32>,
    return
  }
  func.func @transform_0(%arg0: i32, %arg1: i32) -> (i32, i32, i32) {
    %c0_i32 = arith.constant 0 : i32
    %c0_i32_0 = arith.constant 0 : i32
    %c0_i32_1 = arith.constant 0 : i32
    return %arg0, %c0_i32, %c0_i32_0 : i32, i32, i32
  }
  func.func @transform_1(%arg0: i32, %arg1: i32) -> (i32, i32, i32) {
    %c0_i32 = arith.constant 0 : i32
    %c0_i32_0 = arith.constant 0 : i32
    return %arg0, %arg1, %c0_i32 : i32, i32, i32
  }
  func.func @transform_2(%arg0: i32, %arg1: i32) -> (i32, i32, i32, i32) {
    %c0_i32 = arith.constant 0 : i32
    %c0_i32_0 = arith.constant 0 : i32
    %c0_i32_1 = arith.constant 0 : i32
    return %arg0, %arg1, %c0_i32, %c0_i32_0 : i32, i32, i32, i32
  }
  func.func @transform_3(%arg0: i32, %arg1: i32) -> (i32, i32, i32) {
    %c0_i32 = arith.constant 0 : i32
    %c0_i32_0 = arith.constant 0 : i32
    %c0_i32_1 = arith.constant 0 : i32
    return %arg0, %c0_i32, %c0_i32_0 : i32, i32, i32
  }
  func.func @transform_4(%arg0: i32, %arg1: i32) -> (i32, i32, i32) {
    %c0_i32 = arith.constant 0 : i32
    %c0_i32_0 = arith.constant 0 : i32
    %c0_i32_1 = arith.constant 0 : i32
    return %arg0, %c0_i32, %c0_i32_0 : i32, i32, i32
  }
  func.func @transform_5(%arg0: i32, %arg1: i32) -> (i32, i32, i32) {
    %c0_i32 = arith.constant 0 : i32
    %c0_i32_0 = arith.constant 0 : i32
    return %arg0, %arg1, %c0_i32 : i32, i32, i32
  }
  func.func @transform_6(%arg0: i32, %arg1: i32) -> (i32, i32, i32) {
    %c0_i32 = arith.constant 0 : i32
    %c0_i32_0 = arith.constant 0 : i32
    return %arg0, %arg1, %c0_i32 : i32, i32, i32
  }
  func.func @transform_7(%arg0: i32, %arg1: i32) -> (i32, i32, i32) {
    %c0_i32 = arith.constant 0 : i32
    %c0_i32_0 = arith.constant 0 : i32
    return %arg0, %arg1, %c0_i32 : i32, i32, i32
  }
  func.func @transform_8(%arg0: i32, %arg1: i32) -> (i32, i32) {
    %c0_i32 = arith.constant 0 : i32
    %c0_i32_0 = arith.constant 0 : i32
    %c0_i32_1 = arith.constant 0 : i32
    return %c0_i32, %c0_i32_0 : i32, i32
  }
  func.func @transform_9(%arg0: i32, %arg1: i32) -> (i32, i32) {
    %c0_i32 = arith.constant 0 : i32
    %c0_i32_0 = arith.constant 0 : i32
    %c0_i32_1 = arith.constant 0 : i32
    return %c0_i32, %c0_i32_0 : i32, i32
  }
  func.func @transform_10(%arg0: i32, %arg1: i32) -> (i32, i32) {
    %c0_i32 = arith.constant 0 : i32
    %c0_i32_0 = arith.constant 0 : i32
    %c0_i32_1 = arith.constant 0 : i32
    return %c0_i32, %c0_i32_0 : i32, i32
  }
  func.func @transform_11(%arg0: i32, %arg1: i32) -> (i32, i32) {
    %c0_i32 = arith.constant 0 : i32
    %c0_i32_0 = arith.constant 0 : i32
    %c0_i32_1 = arith.constant 0 : i32
    return %c0_i32, %c0_i32_0 : i32, i32
  }
  func.func @transform_12(%arg0: i32, %arg1: i32) -> (i32, i32) {
    %c0_i32 = arith.constant 0 : i32
    %c0_i32_0 = arith.constant 0 : i32
    %c0_i32_1 = arith.constant 0 : i32
    return %c0_i32, %c0_i32_0 : i32, i32
  }
  func.func @transform_13(%arg0: i32, %arg1: i32) -> (i32, i32, i32) {
    %c0_i32 = arith.constant 0 : i32
    %c0_i32_0 = arith.constant 0 : i32
    return %arg0, %arg1, %c0_i32 : i32, i32, i32
  }
  func.func @transform_14(%arg0: i32, %arg1: i32) -> (i32, i32, i32, i32) {
    %c0_i32 = arith.constant 0 : i32
    %c0_i32_0 = arith.constant 0 : i32
    %c0_i32_1 = arith.constant 0 : i32
    return %arg0, %c0_i32, %arg1, %c0_i32_0 : i32, i32, i32, i32
  }
  func.func @transform_15(%arg0: i32, %arg1: i32) -> (i32, i32, i32, i32) {
    %c0_i32 = arith.constant 0 : i32
    %c0_i32_0 = arith.constant 0 : i32
    %c0_i32_1 = arith.constant 0 : i32
    return %arg0, %arg1, %c0_i32, %c0_i32_0 : i32, i32, i32, i32
  }
}

module attributes {stable_mosaic.version = 11 : i64} {
  func.func @_gegnn_edge_out_kernel(%arg0: i32, %arg1: i32, %arg2: memref<1x8x64xf32, #tpu.memory_space<vmem>>, %arg3: memref<1x8x64xf32, #tpu.memory_space<vmem>>, %arg4: memref<1x8x8x32xf32, #tpu.memory_space<vmem>>, %arg5: memref<1x8x2xf32, #tpu.memory_space<vmem>>, %arg6: memref<1x8x2xf32, #tpu.memory_space<vmem>>, %arg7: memref<1x8x2xf32, #tpu.memory_space<vmem>>, %arg8: memref<1x8x2xf32, #tpu.memory_space<vmem>>, %arg9: memref<32x32xf32, #tpu.memory_space<vmem>>, %arg10: memref<1x32xf32, #tpu.memory_space<vmem>>, %arg11: memref<2x32xf32, #tpu.memory_space<vmem>>, %arg12: memref<1x32xf32, #tpu.memory_space<vmem>>, %arg13: memref<1x32xf32, #tpu.memory_space<vmem>>, %arg14: memref<1x8x8x32xf32, #tpu.memory_space<vmem>>) attributes {dimension_semantics = [#tpu.dimension_semantics<parallel>, #tpu.dimension_semantics<parallel>], iteration_bounds = array<i64: 2, 1>, scalar_prefetch = 0 : i64, scratch_operands = 0 : i64, tpu.core_type = #tpu.core_type<tc>, window_params = [{transform_indices = @transform_0, window_bounds = array<i64: 1, 8, 64>}, {transform_indices = @transform_1, window_bounds = array<i64: 1, 8, 64>}, {transform_indices = @transform_2, window_bounds = array<i64: 1, 8, 8, 32>}, {transform_indices = @transform_3, window_bounds = array<i64: 1, 8, 2>}, {transform_indices = @transform_4, window_bounds = array<i64: 1, 8, 2>}, {transform_indices = @transform_5, window_bounds = array<i64: 1, 8, 2>}, {transform_indices = @transform_6, window_bounds = array<i64: 1, 8, 2>}, {pipeline_mode = #tpu.pipeline_mode<synchronous>, transform_indices = @transform_7, window_bounds = array<i64: 32, 32>}, {pipeline_mode = #tpu.pipeline_mode<synchronous>, transform_indices = @transform_8, window_bounds = array<i64: 1, 32>}, {pipeline_mode = #tpu.pipeline_mode<synchronous>, transform_indices = @transform_9, window_bounds = array<i64: 2, 32>}, {pipeline_mode = #tpu.pipeline_mode<synchronous>, transform_indices = @transform_10, window_bounds = array<i64: 1, 32>}, {pipeline_mode = #tpu.pipeline_mode<synchronous>, transform_indices = @transform_11, window_bounds = array<i64: 1, 32>}, {transform_indices = @transform_12, window_bounds = array<i64: 1, 8, 8, 32>}]} {
    %c0 = arith.constant 0 : index
    %c0_0 = arith.constant 0 : index
    %c0_1 = arith.constant 0 : index
    %0 = vector.load %arg2[%c0, %c0_0, %c0_1] : memref<1x8x64xf32, #tpu.memory_space<vmem>>, vector<1x8x64xf32>
    %1 = vector.shape_cast %0 : vector<1x8x64xf32> to vector<8x64xf32>
    %2 = vector.extract_strided_slice %1 {offsets = [0, 0], sizes = [8, 32], strides = [1, 1]} : vector<8x64xf32> to vector<8x32xf32>
    %c0_2 = arith.constant 0 : index
    %c0_3 = arith.constant 0 : index
    %c0_4 = arith.constant 0 : index
    %3 = vector.load %arg3[%c0_2, %c0_3, %c0_4] : memref<1x8x64xf32, #tpu.memory_space<vmem>>, vector<1x8x64xf32>
    %4 = vector.shape_cast %3 : vector<1x8x64xf32> to vector<8x64xf32>
    %5 = vector.extract_strided_slice %4 {offsets = [0, 32], sizes = [8, 32], strides = [1, 1]} : vector<8x64xf32> to vector<8x32xf32>
    %c0_5 = arith.constant 0 : index
    %c0_6 = arith.constant 0 : index
    %c0_7 = arith.constant 0 : index
    %6 = vector.load %arg5[%c0_5, %c0_6, %c0_7] : memref<1x8x2xf32, #tpu.memory_space<vmem>>, vector<1x8x2xf32>
    %7 = vector.shape_cast %6 : vector<1x8x2xf32> to vector<8x2xf32>
    %c0_8 = arith.constant 0 : index
    %c0_9 = arith.constant 0 : index
    %c0_10 = arith.constant 0 : index
    %8 = vector.load %arg6[%c0_8, %c0_9, %c0_10] : memref<1x8x2xf32, #tpu.memory_space<vmem>>, vector<1x8x2xf32>
    %9 = vector.shape_cast %8 : vector<1x8x2xf32> to vector<8x2xf32>
    %c0_11 = arith.constant 0 : index
    %c0_12 = arith.constant 0 : index
    %c0_13 = arith.constant 0 : index
    %10 = vector.load %arg7[%c0_11, %c0_12, %c0_13] : memref<1x8x2xf32, #tpu.memory_space<vmem>>, vector<1x8x2xf32>
    %11 = vector.shape_cast %10 : vector<1x8x2xf32> to vector<8x2xf32>
    %c0_14 = arith.constant 0 : index
    %c0_15 = arith.constant 0 : index
    %c0_16 = arith.constant 0 : index
    %12 = vector.load %arg8[%c0_14, %c0_15, %c0_16] : memref<1x8x2xf32, #tpu.memory_space<vmem>>, vector<1x8x2xf32>
    %13 = vector.shape_cast %12 : vector<1x8x2xf32> to vector<8x2xf32>
    %14 = vector.shape_cast %7 : vector<8x2xf32> to vector<1x8x2xf32>
    %15 = vector.shape_cast %11 : vector<8x2xf32> to vector<8x1x2xf32>
    %16 = vector.broadcast %14 : vector<1x8x2xf32> to vector<8x8x2xf32>
    %17 = vector.broadcast %15 : vector<8x1x2xf32> to vector<8x8x2xf32>
    %18 = arith.subf %16, %17 : vector<8x8x2xf32>
    %19 = vector.shape_cast %9 : vector<8x2xf32> to vector<1x8x2xf32>
    %20 = vector.shape_cast %13 : vector<8x2xf32> to vector<8x1x2xf32>
    %21 = vector.broadcast %19 : vector<1x8x2xf32> to vector<8x8x2xf32>
    %22 = vector.broadcast %20 : vector<8x1x2xf32> to vector<8x8x2xf32>
    %23 = arith.subf %21, %22 : vector<8x8x2xf32>
    %24 = arith.mulf %18, %18 : vector<8x8x2xf32>
    %cst = arith.constant 2.000000e-08 : f32
    %25 = vector.broadcast %cst : f32 to vector<8x8x2xf32>
    %26 = arith.addf %25, %24 : vector<8x8x2xf32>
    %27 = arith.mulf %23, %23 : vector<8x8x2xf32>
    %28 = arith.addf %26, %27 : vector<8x8x2xf32>
    %29 = math.sqrt %28 : vector<8x8x2xf32>
    %c0_17 = arith.constant 0 : index
    %c0_18 = arith.constant 0 : index
    %c0_19 = arith.constant 0 : index
    %c0_20 = arith.constant 0 : index
    %30 = vector.load %arg4[%c0_17, %c0_18, %c0_19, %c0_20] : memref<1x8x8x32xf32, #tpu.memory_space<vmem>>, vector<1x8x8x32xf32>
    %31 = vector.shape_cast %30 : vector<1x8x8x32xf32> to vector<8x8x32xf32>
    %32 = vector.shape_cast %31 : vector<8x8x32xf32> to vector<64x32xf32>
    %c0_21 = arith.constant 0 : index
    %c0_22 = arith.constant 0 : index
    %33 = vector.load %arg9[%c0_21, %c0_22] : memref<32x32xf32, #tpu.memory_space<vmem>>, vector<32x32xf32>
    %cst_23 = arith.constant dense<0.000000e+00> : vector<64x32xf32>
    %34 = tpu.matmul %32, %33, %cst_23 {dimension_numbers = #tpu.dot_dimension_numbers<[1], [0], [0], [1], [0, 0, 1, 1], [], []>} : vector<64x32xf32>, vector<32x32xf32>, vector<64x32xf32> -> vector<64x32xf32>
    %35 = vector.shape_cast %29 : vector<8x8x2xf32> to vector<64x2xf32>
    %c0_24 = arith.constant 0 : index
    %c0_25 = arith.constant 0 : index
    %36 = vector.load %arg11[%c0_24, %c0_25] : memref<2x32xf32, #tpu.memory_space<vmem>>, vector<2x32xf32>
    %cst_26 = arith.constant dense<0.000000e+00> : vector<64x32xf32>
    %37 = tpu.matmul %35, %36, %cst_26 {dimension_numbers = #tpu.dot_dimension_numbers<[1], [0], [0], [1], [0, 0, 1, 1], [], []>} : vector<64x2xf32>, vector<2x32xf32>, vector<64x32xf32> -> vector<64x32xf32>
    %38 = arith.addf %34, %37 : vector<64x32xf32>
    %c0_27 = arith.constant 0 : index
    %c0_28 = arith.constant 0 : index
    %39 = vector.load %arg10[%c0_27, %c0_28] : memref<1x32xf32, #tpu.memory_space<vmem>>, vector<1x32xf32>
    %40 = vector.broadcast %39 : vector<1x32xf32> to vector<64x32xf32>
    %41 = arith.addf %38, %40 : vector<64x32xf32>
    %42 = vector.shape_cast %2 : vector<8x32xf32> to vector<1x8x32xf32>
    %43 = vector.shape_cast %5 : vector<8x32xf32> to vector<8x1x32xf32>
    %44 = vector.broadcast %42 : vector<1x8x32xf32> to vector<8x8x32xf32>
    %45 = vector.broadcast %43 : vector<8x1x32xf32> to vector<8x8x32xf32>
    %46 = arith.addf %44, %45 : vector<8x8x32xf32>
    %47 = vector.shape_cast %41 : vector<64x32xf32> to vector<8x8x32xf32>
    %48 = arith.addf %46, %47 : vector<8x8x32xf32>
    %c0_29 = arith.constant 0 : index
    %c0_30 = arith.constant 0 : index
    %49 = vector.load %arg12[%c0_29, %c0_30] : memref<1x32xf32, #tpu.memory_space<vmem>>, vector<1x32xf32>
    %50 = vector.shape_cast %49 : vector<1x32xf32> to vector<32xf32>
    %51 = vector.shape_cast %50 : vector<32xf32> to vector<1x1x32xf32>
    %52 = vector.broadcast %51 : vector<1x1x32xf32> to vector<8x8x32xf32>
    %53 = arith.mulf %48, %52 : vector<8x8x32xf32>
    %c0_31 = arith.constant 0 : index
    %c0_32 = arith.constant 0 : index
    %54 = vector.load %arg13[%c0_31, %c0_32] : memref<1x32xf32, #tpu.memory_space<vmem>>, vector<1x32xf32>
    %55 = vector.shape_cast %54 : vector<1x32xf32> to vector<32xf32>
    %56 = vector.shape_cast %55 : vector<32xf32> to vector<1x1x32xf32>
    %57 = vector.broadcast %56 : vector<1x1x32xf32> to vector<8x8x32xf32>
    %58 = arith.addf %53, %57 : vector<8x8x32xf32>
    %cst_33 = arith.constant 0.000000e+00 : f32
    %59 = vector.broadcast %cst_33 : f32 to vector<8x8x32xf32>
    %60 = arith.maximumf %58, %59 : vector<8x8x32xf32>
    %61 = arith.addf %31, %60 : vector<8x8x32xf32>
    %c0_34 = arith.constant 0 : index
    %c0_35 = arith.constant 0 : index
    %c0_36 = arith.constant 0 : index
    %c0_37 = arith.constant 0 : index
    %62 = vector.load %arg14[%c0_34, %c0_35, %c0_36, %c0_37] : memref<1x8x8x32xf32, #tpu.memory_space<vmem>>, vector<1x8x8x32xf32>
    %63 = vector.shape_cast %62 : vector<1x8x8x32xf32> to vector<8x8x32xf32>
    %64 = vector.shape_cast %61 : vector<8x8x32xf32> to vector<1x8x8x32xf32>
    tpu.vector_store %arg14[%c0_34, %c0_35, %c0_36, %c0_37], %64 {strides = array<i32>} : memref<1x8x8x32xf32, #tpu.memory_space<vmem>>, vector<1x8x8x32xf32>,
    return
  }
  func.func @transform_0(%arg0: i32, %arg1: i32) -> (i32, i32, i32) {
    %c0_i32 = arith.constant 0 : i32
    %c0_i32_0 = arith.constant 0 : i32
    %c0_i32_1 = arith.constant 0 : i32
    return %arg0, %c0_i32, %c0_i32_0 : i32, i32, i32
  }
  func.func @transform_1(%arg0: i32, %arg1: i32) -> (i32, i32, i32) {
    %c0_i32 = arith.constant 0 : i32
    %c0_i32_0 = arith.constant 0 : i32
    return %arg0, %arg1, %c0_i32 : i32, i32, i32
  }
  func.func @transform_2(%arg0: i32, %arg1: i32) -> (i32, i32, i32, i32) {
    %c0_i32 = arith.constant 0 : i32
    %c0_i32_0 = arith.constant 0 : i32
    %c0_i32_1 = arith.constant 0 : i32
    return %arg0, %arg1, %c0_i32, %c0_i32_0 : i32, i32, i32, i32
  }
  func.func @transform_3(%arg0: i32, %arg1: i32) -> (i32, i32, i32) {
    %c0_i32 = arith.constant 0 : i32
    %c0_i32_0 = arith.constant 0 : i32
    %c0_i32_1 = arith.constant 0 : i32
    return %arg0, %c0_i32, %c0_i32_0 : i32, i32, i32
  }
  func.func @transform_4(%arg0: i32, %arg1: i32) -> (i32, i32, i32) {
    %c0_i32 = arith.constant 0 : i32
    %c0_i32_0 = arith.constant 0 : i32
    %c0_i32_1 = arith.constant 0 : i32
    return %arg0, %c0_i32, %c0_i32_0 : i32, i32, i32
  }
  func.func @transform_5(%arg0: i32, %arg1: i32) -> (i32, i32, i32) {
    %c0_i32 = arith.constant 0 : i32
    %c0_i32_0 = arith.constant 0 : i32
    return %arg0, %arg1, %c0_i32 : i32, i32, i32
  }
  func.func @transform_6(%arg0: i32, %arg1: i32) -> (i32, i32, i32) {
    %c0_i32 = arith.constant 0 : i32
    %c0_i32_0 = arith.constant 0 : i32
    return %arg0, %arg1, %c0_i32 : i32, i32, i32
  }
  func.func @transform_7(%arg0: i32, %arg1: i32) -> (i32, i32) {
    %c0_i32 = arith.constant 0 : i32
    %c0_i32_0 = arith.constant 0 : i32
    %c0_i32_1 = arith.constant 0 : i32
    return %c0_i32, %c0_i32_0 : i32, i32
  }
  func.func @transform_8(%arg0: i32, %arg1: i32) -> (i32, i32) {
    %c0_i32 = arith.constant 0 : i32
    %c0_i32_0 = arith.constant 0 : i32
    %c0_i32_1 = arith.constant 0 : i32
    return %c0_i32, %c0_i32_0 : i32, i32
  }
  func.func @transform_9(%arg0: i32, %arg1: i32) -> (i32, i32) {
    %c0_i32 = arith.constant 0 : i32
    %c0_i32_0 = arith.constant 0 : i32
    %c0_i32_1 = arith.constant 0 : i32
    return %c0_i32, %c0_i32_0 : i32, i32
  }
  func.func @transform_10(%arg0: i32, %arg1: i32) -> (i32, i32) {
    %c0_i32 = arith.constant 0 : i32
    %c0_i32_0 = arith.constant 0 : i32
    %c0_i32_1 = arith.constant 0 : i32
    return %c0_i32, %c0_i32_0 : i32, i32
  }
  func.func @transform_11(%arg0: i32, %arg1: i32) -> (i32, i32) {
    %c0_i32 = arith.constant 0 : i32
    %c0_i32_0 = arith.constant 0 : i32
    %c0_i32_1 = arith.constant 0 : i32
    return %c0_i32, %c0_i32_0 : i32, i32
  }
  func.func @transform_12(%arg0: i32, %arg1: i32) -> (i32, i32, i32, i32) {
    %c0_i32 = arith.constant 0 : i32
    %c0_i32_0 = arith.constant 0 : i32
    %c0_i32_1 = arith.constant 0 : i32
    return %arg0, %arg1, %c0_i32, %c0_i32_0 : i32, i32, i32, i32
  }
}

</mosaic_0001>

<llo_original>
// kernel: gegnn_layer_pallas.3
$region0: #{gegnn_layer_pallas.3}
  #allocation0 [shape = 'u32[]', space=smem, size = 0x4, offset = 0x4, fixed_abs, tag = 'smem constant byte address 0x4 - core index']
  #allocation1 [shape = 'u32[72,128]{1,0:T(1,128)}', space=vmem, size = 0x9000, scoped, tag = 'internal scratch']
  %s0 = inlined_call_operand.vmem [shape: f32[2,8,64], index: 0, kind: input, shape index: {}]
  %s1 = inlined_call_operand.vmem [shape: f32[2,8,64], index: 1, kind: input, shape index: {}]
  %s2 = inlined_call_operand.hbm [shape: f32[2,8,8,32], index: 2, kind: input, shape index: {}]
  %s3 = inlined_call_operand.vmem [shape: f32[2,8,2], index: 3, kind: input, shape index: {}, may-alias: {3,5}]
  %s4 = inlined_call_operand.vmem [shape: f32[2,8,2], index: 4, kind: input, shape index: {}, may-alias: {4,6}]
  %s5 = inlined_call_operand.vmem [shape: f32[2,8,2], index: 5, kind: input, shape index: {}, may-alias: {3,5}]
  %s6 = inlined_call_operand.vmem [shape: f32[2,8,2], index: 6, kind: input, shape index: {}, may-alias: {4,6}]
  %s7 = inlined_call_operand.vmem [shape: f32[32,32], index: 7, kind: input, shape index: {}]
  %s8 = inlined_call_operand.vmem [shape: f32[1,32], index: 8, kind: input, shape index: {}]
  %s9 = inlined_call_operand.vmem [shape: f32[2,32], index: 9, kind: input, shape index: {}]
  %s10 = inlined_call_operand.vmem [shape: f32[1,32], index: 10, kind: input, shape index: {}]
  %s11 = inlined_call_operand.vmem [shape: f32[1,32], index: 11, kind: input, shape index: {}]
  %s12 = inlined_call_operand.hbm [shape: f32[2,8,8,32], index: 12, kind: output, shape index: {}]
  %s13 = sld [smem:[#allocation0]]
  $region85: #{gegnn_layer_pallas.3} parent=0
    _
  %s15 = ssub.s32 1, %s13
  %s16 = scalar_select 0, %s15, %s13
  $region1: #{gegnn_layer_pallas.3} parent=0
    #allocation2 [shape = 'u8[65536]{0}', space=vmem, size = 0x10000, scoped, tag = 'input window, operand 2']
    #allocation3 [shape = 's32[2]{0}', space=sflag, size = 0x8, scoped, tag = 'scoped memory for gegnn_layer_pallas.3']
    #allocation4 [shape = 's32[2]{0}', space=sflag, size = 0x8, scoped, tag = 'scoped memory for gegnn_layer_pallas.3']
    #allocation5 [shape = 'u8[65536]{0}', space=vmem, size = 0x10000, scoped, tag = 'output window, operand 0']
    %17 = vsyncpa [#allocation3], 0
    %s18 = scalar_lea.sflag [#allocation3], 1
    %19 = vsyncpa %s18, 0
    %20 = vsyncpa [#allocation4], 0
    %s21 = scalar_lea.sflag [#allocation4], 1
    %22 = vsyncpa %s21, 0
    loop: start=0, step=1, limit=4
    $region2: #{gegnn_layer_pallas.3} parent=1 // loop_pre_header
      _
    $region3: #{gegnn_layer_pallas.3} parent=1 // loop_header
      %s24 = sphi 0, %s28
      %p25 = scmp.ge.s32.totalorder %s24, 4
      %s31 = sphi 0, %s43
      %s32 = sphi 0, %s39
      %s33 = sphi 0, %s31
      %s34 = sphi 0, %s32
      %s35 = sphi 0, %s33
      %s36 = sphi 0, %s34
      %s46 = sphi 0, %s48
      %s49 = sphi 0, %s46
      %s50 = sphi 0, %s49
      %s66 = sphi 0, %s50
      %s74 = sphi 0, %s76
      %s77 = sphi 0, %s74
      %s78 = sphi 0, %s77
      %s94 = sphi 0, %s78
      %s102 = sphi 0, %s104
      %s105 = sphi 0, %s102
      %s106 = sphi 0, %s105
      %s122 = sphi 0, %s106
      %s128 = sphi 0, %s130
      %s131 = sphi 0, %s128
      %s132 = sphi 0, %s131
      %s148 = sphi 0, %s132
      %s154 = sphi 0, %s156
      %s157 = sphi 0, %s154
      %s158 = sphi 0, %s157
      %s174 = sphi 0, %s158
      %s182 = sphi 0, %s184
      %s185 = sphi 0, %s182
      %s186 = sphi 0, %s185
      %s202 = sphi 0, %s186
      %s210 = sphi 0, %s212
      %s213 = sphi 0, %s210
      %s214 = sphi 0, %s213
      %s230 = sphi 0, %s214
      %s234 = sphi 0, %s234
      %s236 = sphi 0, %s234
      %s237 = sphi 0, %s236
      %s251 = sphi 0, %s237
      %s255 = sphi 0, %s255
      %s257 = sphi 0, %s255
      %s258 = sphi 0, %s257
      %s272 = sphi 0, %s258
      %s276 = sphi 0, %s276
      %s278 = sphi 0, %s276
      %s279 = sphi 0, %s278
      %s293 = sphi 0, %s279
      %s297 = sphi 0, %s297
      %s299 = sphi 0, %s297
      %s300 = sphi 0, %s299
      %s314 = sphi 0, %s300
      %s318 = sphi 0, %s318
      %s320 = sphi 0, %s318
      %s321 = sphi 0, %s320
      %s335 = sphi 0, %s321
      %s343 = sphi 0, %s345
      %s346 = sphi 0, %s343
      %s347 = sphi 0, %s346
      %s363 = sphi 0, %s347
    $region4: #{gegnn_layer_pallas.3} parent=1 // loop_header_branch
      %27 = sbr.rel (%p25) target = $region8
    $region5: #{gegnn_layer_pallas.3} parent=1 // loop_body
      %s29 = ssub.s32 %s24, 1
      %s30 = ssub.s32 %s24, 2
      %s37 = sadd.s32 1, %s32
      %p38 = scmp.ge.s32.totalorder %s37, 1
      %s39 = scalar_select %p38, 0, %s37
      %s40 = sadd.s32 1, %s31
      %s41 = scalar_select %p38, %s40, %s31
      %p42 = scmp.ge.s32.totalorder %s41, 2
      %s43 = scalar_select %p42, 0, %s41
      %s44 = ssub.s32 %s31, %s43
      %p45 = scmp.eq.s32.totalorder %s44, 0
      %s47 = sadd.s32 %s46, 1
      %s48 = scalar_select %p45, %s46, %s47
      %p51 = pneg %p45
      %p52 = scmp.eq.s32.totalorder %s24, 1
      %p53 = por %p51, %p52
      %p54 = scmp.ne.s32.totalorder %s46, %s49
      %p55 = scmp.eq.s32.totalorder %s24, 0
      %p56 = por %p54, %p55
      %p57 = scmp.ne.s32.totalorder %s46, %s49
      %p58 = scmp.eq.s32.totalorder %s29, 1
      %p59 = por %p57, %p58
      %p60 = scmp.ne.s32.totalorder %s49, %s50
      %p61 = scmp.eq.s32.totalorder %s29, 0
      %p62 = por %p60, %p61
      %p63 = scmp.ne.s32.totalorder %s49, %s50
      %p64 = scmp.eq.s32.totalorder %s30, 1
      %p65 = por %p63, %p64
      %p67 = scmp.ne.s32.totalorder %s50, %s66
      %p68 = scmp.eq.s32.totalorder %s30, 0
      %p69 = por %p67, %p68
      %s70 = ssub.s32 %s31, %s43
      %s71 = ssub.s32 %s32, %s39
      %s72 = sor.u32 %s70, %s71
      %p73 = scmp.eq.s32.totalorder %s72, 0
      %s75 = sadd.s32 %s74, 1
      %s76 = scalar_select %p73, %s74, %s75
      %p79 = pneg %p73
      %p80 = scmp.eq.s32.totalorder %s24, 1
      %p81 = por %p79, %p80
      %p82 = scmp.ne.s32.totalorder %s74, %s77
      %p83 = scmp.eq.s32.totalorder %s24, 0
      %p84 = por %p82, %p83
      %p85 = scmp.ne.s32.totalorder %s74, %s77
      %p86 = scmp.eq.s32.totalorder %s29, 1
      %p87 = por %p85, %p86
      %p88 = scmp.ne.s32.totalorder %s77, %s78
      %p89 = scmp.eq.s32.totalorder %s29, 0
      %p90 = por %p88, %p89
      %p91 = scmp.ne.s32.totalorder %s77, %s78
      %p92 = scmp.eq.s32.totalorder %s30, 1
      %p93 = por %p91, %p92
      %p95 = scmp.ne.s32.totalorder %s78, %s94
      %p96 = scmp.eq.s32.totalorder %s30, 0
      %p97 = por %p95, %p96
      %s98 = ssub.s32 %s31, %s43
      %s99 = ssub.s32 %s32, %s39
      %s100 = sor.u32 %s98, %s99
      %p101 = scmp.eq.s32.totalorder %s100, 0
      %s103 = sadd.s32 %s102, 1
      %s104 = scalar_select %p101, %s102, %s103
      %p107 = pneg %p101
      %p108 = scmp.eq.s32.totalorder %s24, 1
      %p109 = por %p107, %p108
      %p110 = scmp.ne.s32.totalorder %s102, %s105
      %p111 = scmp.eq.s32.totalorder %s24, 0
      %p112 = por %p110, %p111
      %p113 = scmp.ne.s32.totalorder %s102, %s105
      %p114 = scmp.eq.s32.totalorder %s29, 1
      %p115 = por %p113, %p114
      %p116 = scmp.ne.s32.totalorder %s105, %s106
      %p117 = scmp.eq.s32.totalorder %s29, 0
      %p118 = por %p116, %p117
      %p119 = scmp.ne.s32.totalorder %s105, %s106
      %p120 = scmp.eq.s32.totalorder %s30, 1
      %p121 = por %p119, %p120
      %p123 = scmp.ne.s32.totalorder %s106, %s122
      %p124 = scmp.eq.s32.totalorder %s30, 0
      %p125 = por %p123, %p124
      %s126 = ssub.s32 %s31, %s43
      %p127 = scmp.eq.s32.totalorder %s126, 0
      %s129 = sadd.s32 %s128, 1
      %s130 = scalar_select %p127, %s128, %s129
      %p133 = pneg %p127
      %p134 = scmp.eq.s32.totalorder %s24, 1
      %p135 = por %p133, %p134
      %p136 = scmp.ne.s32.totalorder %s128, %s131
      %p137 = scmp.eq.s32.totalorder %s24, 0
      %p138 = por %p136, %p137
      %p139 = scmp.ne.s32.totalorder %s128, %s131
      %p140 = scmp.eq.s32.totalorder %s29, 1
      %p141 = por %p139, %p140
      %p142 = scmp.ne.s32.totalorder %s131, %s132
      %p143 = scmp.eq.s32.totalorder %s29, 0
      %p144 = por %p142, %p143
      %p145 = scmp.ne.s32.totalorder %s131, %s132
      %p146 = scmp.eq.s32.totalorder %s30, 1
      %p147 = por %p145, %p146
      %p149 = scmp.ne.s32.totalorder %s132, %s148
      %p150 = scmp.eq.s32.totalorder %s30, 0
      %p151 = por %p149, %p150
      %s152 = ssub.s32 %s31, %s43
      %p153 = scmp.eq.s32.totalorder %s152, 0
      %s155 = sadd.s32 %s154, 1
      %s156 = scalar_select %p153, %s154, %s155
      %p159 = pneg %p153
      %p160 = scmp.eq.s32.totalorder %s24, 1
      %p161 = por %p159, %p160
      %p162 = scmp.ne.s32.totalorder %s154, %s157
      %p163 = scmp.eq.s32.totalorder %s24, 0
      %p164 = por %p162, %p163
      %p165 = scmp.ne.s32.totalorder %s154, %s157
      %p166 = scmp.eq.s32.totalorder %s29, 1
      %p167 = por %p165, %p166
      %p168 = scmp.ne.s32.totalorder %s157, %s158
      %p169 = scmp.eq.s32.totalorder %s29, 0
      %p170 = por %p168, %p169
      %p171 = scmp.ne.s32.totalorder %s157, %s158
      %p172 = scmp.eq.s32.totalorder %s30, 1
      %p173 = por %p171, %p172
      %p175 = scmp.ne.s32.totalorder %s158, %s174
      %p176 = scmp.eq.s32.totalorder %s30, 0
      %p177 = por %p175, %p176
      %s178 = ssub.s32 %s31, %s43
      %s179 = ssub.s32 %s32, %s39
      %s180 = sor.u32 %s178, %s179
      %p181 = scmp.eq.s32.totalorder %s180, 0
      %s183 = sadd.s32 %s182, 1
      %s184 = scalar_select %p181, %s182, %s183
      %p187 = pneg %p181
      %p188 = scmp.eq.s32.totalorder %s24, 1
      %p189 = por %p187, %p188
      %p190 = scmp.ne.s32.totalorder %s182, %s185
      %p191 = scmp.eq.s32.totalorder %s24, 0
      %p192 = por %p190, %p191
      %p193 = scmp.ne.s32.totalorder %s182, %s185
      %p194 = scmp.eq.s32.totalorder %s29, 1
      %p195 = por %p193, %p194
      %p196 = scmp.ne.s32.totalorder %s185, %s186
      %p197 = scmp.eq.s32.totalorder %s29, 0
      %p198 = por %p196, %p197
      %p199 = scmp.ne.s32.totalorder %s185, %s186
      %p200 = scmp.eq.s32.totalorder %s30, 1
      %p201 = por %p199, %p200
      %p203 = scmp.ne.s32.totalorder %s186, %s202
      %p204 = scmp.eq.s32.totalorder %s30, 0
      %p205 = por %p203, %p204
      %s206 = ssub.s32 %s31, %s43
      %s207 = ssub.s32 %s32, %s39
      %s208 = sor.u32 %s206, %s207
      %p209 = scmp.eq.s32.totalorder %s208, 0
      %s211 = sadd.s32 %s210, 1
      %s212 = scalar_select %p209, %s210, %s211
      %p215 = pneg %p209
      %p216 = scmp.eq.s32.totalorder %s24, 1
      %p217 = por %p215, %p216
      %p218 = scmp.ne.s32.totalorder %s210, %s213
      %p219 = scmp.eq.s32.totalorder %s24, 0
      %p220 = por %p218, %p219
      %p221 = scmp.ne.s32.totalorder %s210, %s213
      %p222 = scmp.eq.s32.totalorder %s29, 1
      %p223 = por %p221, %p222
      %p224 = scmp.ne.s32.totalorder %s213, %s214
      %p225 = scmp.eq.s32.totalorder %s29, 0
      %p226 = por %p224, %p225
      %p227 = scmp.ne.s32.totalorder %s213, %s214
      %p228 = scmp.eq.s32.totalorder %s30, 1
      %p229 = por %p227, %p228
      %p231 = scmp.ne.s32.totalorder %s214, %s230
      %p232 = scmp.eq.s32.totalorder %s30, 0
      %p233 = por %p231, %p232
      %s235 = sadd.s32 %s234, 1
      %p238 = scmp.eq.s32.totalorder %s24, 1
      %p239 = scmp.ne.s32.totalorder %s234, %s236
      %p240 = scmp.eq.s32.totalorder %s24, 0
      %p241 = por %p239, %p240
      %p242 = scmp.ne.s32.totalorder %s234, %s236
      %p243 = scmp.eq.s32.totalorder %s29, 1
      %p244 = por %p242, %p243
      %p245 = scmp.ne.s32.totalorder %s236, %s237
      %p246 = scmp.eq.s32.totalorder %s29, 0
      %p247 = por %p245, %p246
      %p248 = scmp.ne.s32.totalorder %s236, %s237
      %p249 = scmp.eq.s32.totalorder %s30, 1
      %p250 = por %p248, %p249
      %p252 = scmp.ne.s32.totalorder %s237, %s251
      %p253 = scmp.eq.s32.totalorder %s30, 0
      %p254 = por %p252, %p253
      %s256 = sadd.s32 %s255, 1
      %p259 = scmp.eq.s32.totalorder %s24, 1
      %p260 = scmp.ne.s32.totalorder %s255, %s257
      %p261 = scmp.eq.s32.totalorder %s24, 0
      %p262 = por %p260, %p261
      %p263 = scmp.ne.s32.totalorder %s255, %s257
      %p264 = scmp.eq.s32.totalorder %s29, 1
      %p265 = por %p263, %p264
      %p266 = scmp.ne.s32.totalorder %s257, %s258
      %p267 = scmp.eq.s32.totalorder %s29, 0
      %p268 = por %p266, %p267
      %p269 = scmp.ne.s32.totalorder %s257, %s258
      %p270 = scmp.eq.s32.totalorder %s30, 1
      %p271 = por %p269, %p270
      %p273 = scmp.ne.s32.totalorder %s258, %s272
      %p274 = scmp.eq.s32.totalorder %s30, 0
      %p275 = por %p273, %p274
      %s277 = sadd.s32 %s276, 1
      %p280 = scmp.eq.s32.totalorder %s24, 1
      %p281 = scmp.ne.s32.totalorder %s276, %s278
      %p282 = scmp.eq.s32.totalorder %s24, 0
      %p283 = por %p281, %p282
      %p284 = scmp.ne.s32.totalorder %s276, %s278
      %p285 = scmp.eq.s32.totalorder %s29, 1
      %p286 = por %p284, %p285
      %p287 = scmp.ne.s32.totalorder %s278, %s279
      %p288 = scmp.eq.s32.totalorder %s29, 0
      %p289 = por %p287, %p288
      %p290 = scmp.ne.s32.totalorder %s278, %s279
      %p291 = scmp.eq.s32.totalorder %s30, 1
      %p292 = por %p290, %p291
      %p294 = scmp.ne.s32.totalorder %s279, %s293
      %p295 = scmp.eq.s32.totalorder %s30, 0
      %p296 = por %p294, %p295
      %s298 = sadd.s32 %s297, 1
      %p301 = scmp.eq.s32.totalorder %s24, 1
      %p302 = scmp.ne.s32.totalorder %s297, %s299
      %p303 = scmp.eq.s32.totalorder %s24, 0
      %p304 = por %p302, %p303
      %p305 = scmp.ne.s32.totalorder %s297, %s299
      %p306 = scmp.eq.s32.totalorder %s29, 1
      %p307 = por %p305, %p306
      %p308 = scmp.ne.s32.totalorder %s299, %s300
      %p309 = scmp.eq.s32.totalorder %s29, 0
      %p310 = por %p308, %p309
      %p311 = scmp.ne.s32.totalorder %s299, %s300
      %p312 = scmp.eq.s32.totalorder %s30, 1
      %p313 = por %p311, %p312
      %p315 = scmp.ne.s32.totalorder %s300, %s314
      %p316 = scmp.eq.s32.totalorder %s30, 0
      %p317 = por %p315, %p316
      %s319 = sadd.s32 %s318, 1
      %p322 = scmp.eq.s32.totalorder %s24, 1
      %p323 = scmp.ne.s32.totalorder %s318, %s320
      %p324 = scmp.eq.s32.totalorder %s24, 0
      %p325 = por %p323, %p324
      %p326 = scmp.ne.s32.totalorder %s318, %s320
      %p327 = scmp.eq.s32.totalorder %s29, 1
      %p328 = por %p326, %p327
      %p329 = scmp.ne.s32.totalorder %s320, %s321
      %p330 = scmp.eq.s32.totalorder %s29, 0
      %p331 = por %p329, %p330
      %p332 = scmp.ne.s32.totalorder %s320, %s321
      %p333 = scmp.eq.s32.totalorder %s30, 1
      %p334 = por %p332, %p333
      %p336 = scmp.ne.s32.totalorder %s321, %s335
      %p337 = scmp.eq.s32.totalorder %s30, 0
      %p338 = por %p336, %p337
      %s339 = ssub.s32 %s31, %s43
      %s340 = ssub.s32 %s32, %s39
      %s341 = sor.u32 %s339, %s340
      %p342 = scmp.eq.s32.totalorder %s341, 0
      %s344 = sadd.s32 %s343, 1
      %s345 = scalar_select %p342, %s343, %s344
      %p348 = pneg %p342
      %p349 = scmp.eq.s32.totalorder %s24, 1
      %p350 = por %p348, %p349
      %p351 = scmp.ne.s32.totalorder %s343, %s346
      %p352 = scmp.eq.s32.totalorder %s24, 0
      %p353 = por %p351, %p352
      %p354 = scmp.ne.s32.totalorder %s343, %s346
      %p355 = scmp.eq.s32.totalorder %s29, 1
      %p356 = por %p354, %p355
      %p357 = scmp.ne.s32.totalorder %s346, %s347
      %p358 = scmp.eq.s32.totalorder %s29, 0
      %p359 = por %p357, %p358
      %p360 = scmp.ne.s32.totalorder %s346, %s347
      %p361 = scmp.eq.s32.totalorder %s30, 1
      %p362 = por %p360, %p361
      %p364 = scmp.ne.s32.totalorder %s347, %s363
      %p365 = scmp.eq.s32.totalorder %s30, 0
      %p366 = por %p364, %p365
      %p367 = scmp.le.s32.totalorder 1, %s24
      %p368 = scmp.lt.s32.totalorder %s24, 3
      %p369 = pnand %p367, %p368
      %p370 = pneg %p369
      // Predicated region
      $region9: #{gegnn_layer_pallas.3} parent=5 // pred_check
        _
      $region10: #{gegnn_layer_pallas.3} parent=5 // pred_check_branch
        %372 = sbr.rel (%p369) target = $region12
      $region11: #{gegnn_layer_pallas.3} parent=5 // pred_region
        %s373 = ssub.s32 %s24, 1
        // Predicated region
        $region13: #{gegnn_layer_pallas.3} parent=11 // pred_check
          %p374 = pneg %p247
        $region14: #{gegnn_layer_pallas.3} parent=11 // pred_check_branch
          %376 = sbr.rel (%p374) target = $region16
        $region15: #{gegnn_layer_pallas.3} parent=11 // pred_region
          _
        $region16: #{gegnn_layer_pallas.3} parent=11 // pred_fallthru
          _
        // Predicated region
        $region17: #{gegnn_layer_pallas.3} parent=11 // pred_check
          %p377 = pneg %p268
        $region18: #{gegnn_layer_pallas.3} parent=11 // pred_check_branch
          %379 = sbr.rel (%p377) target = $region20
        $region19: #{gegnn_layer_pallas.3} parent=11 // pred_region
          _
        $region20: #{gegnn_layer_pallas.3} parent=11 // pred_fallthru
          _
        // Predicated region
        $region21: #{gegnn_layer_pallas.3} parent=11 // pred_check
          %p380 = pneg %p289
        $region22: #{gegnn_layer_pallas.3} parent=11 // pred_check_branch
          %382 = sbr.rel (%p380) target = $region24
        $region23: #{gegnn_layer_pallas.3} parent=11 // pred_region
          _
        $region24: #{gegnn_layer_pallas.3} parent=11 // pred_fallthru
          _
        // Predicated region
        $region25: #{gegnn_layer_pallas.3} parent=11 // pred_check
          %p383 = pneg %p310
        $region26: #{gegnn_layer_pallas.3} parent=11 // pred_check_branch
          %385 = sbr.rel (%p383) target = $region28
        $region27: #{gegnn_layer_pallas.3} parent=11 // pred_region
          _
        $region28: #{gegnn_layer_pallas.3} parent=11 // pred_fallthru
          _
        // Predicated region
        $region29: #{gegnn_layer_pallas.3} parent=11 // pred_check
          %p386 = pneg %p331
        $region30: #{gegnn_layer_pallas.3} parent=11 // pred_check_branch
          %388 = sbr.rel (%p386) target = $region32
        $region31: #{gegnn_layer_pallas.3} parent=11 // pred_region
          _
        $region32: #{gegnn_layer_pallas.3} parent=11 // pred_fallthru
          _
      $region12: #{gegnn_layer_pallas.3} parent=5 // pred_fallthru
        _
      %p389 = scmp.lt.s32.totalorder %s24, 2
      // Predicated region
      $region33: #{gegnn_layer_pallas.3} parent=5 // pred_check
        %p390 = pneg %p389
      $region34: #{gegnn_layer_pallas.3} parent=5 // pred_check_branch
        %392 = sbr.rel (%p390) target = $region36
      $region35: #{gegnn_layer_pallas.3} parent=5 // pred_region
        // Predicated region
        $region37: #{gegnn_layer_pallas.3} parent=35 // pred_check
          %p393 = pneg %p56
        $region38: #{gegnn_layer_pallas.3} parent=35 // pred_check_branch
          %395 = sbr.rel (%p393) target = $region40
        $region39: #{gegnn_layer_pallas.3} parent=35 // pred_region
          %p396 = scmp.lt.s32.totalorder %s31, 1
          %s397 = scalar_select %p396, %s31, 1
          %s398 = smul.addr %s397, 8
          %s399 = scalar_lea.vmem %s0, %s398
        $region40: #{gegnn_layer_pallas.3} parent=35 // pred_fallthru
          _
        // Predicated region
        $region41: #{gegnn_layer_pallas.3} parent=35 // pred_check
          %p400 = pneg %p84
        $region42: #{gegnn_layer_pallas.3} parent=35 // pred_check_branch
          %402 = sbr.rel (%p400) target = $region44
        $region43: #{gegnn_layer_pallas.3} parent=35 // pred_region
          %p403 = scmp.lt.s32.totalorder %s31, 1
          %s404 = scalar_select %p403, %s31, 1
          %p405 = scmp.lt.s32.totalorder %s32, 0
          %s406 = scalar_select %p405, %s32, 0
          %s407 = sadd.s32 %s406, %s404
          %s408 = smul.addr %s407, 8
          %s409 = scalar_lea.vmem %s1, %s408
        $region44: #{gegnn_layer_pallas.3} parent=35 // pred_fallthru
          _
        // Predicated region
        $region45: #{gegnn_layer_pallas.3} parent=35 // pred_check
          %p410 = pneg %p112
        $region46: #{gegnn_layer_pallas.3} parent=35 // pred_check_branch
          %412 = sbr.rel (%p410) target = $region48
        $region47: #{gegnn_layer_pallas.3} parent=35 // pred_region
          %s413 = sand.u32 %s102, 1
          %s414 = scalar_lea.sflag [#allocation3], %s413
          %s415 = sand.u32 %s102, 1
          %s416 = smul.addr %s415, 64
          %s417 = scalar_lea.vmem [#allocation2], %s416
          %s418 = smul.u32 8, %s32
          %420 = vsyncadd %s414, 0
          %s421 = smul.addr %s31, 8
          %s422 = sadd.s32 %s418, %s421
          %s423 = smul.addr %s422, 8
          %s424 = scalar_lea.hbm %s2, %s423
          %s425 = sshll.u32 %s424, 4
          %s426 = int_to_ptr.hbm [resolvable:$true] %s425
          %s427 = sshll.u32 %s417, 4
          %s428 = int_to_ptr.vmem [resolvable:$true] %s427
          %433 = dma.hbm_to_vmem [thread:$0]  %s426, 1024, %s428, %s414, 128, 128, 8
        $region48: #{gegnn_layer_pallas.3} parent=35 // pred_fallthru
          _
        // Predicated region
        $region49: #{gegnn_layer_pallas.3} parent=35 // pred_check
          %p434 = pneg %p138
        $region50: #{gegnn_layer_pallas.3} parent=35 // pred_check_branch
          %436 = sbr.rel (%p434) target = $region52
        $region51: #{gegnn_layer_pallas.3} parent=35 // pred_region
          %p437 = scmp.lt.s32.totalorder %s31, 1
          %s438 = scalar_select %p437, %s31, 1
          %s439 = smul.addr %s438, 8
          %s440 = scalar_lea.vmem %s3, %s439
        $region52: #{gegnn_layer_pallas.3} parent=35 // pred_fallthru
          _
        // Predicated region
        $region53: #{gegnn_layer_pallas.3} parent=35 // pred_check
          %p441 = pneg %p164
        $region54: #{gegnn_layer_pallas.3} parent=35 // pred_check_branch
          %443 = sbr.rel (%p441) target = $region56
        $region55: #{gegnn_layer_pallas.3} parent=35 // pred_region
          %p444 = scmp.lt.s32.totalorder %s31, 1
          %s445 = scalar_select %p444, %s31, 1
          %s446 = smul.addr %s445, 8
          %s447 = scalar_lea.vmem %s4, %s446
        $region56: #{gegnn_layer_pallas.3} parent=35 // pred_fallthru
          _
        // Predicated region
        $region57: #{gegnn_layer_pallas.3} parent=35 // pred_check
          %p448 = pneg %p192
        $region58: #{gegnn_layer_pallas.3} parent=35 // pred_check_branch
          %450 = sbr.rel (%p448) target = $region60
        $region59: #{gegnn_layer_pallas.3} parent=35 // pred_region
          %p451 = scmp.lt.s32.totalorder %s31, 1
          %s452 = scalar_select %p451, %s31, 1
          %p453 = scmp.lt.s32.totalorder %s32, 0
          %s454 = scalar_select %p453, %s32, 0
          %s455 = sadd.s32 %s454, %s452
          %s456 = smul.addr %s455, 8
          %s457 = scalar_lea.vmem %s5, %s456
        $region60: #{gegnn_layer_pallas.3} parent=35 // pred_fallthru
          _
        // Predicated region
        $region61: #{gegnn_layer_pallas.3} parent=35 // pred_check
          %p458 = pneg %p220
        $region62: #{gegnn_layer_pallas.3} parent=35 // pred_check_branch
          %460 = sbr.rel (%p458) target = $region64
        $region63: #{gegnn_layer_pallas.3} parent=35 // pred_region
          %p461 = scmp.lt.s32.totalorder %s31, 1
          %s462 = scalar_select %p461, %s31, 1
          %p463 = scmp.lt.s32.totalorder %s32, 0
          %s464 = scalar_select %p463, %s32, 0
          %s465 = sadd.s32 %s464, %s462
          %s466 = smul.addr %s465, 8
          %s467 = scalar_lea.vmem %s6, %s466
        $region64: #{gegnn_layer_pallas.3} parent=35 // pred_fallthru
          _
      $region36: #{gegnn_layer_pallas.3} parent=5 // pred_fallthru
        _
      %p468 = scmp.le.s32.totalorder 1, %s24
      %p469 = scmp.lt.s32.totalorder %s24, 3
      %p470 = pnand %p468, %p469
      %p471 = pneg %p470
      // Predicated region
      $region65: #{gegnn_layer_pallas.3} parent=5 // pred_check
        _
      $region66: #{gegnn_layer_pallas.3} parent=5 // pred_check_branch
        %473 = sbr.rel (%p470) target = $region68
      $region67: #{gegnn_layer_pallas.3} parent=5 // pred_region
        %s474 = ssub.s32 %s24, 1
        %s475 = sand.u32 %s105, 1
        %s476 = scalar_lea.sflag [#allocation3], %s475
        %s477 = sand.u32 %s105, 1
        %s478 = smul.addr %s477, 64
        %s479 = scalar_lea.vmem [#allocation2], %s478
        // Predicated region
        $region69: #{gegnn_layer_pallas.3} parent=67 // pred_check
          %p480 = pneg %p118
        $region70: #{gegnn_layer_pallas.3} parent=67 // pred_check_branch
          %482 = sbr.rel (%p480) target = $region72
        $region71: #{gegnn_layer_pallas.3} parent=67 // pred_region
          %484 = dma.done %s476, 1024
        $region72: #{gegnn_layer_pallas.3} parent=67 // pred_fallthru
          _
        %p485 = scmp.lt.s32.totalorder %s33, 1
        %s486 = scalar_select %p485, %s33, 1
        %s487 = smul.addr %s486, 8
        %s488 = scalar_lea.vmem %s0, %s487
        %p489 = pneg %p62
        %p490 = pneg %p59
        %p491 = scmp.lt.s32.totalorder %s33, 1
        %s492 = scalar_select %p491, %s33, 1
        %p493 = scmp.lt.s32.totalorder %s34, 0
        %s494 = scalar_select %p493, %s34, 0
        %s495 = sadd.s32 %s494, %s492
        %s496 = smul.addr %s495, 8
        %s497 = scalar_lea.vmem %s1, %s496
        %p498 = pneg %p90
        %p499 = pneg %p87
        %s500 = sand.u32 %s105, 1
        %s501 = scalar_lea.sflag [#allocation3], %s500
        %s502 = sand.u32 %s105, 1
        %s503 = smul.addr %s502, 64
        %s504 = scalar_lea.vmem [#allocation2], %s503
        %p505 = pneg %p118
        %p506 = pneg %p115
        %p507 = scmp.lt.s32.totalorder %s33, 1
        %s508 = scalar_select %p507, %s33, 1
        %s509 = smul.addr %s508, 8
        %s510 = scalar_lea.vmem %s3, %s509
        %p511 = pneg %p144
        %p512 = pneg %p141
        %p513 = scmp.lt.s32.totalorder %s33, 1
        %s514 = scalar_select %p513, %s33, 1
        %s515 = smul.addr %s514, 8
        %s516 = scalar_lea.vmem %s4, %s515
        %p517 = pneg %p170
        %p518 = pneg %p167
        %p519 = scmp.lt.s32.totalorder %s33, 1
        %s520 = scalar_select %p519, %s33, 1
        %p521 = scmp.lt.s32.totalorder %s34, 0
        %s522 = scalar_select %p521, %s34, 0
        %s523 = sadd.s32 %s522, %s520
        %s524 = smul.addr %s523, 8
        %s525 = scalar_lea.vmem %s5, %s524
        %p526 = pneg %p198
        %p527 = pneg %p195
        %p528 = scmp.lt.s32.totalorder %s33, 1
        %s529 = scalar_select %p528, %s33, 1
        %p530 = scmp.lt.s32.totalorder %s34, 0
        %s531 = scalar_select %p530, %s34, 0
        %s532 = sadd.s32 %s531, %s529
        %s533 = smul.addr %s532, 8
        %s534 = scalar_lea.vmem %s6, %s533
        %p535 = pneg %p226
        %p536 = pneg %p223
        %p537 = pneg %p247
        %p538 = pneg %p244
        %p539 = pneg %p268
        %p540 = pneg %p265
        %p541 = pneg %p289
        %p542 = pneg %p286
        %p543 = pneg %p310
        %p544 = pneg %p307
        %p545 = pneg %p331
        %p546 = pneg %p328
        %p547 = pneg %p359
        %p548 = pneg %p356
        %s549 = sand.u32 %s346, 1
        %s550 = scalar_lea.sflag [#allocation4], %s549
        %s551 = sand.u32 %s346, 1
        %s552 = smul.addr %s551, 64
        %s553 = scalar_lea.vmem [#allocation5], %s552
        %p554 = scmp.lt.s32.totalorder %s33, 1
        %s555 = scalar_select %p554, %s33, 1
        %s556 = smul.addr %s555, 8
        %s557 = scalar_lea.vmem %s0, %s556
        %p558 = scmp.lt.s32.totalorder %s33, 1
        %s559 = scalar_select %p558, %s33, 1
        %p560 = scmp.lt.s32.totalorder %s34, 0
        %s561 = scalar_select %p560, %s34, 0
        %s562 = sadd.s32 %s561, %s559
        %s563 = smul.addr %s562, 8
        %s564 = scalar_lea.vmem %s1, %s563
        %s565 = smul.u32 8, %s34
        %p566 = scmp.lt.s32.totalorder %s33, 1
        %s567 = scalar_select %p566, %s33, 1
        %s568 = smul.addr %s567, 8
        %s569 = scalar_lea.vmem %s3, %s568
        %p570 = scmp.lt.s32.totalorder %s33, 1
        %s571 = scalar_select %p570, %s33, 1
        %s572 = smul.addr %s571, 8
        %s573 = scalar_lea.vmem %s4, %s572
        %p574 = scmp.lt.s32.totalorder %s33, 1
        %s575 = scalar_select %p574, %s33, 1
        %p576 = scmp.lt.s32.totalorder %s34, 0
        %s577 = scalar_select %p576, %s34, 0
        %s578 = sadd.s32 %s577, %s575
        %s579 = smul.addr %s578, 8
        %s580 = scalar_lea.vmem %s5, %s579
        %p581 = scmp.lt.s32.totalorder %s33, 1
        %s582 = scalar_select %p581, %s33, 1
        %p583 = scmp.lt.s32.totalorder %s34, 0
        %s584 = scalar_select %p583, %s34, 0
        %s585 = sadd.s32 %s584, %s582
        %s586 = smul.addr %s585, 8
        %s587 = scalar_lea.vmem %s6, %s586
        %s588 = smul.u32 8, %s34
        %v589 = vld [vmem:[%s557] sm:$0xff]
        %v590 = vld [vmem:[%s564] sm:$0xff]
        %v591 = vld [vmem:[%s569] sm:$0xff]
        %v592 = vld [vmem:[%s573] sm:$0xff]
        %v593 = vld [vmem:[%s580] sm:$0xff]
        %v594 = vld [vmem:[%s587] sm:$0xff]
        %v596 = vrot.slane %v593, 1
        %v597 = vrot.slane %v593, 2
        %v598 = vrot.slane %v593, 3
        %v599 = vrot.slane %v593, 4
        %v600 = vrot.slane %v593, 5
        %v601 = vrot.slane %v593, 6
        %v602 = vrot.slane %v593, 7
        %v603 = vperm.slane %v593, 0
        %v604 = vperm.slane %v596, 0
        %v605 = vperm.slane %v597, 0
        %v606 = vperm.slane %v598, 0
        %v607 = vperm.slane %v599, 0
        %v608 = vperm.slane %v600, 0
        %v609 = vperm.slane %v601, 0
        %v610 = vperm.slane %v602, 0
        %v619 = vsub.f32 %v591, %v603
        %v620 = vsub.f32 %v591, %v604
        %v621 = vsub.f32 %v591, %v605
        %v622 = vsub.f32 %v591, %v606
        %v623 = vsub.f32 %v591, %v607
        %v624 = vsub.f32 %v591, %v608
        %v625 = vsub.f32 %v591, %v609
        %v626 = vsub.f32 %v591, %v610
        %v628 = vrot.slane %v594, 1
        %v629 = vrot.slane %v594, 2
        %v630 = vrot.slane %v594, 3
        %v631 = vrot.slane %v594, 4
        %v632 = vrot.slane %v594, 5
        %v633 = vrot.slane %v594, 6
        %v634 = vrot.slane %v594, 7
        %v635 = vperm.slane %v594, 0
        %v636 = vperm.slane %v628, 0
        %v637 = vperm.slane %v629, 0
        %v638 = vperm.slane %v630, 0
        %v639 = vperm.slane %v631, 0
        %v640 = vperm.slane %v632, 0
        %v641 = vperm.slane %v633, 0
        %v642 = vperm.slane %v634, 0
        %v651 = vsub.f32 %v592, %v635
        %v652 = vsub.f32 %v592, %v636
        %v653 = vsub.f32 %v592, %v637
        %v654 = vsub.f32 %v592, %v638
        %v655 = vsub.f32 %v592, %v639
        %v656 = vsub.f32 %v592, %v640
        %v657 = vsub.f32 %v592, %v641
        %v658 = vsub.f32 %v592, %v642
        %v659 = vmul.f32 %v619, %v619
        %v660 = vmul.f32 %v620, %v620
        %v661 = vmul.f32 %v621, %v621
        %v662 = vmul.f32 %v622, %v622
        %v663 = vmul.f32 %v623, %v623
        %v664 = vmul.f32 %v624, %v624
        %v665 = vmul.f32 %v625, %v625
        %v666 = vmul.f32 %v626, %v626
        %v667 = vadd.f32 %v659, 2e-08
        %v668 = vadd.f32 %v660, 2e-08
        %v669 = vadd.f32 %v661, 2e-08
        %v670 = vadd.f32 %v662, 2e-08
        %v671 = vadd.f32 %v663, 2e-08
        %v672 = vadd.f32 %v664, 2e-08
        %v673 = vadd.f32 %v665, 2e-08
        %v674 = vadd.f32 %v666, 2e-08
        %v675 = vmul.f32 %v651, %v651
        %v676 = vmul.f32 %v652, %v652
        %v677 = vmul.f32 %v653, %v653
        %v678 = vmul.f32 %v654, %v654
        %v679 = vmul.f32 %v655, %v655
        %v680 = vmul.f32 %v656, %v656
        %v681 = vmul.f32 %v657, %v657
        %v682 = vmul.f32 %v658, %v658
        %v683 = vadd.f32 %v667, %v675
        %v684 = vadd.f32 %v668, %v676
        %v685 = vadd.f32 %v669, %v677
        %v686 = vadd.f32 %v670, %v678
        %v687 = vadd.f32 %v671, %v679
        %v688 = vadd.f32 %v672, %v680
        %v689 = vadd.f32 %v673, %v681
        %v690 = vadd.f32 %v674, %v682
        %v691 = vrsqrt.pop %v683
        %v692 = vmul.f32 %v691, %v683
        %v693 = vmul.f32 %v692, %v691
        %v694 = vmul.f32 0.5, %v693
        %v695 = vsub.f32 1.5, %v694
        %v696 = vmul.f32 %v691, %v695
        %v697 = vmul.f32 %v683, %v696
        %vm698 = vcmp.eq.f32.partialorder %v683, inf
        %v699 = vsel %vm698, %v683, %v697
        %vm700 = vcmp.eq.f32.partialorder %v683, 0.0
        %v701 = vand.u32 %v683, 2147483648
        %v702 = vsel %vm700, %v701, %v699
        %v703 = vrsqrt.pop %v684
        %v704 = vmul.f32 %v703, %v684
        %v705 = vmul.f32 %v704, %v703
        %v706 = vmul.f32 0.5, %v705
        %v707 = vsub.f32 1.5, %v706
        %v708 = vmul.f32 %v703, %v707
        %v709 = vmul.f32 %v684, %v708
        %vm710 = vcmp.eq.f32.partialorder %v684, inf
        %v711 = vsel %vm710, %v684, %v709
        %vm712 = vcmp.eq.f32.partialorder %v684, 0.0
        %v713 = vand.u32 %v684, 2147483648
        %v714 = vsel %vm712, %v713, %v711
        %v715 = vrsqrt.pop %v685
        %v716 = vmul.f32 %v715, %v685
        %v717 = vmul.f32 %v716, %v715
        %v718 = vmul.f32 0.5, %v717
        %v719 = vsub.f32 1.5, %v718
        %v720 = vmul.f32 %v715, %v719
        %v721 = vmul.f32 %v685, %v720
        %vm722 = vcmp.eq.f32.partialorder %v685, inf
        %v723 = vsel %vm722, %v685, %v721
        %vm724 = vcmp.eq.f32.partialorder %v685, 0.0
        %v725 = vand.u32 %v685, 2147483648
        %v726 = vsel %vm724, %v725, %v723
        %v727 = vrsqrt.pop %v686
        %v728 = vmul.f32 %v727, %v686
        %v729 = vmul.f32 %v728, %v727
        %v730 = vmul.f32 0.5, %v729
        %v731 = vsub.f32 1.5, %v730
        %v732 = vmul.f32 %v727, %v731
        %v733 = vmul.f32 %v686, %v732
        %vm734 = vcmp.eq.f32.partialorder %v686, inf
        %v735 = vsel %vm734, %v686, %v733
        %vm736 = vcmp.eq.f32.partialorder %v686, 0.0
        %v737 = vand.u32 %v686, 2147483648
        %v738 = vsel %vm736, %v737, %v735
        %v739 = vrsqrt.pop %v687
        %v740 = vmul.f32 %v739, %v687
        %v741 = vmul.f32 %v740, %v739
        %v742 = vmul.f32 0.5, %v741
        %v743 = vsub.f32 1.5, %v742
        %v744 = vmul.f32 %v739, %v743
        %v745 = vmul.f32 %v687, %v744
        %vm746 = vcmp.eq.f32.partialorder %v687, inf
        %v747 = vsel %vm746, %v687, %v745
        %vm748 = vcmp.eq.f32.partialorder %v687, 0.0
        %v749 = vand.u32 %v687, 2147483648
        %v750 = vsel %vm748, %v749, %v747
        %v751 = vrsqrt.pop %v688
        %v752 = vmul.f32 %v751, %v688
        %v753 = vmul.f32 %v752, %v751
        %v754 = vmul.f32 0.5, %v753
        %v755 = vsub.f32 1.5, %v754
        %v756 = vmul.f32 %v751, %v755
        %v757 = vmul.f32 %v688, %v756
        %vm758 = vcmp.eq.f32.partialorder %v688, inf
        %v759 = vsel %vm758, %v688, %v757
        %vm760 = vcmp.eq.f32.partialorder %v688, 0.0
        %v761 = vand.u32 %v688, 2147483648
        %v762 = vsel %vm760, %v761, %v759
        %v763 = vrsqrt.pop %v689
        %v764 = vmul.f32 %v763, %v689
        %v765 = vmul.f32 %v764, %v763
        %v766 = vmul.f32 0.5, %v765
        %v767 = vsub.f32 1.5, %v766
        %v768 = vmul.f32 %v763, %v767
        %v769 = vmul.f32 %v689, %v768
        %vm770 = vcmp.eq.f32.partialorder %v689, inf
        %v771 = vsel %vm770, %v689, %v769
        %vm772 = vcmp.eq.f32.partialorder %v689, 0.0
        %v773 = vand.u32 %v689, 2147483648
        %v774 = vsel %vm772, %v773, %v771
        %v775 = vrsqrt.pop %v690
        %v776 = vmul.f32 %v775, %v690
        %v777 = vmul.f32 %v776, %v775
        %v778 = vmul.f32 0.5, %v777
        %v779 = vsub.f32 1.5, %v778
        %v780 = vmul.f32 %v775, %v779
        %v781 = vmul.f32 %v690, %v780
        %vm782 = vcmp.eq.f32.partialorder %v690, inf
        %v783 = vsel %vm782, %v690, %v781
        %vm784 = vcmp.eq.f32.partialorder %v690, 0.0
        %v785 = vand.u32 %v690, 2147483648
        %v786 = vsel %vm784, %v785, %v783
        %v787 = vld [vmem:[%s479] sm:$0xff]
        %v788 = vld [vmem:[%s479 + $0x8] sm:$0xff]
        %v789 = vld [vmem:[%s479 + $0x10] sm:$0xff]
        %v790 = vld [vmem:[%s479 + $0x18] sm:$0xff]
        %v791 = vld [vmem:[%s479 + $0x20] sm:$0xff]
        %v792 = vld [vmem:[%s479 + $0x28] sm:$0xff]
        %v793 = vld [vmem:[%s479 + $0x30] sm:$0xff]
        %v794 = vld [vmem:[%s479 + $0x38] sm:$0xff]
        %v795 = vld [vmem:[%s7] sm:$0xff]
        %v796 = vld [vmem:[%s7 + $0x8] sm:$0xff]
        %v797 = vld [vmem:[%s7 + $0x10] sm:$0xff]
        %v798 = vld [vmem:[%s7 + $0x18] sm:$0xff]
        %v799 = vld [vmem:[%s9] sm:$0x3]
        %vm800 = vcmask 15360
        %v802 = vsel %vm800, %v702, 0
        %v805 = vsel %vm800, %v714, 0
        %v808 = vsel %vm800, %v726, 0
        %v811 = vsel %vm800, %v738, 0
        %v814 = vsel %vm800, %v750, 0
        %v817 = vsel %vm800, %v762, 0
        %v820 = vsel %vm800, %v774, 0
        %v823 = vsel %vm800, %v786, 0
        %vm825 = vcmask 1041408
        %v827 = vsel %vm825, %v799, 0
        %829 = vmatpush.msra.mxu0 0.0
        %830 = vmatpush.msra.mxu0 0.0
        %831 = vmatpush.msra.mxu0 0.0
        %832 = vmatpush.msra.mxu0 0.0
        %833 = vmatpush.msra.mxu0 0.0
        %834 = vmatpush.msra.mxu0 0.0
        %835 = vmatpush.msra.mxu0 0.0
        %836 = vmatpush.msra.mxu0 0.0
        %837 = vmatpush.msra.mxu0 0.0
        %838 = vmatpush.msra.mxu0 0.0
        %839 = vmatpush.msra.mxu0 0.0
        %840 = vmatpush.msra.mxu0 0.0
        %841 = vmatpush.msra.mxu0 0.0
        %842 = vmatpush.msra.mxu0 0.0
        %843 = vmatpush.msra.mxu0 0.0
        %844 = vmatpush.msra.mxu0 %v827
        %845 = vmatmul.f32.gmra.mxu0 %v802
        %v846 = vpop.f32.mrf.mxu0
        %v847 = vadd.f32 0.0, %v846
        %848 = vmatmul.f32.gmra.mxu0 %v805
        %v849 = vpop.f32.mrf.mxu0
        %v850 = vadd.f32 0.0, %v849
        %851 = vmatmul.f32.gmra.mxu0 %v808
        %v852 = vpop.f32.mrf.mxu0
        %v853 = vadd.f32 0.0, %v852
        %854 = vmatmul.f32.gmra.mxu0 %v811
        %v855 = vpop.f32.mrf.mxu0
        %v856 = vadd.f32 0.0, %v855
        %857 = vmatmul.f32.gmra.mxu0 %v814
        %v858 = vpop.f32.mrf.mxu0
        %v859 = vadd.f32 0.0, %v858
        %860 = vmatmul.f32.gmra.mxu0 %v817
        %v861 = vpop.f32.mrf.mxu0
        %v862 = vadd.f32 0.0, %v861
        %863 = vmatmul.f32.gmra.mxu0 %v820
        %v864 = vpop.f32.mrf.mxu0
        %v865 = vadd.f32 0.0, %v864
        %866 = vmatmul.f32.gmra.mxu0 %v823
        %v867 = vpop.f32.mrf.mxu0
        %v868 = vadd.f32 0.0, %v867
        %869 = vdwg.mxu0
        %vm870 = vcmask 261120
        %v872 = vsel %vm870, %v787, 0
        %v875 = vsel %vm870, %v788, 0
        %v878 = vsel %vm870, %v789, 0
        %v881 = vsel %vm870, %v790, 0
        %v884 = vsel %vm870, %v791, 0
        %v887 = vsel %vm870, %v792, 0
        %v890 = vsel %vm870, %v793, 0
        %v893 = vsel %vm870, %v794, 0
        %895 = vmatpush.msra.mxu0 0.0
        %896 = vmatpush.msra.mxu0 0.0
        %897 = vmatpush.msra.mxu0 0.0
        %898 = vmatpush.msra.mxu0 0.0
        %899 = vmatpush.msra.mxu0 0.0
        %900 = vmatpush.msra.mxu0 0.0
        %901 = vmatpush.msra.mxu0 0.0
        %902 = vmatpush.msra.mxu0 0.0
        %903 = vmatpush.msra.mxu0 0.0
        %904 = vmatpush.msra.mxu0 0.0
        %905 = vmatpush.msra.mxu0 0.0
        %906 = vmatpush.msra.mxu0 0.0
        %907 = vmatpush.msra.mxu0 %v798
        %908 = vmatpush.msra.mxu0 %v797
        %909 = vmatpush.msra.mxu0 %v796
        %910 = vmatpush.msra.mxu0 %v795
        %911 = vmatmul.f32.gmra.mxu0 %v872
        %v912 = vpop.f32.mrf.mxu0
        %v913 = vadd.f32 %v847, %v912
        %914 = vmatmul.f32.gmra.mxu0 %v875
        %v915 = vpop.f32.mrf.mxu0
        %v916 = vadd.f32 %v850, %v915
        %917 = vmatmul.f32.gmra.mxu0 %v878
        %v918 = vpop.f32.mrf.mxu0
        %v919 = vadd.f32 %v853, %v918
        %920 = vmatmul.f32.gmra.mxu0 %v881
        %v921 = vpop.f32.mrf.mxu0
        %v922 = vadd.f32 %v856, %v921
        %923 = vmatmul.f32.gmra.mxu0 %v884
        %v924 = vpop.f32.mrf.mxu0
        %v925 = vadd.f32 %v859, %v924
        %926 = vmatmul.f32.gmra.mxu0 %v887
        %v927 = vpop.f32.mrf.mxu0
        %v928 = vadd.f32 %v862, %v927
        %929 = vmatmul.f32.gmra.mxu0 %v890
        %v930 = vpop.f32.mrf.mxu0
        %v931 = vadd.f32 %v865, %v930
        %932 = vmatmul.f32.gmra.mxu0 %v893
        %v933 = vpop.f32.mrf.mxu0
        %v934 = vadd.f32 %v868, %v933
        %935 = vdwg.mxu0
        %v936 = vld [vmem:[%s8] sm:$0x1]
        %v938 = vperm.slane %v936, 0
        %v940 = vadd.f32 %v913, %v938
        %v941 = vadd.f32 %v916, %v938
        %v942 = vadd.f32 %v919, %v938
        %v943 = vadd.f32 %v922, %v938
        %v944 = vadd.f32 %v925, %v938
        %v945 = vadd.f32 %v928, %v938
        %v946 = vadd.f32 %v931, %v938
        %v947 = vadd.f32 %v934, %v938
        %v949 = vrot.slane %v590, 1
        %v950 = vrot.slane %v590, 2
        %v951 = vrot.slane %v590, 3
        %v952 = vrot.slane %v590, 4
        %v953 = vrot.slane %v590, 5
        %v954 = vrot.slane %v590, 6
        %v955 = vrot.slane %v590, 7
        %v956 = vperm.slane %v590, 0
        %v957 = vperm.slane %v949, 0
        %v958 = vperm.slane %v950, 0
        %v959 = vperm.slane %v951, 0
        %v960 = vperm.slane %v952, 0
        %v961 = vperm.slane %v953, 0
        %v962 = vperm.slane %v954, 0
        %v963 = vperm.slane %v955, 0
        %964 = vrot.lane.b32.xlu0 %v956, 96
        %v965 = vpop.permute.xlu0 %964
        %966 = vrot.lane.b32.xlu0 %v957, 96
        %v967 = vpop.permute.xlu0 %966
        %968 = vrot.lane.b32.xlu0 %v958, 96
        %v969 = vpop.permute.xlu0 %968
        %970 = vrot.lane.b32.xlu0 %v959, 96
        %v971 = vpop.permute.xlu0 %970
        %972 = vrot.lane.b32.xlu0 %v960, 96
        %v973 = vpop.permute.xlu0 %972
        %974 = vrot.lane.b32.xlu0 %v961, 96
        %v975 = vpop.permute.xlu0 %974
        %976 = vrot.lane.b32.xlu0 %v962, 96
        %v977 = vpop.permute.xlu0 %976
        %978 = vrot.lane.b32.xlu0 %v963, 96
        %v979 = vpop.permute.xlu0 %978
        %v988 = vadd.f32 %v589, %v965
        %v989 = vadd.f32 %v589, %v967
        %v990 = vadd.f32 %v589, %v969
        %v991 = vadd.f32 %v589, %v971
        %v992 = vadd.f32 %v589, %v973
        %v993 = vadd.f32 %v589, %v975
        %v994 = vadd.f32 %v589, %v977
        %v995 = vadd.f32 %v589, %v979
        %v996 = vadd.f32 %v988, %v940
        %v997 = vadd.f32 %v989, %v941
        %v998 = vadd.f32 %v990, %v942
        %v999 = vadd.f32 %v991, %v943
        %v1000 = vadd.f32 %v992, %v944
        %v1001 = vadd.f32 %v993, %v945
        %v1002 = vadd.f32 %v994, %v946
        %v1003 = vadd.f32 %v995, %v947
        %v1004 = vld [vmem:[%s10] sm:$0x1]
        %v1006 = vperm.slane %v1004, 0
        %v1008 = vmul.f32 %v996, %v1006
        %v1009 = vmul.f32 %v997, %v1006
        %v1010 = vmul.f32 %v998, %v1006
        %v1011 = vmul.f32 %v999, %v1006
        %v1012 = vmul.f32 %v1000, %v1006
        %v1013 = vmul.f32 %v1001, %v1006
        %v1014 = vmul.f32 %v1002, %v1006
        %v1015 = vmul.f32 %v1003, %v1006
        %v1016 = vld [vmem:[%s11] sm:$0x1]
        %v1018 = vperm.slane %v1016, 0
        %v1020 = vadd.f32 %v1008, %v1018
        %v1021 = vadd.f32 %v1009, %v1018
        %v1022 = vadd.f32 %v1010, %v1018
        %v1023 = vadd.f32 %v1011, %v1018
        %v1024 = vadd.f32 %v1012, %v1018
        %v1025 = vadd.f32 %v1013, %v1018
        %v1026 = vadd.f32 %v1014, %v1018
        %v1027 = vadd.f32 %v1015, %v1018
        %v1028 = vmax.f32 %v1020, 0.0
        %v1029 = vmax.f32 %v1021, 0.0
        %v1030 = vmax.f32 %v1022, 0.0
        %v1031 = vmax.f32 %v1023, 0.0
        %v1032 = vmax.f32 %v1024, 0.0
        %v1033 = vmax.f32 %v1025, 0.0
        %v1034 = vmax.f32 %v1026, 0.0
        %v1035 = vmax.f32 %v1027, 0.0
        %v1036 = vadd.f32 %v787, %v1028
        %v1037 = vadd.f32 %v788, %v1029
        %v1038 = vadd.f32 %v789, %v1030
        %v1039 = vadd.f32 %v790, %v1031
        %v1040 = vadd.f32 %v791, %v1032
        %v1041 = vadd.f32 %v792, %v1033
        %v1042 = vadd.f32 %v793, %v1034
        %v1043 = vadd.f32 %v794, %v1035
        %1044 = vst.msk [vmem:[%s553] sm:$0xff] %vm870, %v1036
        %1045 = vst.msk [vmem:[%s553 + $0x8] sm:$0xff] %vm870, %v1037
        %1046 = vst.msk [vmem:[%s553 + $0x10] sm:$0xff] %vm870, %v1038
        %1047 = vst.msk [vmem:[%s553 + $0x18] sm:$0xff] %vm870, %v1039
        %1048 = vst.msk [vmem:[%s553 + $0x20] sm:$0xff] %vm870, %v1040
        %1049 = vst.msk [vmem:[%s553 + $0x28] sm:$0xff] %vm870, %v1041
        %1050 = vst.msk [vmem:[%s553 + $0x30] sm:$0xff] %vm870, %v1042
        %1051 = vst.msk [vmem:[%s553 + $0x38] sm:$0xff] %vm870, %v1043
        %s1052 = sand.u32 %s346, 1
        %s1053 = scalar_lea.sflag [#allocation4], %s1052
        %s1054 = sand.u32 %s346, 1
        %s1055 = smul.addr %s1054, 64
        %s1056 = scalar_lea.vmem [#allocation5], %s1055
        // Predicated region
        $region73: #{gegnn_layer_pallas.3} parent=67 // pred_check
          %p1057 = pneg %p356
        $region74: #{gegnn_layer_pallas.3} parent=67 // pred_check_branch
          %1059 = sbr.rel (%p1057) target = $region76
        $region75: #{gegnn_layer_pallas.3} parent=67 // pred_region
          %s1060 = smul.u32 8, %s34
          %1062 = vsyncadd %s1053, 0
          %s1063 = smul.addr %s33, 8
          %s1064 = sadd.s32 %s1060, %s1063
          %s1065 = smul.addr %s1064, 8
          %s1066 = scalar_lea.hbm %s12, %s1065
          %s1067 = sshll.u32 %s1056, 4
          %s1068 = int_to_ptr.vmem [resolvable:$true] %s1067
          %s1069 = sshll.u32 %s1066, 4
          %s1070 = int_to_ptr.hbm [resolvable:$true] %s1069
          %1075 = dma.vmem_to_hbm [thread:$0]  %s1068, 1024, %s1070, %s1053, 128, 128, 8
        $region76: #{gegnn_layer_pallas.3} parent=67 // pred_fallthru
          _
      $region68: #{gegnn_layer_pallas.3} parent=5 // pred_fallthru
        _
      %p1076 = scmp.le.s32.totalorder 2, %s24
      // Predicated region
      $region77: #{gegnn_layer_pallas.3} parent=5 // pred_check
        %p1077 = pneg %p1076
      $region78: #{gegnn_layer_pallas.3} parent=5 // pred_check_branch
        %1079 = sbr.rel (%p1077) target = $region80
      $region79: #{gegnn_layer_pallas.3} parent=5 // pred_region
        %s1080 = ssub.s32 %s24, 2
        // Predicated region
        $region81: #{gegnn_layer_pallas.3} parent=79 // pred_check
          %p1081 = pneg %p362
        $region82: #{gegnn_layer_pallas.3} parent=79 // pred_check_branch
          %1083 = sbr.rel (%p1081) target = $region84
        $region83: #{gegnn_layer_pallas.3} parent=79 // pred_region
          %s1084 = sand.u32 %s347, 1
          %s1085 = scalar_lea.sflag [#allocation4], %s1084
          %s1086 = sand.u32 %s347, 1
          %s1087 = smul.addr %s1086, 64
          %s1088 = scalar_lea.vmem [#allocation5], %s1087
          %1090 = dma.done %s1085, 1024
        $region84: #{gegnn_layer_pallas.3} parent=79 // pred_fallthru
          _
      $region80: #{gegnn_layer_pallas.3} parent=5 // pred_fallthru
        _
    $region6: #{gegnn_layer_pallas.3} parent=1 // loop_footer
      %s28 = sadd.s32 1, %s24
    $region7: #{gegnn_layer_pallas.3} parent=1 // loop_footer_branch
      %23 = sbr.rel target = $region3
    $region8: #{gegnn_layer_pallas.3} parent=1 // loop_exit
      _
    %1091 = vsyncpa [#allocation3], 1
    %s1092 = scalar_lea.sflag [#allocation3], 1
    %1093 = vsyncpa %s1092, 1
    %1094 = vsyncpa [#allocation4], 1
    %s1095 = scalar_lea.sflag [#allocation4], 1
    %1096 = vsyncpa %s1095, 1

// kernel: gegnn_layer_pallas.2
$region0: #{gegnn_layer_pallas.2}
  #allocation0 [shape = 'u32[]', space=smem, size = 0x4, offset = 0x4, fixed_abs, tag = 'smem constant byte address 0x4 - core index']
  #allocation1 [shape = 'u32[72,128]{1,0:T(1,128)}', space=vmem, size = 0x9000, scoped, tag = 'internal scratch']
  %s0 = inlined_call_operand.vmem [shape: f32[2,8,64], index: 0, kind: input, shape index: {}]
  %s1 = inlined_call_operand.vmem [shape: f32[2,8,64], index: 1, kind: input, shape index: {}]
  %s2 = inlined_call_operand.hbm [shape: f32[2,8,8,32], index: 2, kind: input, shape index: {}]
  %s3 = inlined_call_operand.vmem [shape: f32[2,8,2], index: 3, kind: input, shape index: {}, may-alias: {3,5}]
  %s4 = inlined_call_operand.vmem [shape: f32[2,8,2], index: 4, kind: input, shape index: {}, may-alias: {4,6}]
  %s5 = inlined_call_operand.vmem [shape: f32[2,8,2], index: 5, kind: input, shape index: {}, may-alias: {3,5}]
  %s6 = inlined_call_operand.vmem [shape: f32[2,8,2], index: 6, kind: input, shape index: {}, may-alias: {4,6}]
  %s7 = inlined_call_operand.vmem [shape: f32[2,8,8], index: 7, kind: input, shape index: {}]
  %s8 = inlined_call_operand.vmem [shape: f32[32,32], index: 8, kind: input, shape index: {}]
  %s9 = inlined_call_operand.vmem [shape: f32[1,32], index: 9, kind: input, shape index: {}]
  %s10 = inlined_call_operand.vmem [shape: f32[2,32], index: 10, kind: input, shape index: {}]
  %s11 = inlined_call_operand.vmem [shape: f32[32,2], index: 11, kind: input, shape index: {}]
  %s12 = inlined_call_operand.vmem [shape: f32[1,2], index: 12, kind: input, shape index: {}]
  %s13 = inlined_call_operand.vmem [shape: f32[2,8,32], index: 13, kind: output, shape index: {0}]
  %s14 = inlined_call_operand.vmem [shape: f32[2,2,8,2], index: 14, kind: output, shape index: {1}]
  %s15 = inlined_call_operand.vmem [shape: f32[2,1,2,32], index: 15, kind: output, shape index: {2}]
  %16 = xla_tuple %s13, %s14, %s15
  %s17 = sld [smem:[#allocation0]]
  $region105: #{gegnn_layer_pallas.2} parent=0
    _
  %s19 = ssub.s32 1, %s17
  %s20 = scalar_select 0, %s19, %s17
  $region1: #{gegnn_layer_pallas.2} parent=0
    #allocation2 [shape = 'u8[65536]{0}', space=vmem, size = 0x10000, scoped, tag = 'input window, operand 2']
    #allocation3 [shape = 's32[2]{0}', space=sflag, size = 0x8, scoped, tag = 'scoped memory for gegnn_layer_pallas.2']
    %21 = vsyncpa [#allocation3], 0
    %s22 = scalar_lea.sflag [#allocation3], 1
    %23 = vsyncpa %s22, 0
    loop: start=0, step=1, limit=4
    $region2: #{gegnn_layer_pallas.2} parent=1 // loop_pre_header
      _
    $region3: #{gegnn_layer_pallas.2} parent=1 // loop_header
      %s25 = sphi 0, %s29
      %p26 = scmp.ge.s32.totalorder %s25, 4
      %s32 = sphi 0, %s44
      %s33 = sphi 0, %s40
      %s34 = sphi 0, %s32
      %s35 = sphi 0, %s33
      %s36 = sphi 0, %s34
      %s37 = sphi 0, %s35
      %s47 = sphi 0, %s49
      %s50 = sphi 0, %s47
      %s51 = sphi 0, %s50
      %s67 = sphi 0, %s51
      %s75 = sphi 0, %s77
      %s78 = sphi 0, %s75
      %s79 = sphi 0, %s78
      %s95 = sphi 0, %s79
      %s103 = sphi 0, %s105
      %s106 = sphi 0, %s103
      %s107 = sphi 0, %s106
      %s123 = sphi 0, %s107
      %s129 = sphi 0, %s131
      %s132 = sphi 0, %s129
      %s133 = sphi 0, %s132
      %s149 = sphi 0, %s133
      %s155 = sphi 0, %s157
      %s158 = sphi 0, %s155
      %s159 = sphi 0, %s158
      %s175 = sphi 0, %s159
      %s183 = sphi 0, %s185
      %s186 = sphi 0, %s183
      %s187 = sphi 0, %s186
      %s203 = sphi 0, %s187
      %s211 = sphi 0, %s213
      %s214 = sphi 0, %s211
      %s215 = sphi 0, %s214
      %s231 = sphi 0, %s215
      %s239 = sphi 0, %s241
      %s242 = sphi 0, %s239
      %s243 = sphi 0, %s242
      %s259 = sphi 0, %s243
      %s263 = sphi 0, %s263
      %s265 = sphi 0, %s263
      %s266 = sphi 0, %s265
      %s280 = sphi 0, %s266
      %s284 = sphi 0, %s284
      %s286 = sphi 0, %s284
      %s287 = sphi 0, %s286
      %s301 = sphi 0, %s287
      %s305 = sphi 0, %s305
      %s307 = sphi 0, %s305
      %s308 = sphi 0, %s307
      %s322 = sphi 0, %s308
      %s326 = sphi 0, %s326
      %s328 = sphi 0, %s326
      %s329 = sphi 0, %s328
      %s343 = sphi 0, %s329
      %s347 = sphi 0, %s347
      %s349 = sphi 0, %s347
      %s350 = sphi 0, %s349
      %s364 = sphi 0, %s350
      %s372 = sphi 0, %s374
      %s375 = sphi 0, %s372
      %s376 = sphi 0, %s375
      %s392 = sphi 0, %s376
      %s400 = sphi 0, %s402
      %s403 = sphi 0, %s400
      %s404 = sphi 0, %s403
      %s420 = sphi 0, %s404
      %s428 = sphi 0, %s430
      %s431 = sphi 0, %s428
      %s432 = sphi 0, %s431
      %s448 = sphi 0, %s432
    $region4: #{gegnn_layer_pallas.2} parent=1 // loop_header_branch
      %28 = sbr.rel (%p26) target = $region8
    $region5: #{gegnn_layer_pallas.2} parent=1 // loop_body
      %s30 = ssub.s32 %s25, 1
      %s31 = ssub.s32 %s25, 2
      %s38 = sadd.s32 1, %s33
      %p39 = scmp.ge.s32.totalorder %s38, 1
      %s40 = scalar_select %p39, 0, %s38
      %s41 = sadd.s32 1, %s32
      %s42 = scalar_select %p39, %s41, %s32
      %p43 = scmp.ge.s32.totalorder %s42, 2
      %s44 = scalar_select %p43, 0, %s42
      %s45 = ssub.s32 %s32, %s44
      %p46 = scmp.eq.s32.totalorder %s45, 0
      %s48 = sadd.s32 %s47, 1
      %s49 = scalar_select %p46, %s47, %s48
      %p52 = pneg %p46
      %p53 = scmp.eq.s32.totalorder %s25, 1
      %p54 = por %p52, %p53
      %p55 = scmp.ne.s32.totalorder %s47, %s50
      %p56 = scmp.eq.s32.totalorder %s25, 0
      %p57 = por %p55, %p56
      %p58 = scmp.ne.s32.totalorder %s47, %s50
      %p59 = scmp.eq.s32.totalorder %s30, 1
      %p60 = por %p58, %p59
      %p61 = scmp.ne.s32.totalorder %s50, %s51
      %p62 = scmp.eq.s32.totalorder %s30, 0
      %p63 = por %p61, %p62
      %p64 = scmp.ne.s32.totalorder %s50, %s51
      %p65 = scmp.eq.s32.totalorder %s31, 1
      %p66 = por %p64, %p65
      %p68 = scmp.ne.s32.totalorder %s51, %s67
      %p69 = scmp.eq.s32.totalorder %s31, 0
      %p70 = por %p68, %p69
      %s71 = ssub.s32 %s32, %s44
      %s72 = ssub.s32 %s33, %s40
      %s73 = sor.u32 %s71, %s72
      %p74 = scmp.eq.s32.totalorder %s73, 0
      %s76 = sadd.s32 %s75, 1
      %s77 = scalar_select %p74, %s75, %s76
      %p80 = pneg %p74
      %p81 = scmp.eq.s32.totalorder %s25, 1
      %p82 = por %p80, %p81
      %p83 = scmp.ne.s32.totalorder %s75, %s78
      %p84 = scmp.eq.s32.totalorder %s25, 0
      %p85 = por %p83, %p84
      %p86 = scmp.ne.s32.totalorder %s75, %s78
      %p87 = scmp.eq.s32.totalorder %s30, 1
      %p88 = por %p86, %p87
      %p89 = scmp.ne.s32.totalorder %s78, %s79
      %p90 = scmp.eq.s32.totalorder %s30, 0
      %p91 = por %p89, %p90
      %p92 = scmp.ne.s32.totalorder %s78, %s79
      %p93 = scmp.eq.s32.totalorder %s31, 1
      %p94 = por %p92, %p93
      %p96 = scmp.ne.s32.totalorder %s79, %s95
      %p97 = scmp.eq.s32.totalorder %s31, 0
      %p98 = por %p96, %p97
      %s99 = ssub.s32 %s32, %s44
      %s100 = ssub.s32 %s33, %s40
      %s101 = sor.u32 %s99, %s100
      %p102 = scmp.eq.s32.totalorder %s101, 0
      %s104 = sadd.s32 %s103, 1
      %s105 = scalar_select %p102, %s103, %s104
      %p108 = pneg %p102
      %p109 = scmp.eq.s32.totalorder %s25, 1
      %p110 = por %p108, %p109
      %p111 = scmp.ne.s32.totalorder %s103, %s106
      %p112 = scmp.eq.s32.totalorder %s25, 0
      %p113 = por %p111, %p112
      %p114 = scmp.ne.s32.totalorder %s103, %s106
      %p115 = scmp.eq.s32.totalorder %s30, 1
      %p116 = por %p114, %p115
      %p117 = scmp.ne.s32.totalorder %s106, %s107
      %p118 = scmp.eq.s32.totalorder %s30, 0
      %p119 = por %p117, %p118
      %p120 = scmp.ne.s32.totalorder %s106, %s107
      %p121 = scmp.eq.s32.totalorder %s31, 1
      %p122 = por %p120, %p121
      %p124 = scmp.ne.s32.totalorder %s107, %s123
      %p125 = scmp.eq.s32.totalorder %s31, 0
      %p126 = por %p124, %p125
      %s127 = ssub.s32 %s32, %s44
      %p128 = scmp.eq.s32.totalorder %s127, 0
      %s130 = sadd.s32 %s129, 1
      %s131 = scalar_select %p128, %s129, %s130
      %p134 = pneg %p128
      %p135 = scmp.eq.s32.totalorder %s25, 1
      %p136 = por %p134, %p135
      %p137 = scmp.ne.s32.totalorder %s129, %s132
      %p138 = scmp.eq.s32.totalorder %s25, 0
      %p139 = por %p137, %p138
      %p140 = scmp.ne.s32.totalorder %s129, %s132
      %p141 = scmp.eq.s32.totalorder %s30, 1
      %p142 = por %p140, %p141
      %p143 = scmp.ne.s32.totalorder %s132, %s133
      %p144 = scmp.eq.s32.totalorder %s30, 0
      %p145 = por %p143, %p144
      %p146 = scmp.ne.s32.totalorder %s132, %s133
      %p147 = scmp.eq.s32.totalorder %s31, 1
      %p148 = por %p146, %p147
      %p150 = scmp.ne.s32.totalorder %s133, %s149
      %p151 = scmp.eq.s32.totalorder %s31, 0
      %p152 = por %p150, %p151
      %s153 = ssub.s32 %s32, %s44
      %p154 = scmp.eq.s32.totalorder %s153, 0
      %s156 = sadd.s32 %s155, 1
      %s157 = scalar_select %p154, %s155, %s156
      %p160 = pneg %p154
      %p161 = scmp.eq.s32.totalorder %s25, 1
      %p162 = por %p160, %p161
      %p163 = scmp.ne.s32.totalorder %s155, %s158
      %p164 = scmp.eq.s32.totalorder %s25, 0
      %p165 = por %p163, %p164
      %p166 = scmp.ne.s32.totalorder %s155, %s158
      %p167 = scmp.eq.s32.totalorder %s30, 1
      %p168 = por %p166, %p167
      %p169 = scmp.ne.s32.totalorder %s158, %s159
      %p170 = scmp.eq.s32.totalorder %s30, 0
      %p171 = por %p169, %p170
      %p172 = scmp.ne.s32.totalorder %s158, %s159
      %p173 = scmp.eq.s32.totalorder %s31, 1
      %p174 = por %p172, %p173
      %p176 = scmp.ne.s32.totalorder %s159, %s175
      %p177 = scmp.eq.s32.totalorder %s31, 0
      %p178 = por %p176, %p177
      %s179 = ssub.s32 %s32, %s44
      %s180 = ssub.s32 %s33, %s40
      %s181 = sor.u32 %s179, %s180
      %p182 = scmp.eq.s32.totalorder %s181, 0
      %s184 = sadd.s32 %s183, 1
      %s185 = scalar_select %p182, %s183, %s184
      %p188 = pneg %p182
      %p189 = scmp.eq.s32.totalorder %s25, 1
      %p190 = por %p188, %p189
      %p191 = scmp.ne.s32.totalorder %s183, %s186
      %p192 = scmp.eq.s32.totalorder %s25, 0
      %p193 = por %p191, %p192
      %p194 = scmp.ne.s32.totalorder %s183, %s186
      %p195 = scmp.eq.s32.totalorder %s30, 1
      %p196 = por %p194, %p195
      %p197 = scmp.ne.s32.totalorder %s186, %s187
      %p198 = scmp.eq.s32.totalorder %s30, 0
      %p199 = por %p197, %p198
      %p200 = scmp.ne.s32.totalorder %s186, %s187
      %p201 = scmp.eq.s32.totalorder %s31, 1
      %p202 = por %p200, %p201
      %p204 = scmp.ne.s32.totalorder %s187, %s203
      %p205 = scmp.eq.s32.totalorder %s31, 0
      %p206 = por %p204, %p205
      %s207 = ssub.s32 %s32, %s44
      %s208 = ssub.s32 %s33, %s40
      %s209 = sor.u32 %s207, %s208
      %p210 = scmp.eq.s32.totalorder %s209, 0
      %s212 = sadd.s32 %s211, 1
      %s213 = scalar_select %p210, %s211, %s212
      %p216 = pneg %p210
      %p217 = scmp.eq.s32.totalorder %s25, 1
      %p218 = por %p216, %p217
      %p219 = scmp.ne.s32.totalorder %s211, %s214
      %p220 = scmp.eq.s32.totalorder %s25, 0
      %p221 = por %p219, %p220
      %p222 = scmp.ne.s32.totalorder %s211, %s214
      %p223 = scmp.eq.s32.totalorder %s30, 1
      %p224 = por %p222, %p223
      %p225 = scmp.ne.s32.totalorder %s214, %s215
      %p226 = scmp.eq.s32.totalorder %s30, 0
      %p227 = por %p225, %p226
      %p228 = scmp.ne.s32.totalorder %s214, %s215
      %p229 = scmp.eq.s32.totalorder %s31, 1
      %p230 = por %p228, %p229
      %p232 = scmp.ne.s32.totalorder %s215, %s231
      %p233 = scmp.eq.s32.totalorder %s31, 0
      %p234 = por %p232, %p233
      %s235 = ssub.s32 %s32, %s44
      %s236 = ssub.s32 %s33, %s40
      %s237 = sor.u32 %s235, %s236
      %p238 = scmp.eq.s32.totalorder %s237, 0
      %s240 = sadd.s32 %s239, 1
      %s241 = scalar_select %p238, %s239, %s240
      %p244 = pneg %p238
      %p245 = scmp.eq.s32.totalorder %s25, 1
      %p246 = por %p244, %p245
      %p247 = scmp.ne.s32.totalorder %s239, %s242
      %p248 = scmp.eq.s32.totalorder %s25, 0
      %p249 = por %p247, %p248
      %p250 = scmp.ne.s32.totalorder %s239, %s242
      %p251 = scmp.eq.s32.totalorder %s30, 1
      %p252 = por %p250, %p251
      %p253 = scmp.ne.s32.totalorder %s242, %s243
      %p254 = scmp.eq.s32.totalorder %s30, 0
      %p255 = por %p253, %p254
      %p256 = scmp.ne.s32.totalorder %s242, %s243
      %p257 = scmp.eq.s32.totalorder %s31, 1
      %p258 = por %p256, %p257
      %p260 = scmp.ne.s32.totalorder %s243, %s259
      %p261 = scmp.eq.s32.totalorder %s31, 0
      %p262 = por %p260, %p261
      %s264 = sadd.s32 %s263, 1
      %p267 = scmp.eq.s32.totalorder %s25, 1
      %p268 = scmp.ne.s32.totalorder %s263, %s265
      %p269 = scmp.eq.s32.totalorder %s25, 0
      %p270 = por %p268, %p269
      %p271 = scmp.ne.s32.totalorder %s263, %s265
      %p272 = scmp.eq.s32.totalorder %s30, 1
      %p273 = por %p271, %p272
      %p274 = scmp.ne.s32.totalorder %s265, %s266
      %p275 = scmp.eq.s32.totalorder %s30, 0
      %p276 = por %p274, %p275
      %p277 = scmp.ne.s32.totalorder %s265, %s266
      %p278 = scmp.eq.s32.totalorder %s31, 1
      %p279 = por %p277, %p278
      %p281 = scmp.ne.s32.totalorder %s266, %s280
      %p282 = scmp.eq.s32.totalorder %s31, 0
      %p283 = por %p281, %p282
      %s285 = sadd.s32 %s284, 1
      %p288 = scmp.eq.s32.totalorder %s25, 1
      %p289 = scmp.ne.s32.totalorder %s284, %s286
      %p290 = scmp.eq.s32.totalorder %s25, 0
      %p291 = por %p289, %p290
      %p292 = scmp.ne.s32.totalorder %s284, %s286
      %p293 = scmp.eq.s32.totalorder %s30, 1
      %p294 = por %p292, %p293
      %p295 = scmp.ne.s32.totalorder %s286, %s287
      %p296 = scmp.eq.s32.totalorder %s30, 0
      %p297 = por %p295, %p296
      %p298 = scmp.ne.s32.totalorder %s286, %s287
      %p299 = scmp.eq.s32.totalorder %s31, 1
      %p300 = por %p298, %p299
      %p302 = scmp.ne.s32.totalorder %s287, %s301
      %p303 = scmp.eq.s32.totalorder %s31, 0
      %p304 = por %p302, %p303
      %s306 = sadd.s32 %s305, 1
      %p309 = scmp.eq.s32.totalorder %s25, 1
      %p310 = scmp.ne.s32.totalorder %s305, %s307
      %p311 = scmp.eq.s32.totalorder %s25, 0
      %p312 = por %p310, %p311
      %p313 = scmp.ne.s32.totalorder %s305, %s307
      %p314 = scmp.eq.s32.totalorder %s30, 1
      %p315 = por %p313, %p314
      %p316 = scmp.ne.s32.totalorder %s307, %s308
      %p317 = scmp.eq.s32.totalorder %s30, 0
      %p318 = por %p316, %p317
      %p319 = scmp.ne.s32.totalorder %s307, %s308
      %p320 = scmp.eq.s32.totalorder %s31, 1
      %p321 = por %p319, %p320
      %p323 = scmp.ne.s32.totalorder %s308, %s322
      %p324 = scmp.eq.s32.totalorder %s31, 0
      %p325 = por %p323, %p324
      %s327 = sadd.s32 %s326, 1
      %p330 = scmp.eq.s32.totalorder %s25, 1
      %p331 = scmp.ne.s32.totalorder %s326, %s328
      %p332 = scmp.eq.s32.totalorder %s25, 0
      %p333 = por %p331, %p332
      %p334 = scmp.ne.s32.totalorder %s326, %s328
      %p335 = scmp.eq.s32.totalorder %s30, 1
      %p336 = por %p334, %p335
      %p337 = scmp.ne.s32.totalorder %s328, %s329
      %p338 = scmp.eq.s32.totalorder %s30, 0
      %p339 = por %p337, %p338
      %p340 = scmp.ne.s32.totalorder %s328, %s329
      %p341 = scmp.eq.s32.totalorder %s31, 1
      %p342 = por %p340, %p341
      %p344 = scmp.ne.s32.totalorder %s329, %s343
      %p345 = scmp.eq.s32.totalorder %s31, 0
      %p346 = por %p344, %p345
      %s348 = sadd.s32 %s347, 1
      %p351 = scmp.eq.s32.totalorder %s25, 1
      %p352 = scmp.ne.s32.totalorder %s347, %s349
      %p353 = scmp.eq.s32.totalorder %s25, 0
      %p354 = por %p352, %p353
      %p355 = scmp.ne.s32.totalorder %s347, %s349
      %p356 = scmp.eq.s32.totalorder %s30, 1
      %p357 = por %p355, %p356
      %p358 = scmp.ne.s32.totalorder %s349, %s350
      %p359 = scmp.eq.s32.totalorder %s30, 0
      %p360 = por %p358, %p359
      %p361 = scmp.ne.s32.totalorder %s349, %s350
      %p362 = scmp.eq.s32.totalorder %s31, 1
      %p363 = por %p361, %p362
      %p365 = scmp.ne.s32.totalorder %s350, %s364
      %p366 = scmp.eq.s32.totalorder %s31, 0
      %p367 = por %p365, %p366
      %s368 = ssub.s32 %s32, %s44
      %s369 = ssub.s32 %s33, %s40
      %s370 = sor.u32 %s368, %s369
      %p371 = scmp.eq.s32.totalorder %s370, 0
      %s373 = sadd.s32 %s372, 1
      %s374 = scalar_select %p371, %s372, %s373
      %p377 = pneg %p371
      %p378 = scmp.eq.s32.totalorder %s25, 1
      %p379 = por %p377, %p378
      %p380 = scmp.ne.s32.totalorder %s372, %s375
      %p381 = scmp.eq.s32.totalorder %s25, 0
      %p382 = por %p380, %p381
      %p383 = scmp.ne.s32.totalorder %s372, %s375
      %p384 = scmp.eq.s32.totalorder %s30, 1
      %p385 = por %p383, %p384
      %p386 = scmp.ne.s32.totalorder %s375, %s376
      %p387 = scmp.eq.s32.totalorder %s30, 0
      %p388 = por %p386, %p387
      %p389 = scmp.ne.s32.totalorder %s375, %s376
      %p390 = scmp.eq.s32.totalorder %s31, 1
      %p391 = por %p389, %p390
      %p393 = scmp.ne.s32.totalorder %s376, %s392
      %p394 = scmp.eq.s32.totalorder %s31, 0
      %p395 = por %p393, %p394
      %s396 = ssub.s32 %s32, %s44
      %s397 = ssub.s32 %s33, %s40
      %s398 = sor.u32 %s396, %s397
      %p399 = scmp.eq.s32.totalorder %s398, 0
      %s401 = sadd.s32 %s400, 1
      %s402 = scalar_select %p399, %s400, %s401
      %p405 = pneg %p399
      %p406 = scmp.eq.s32.totalorder %s25, 1
      %p407 = por %p405, %p406
      %p408 = scmp.ne.s32.totalorder %s400, %s403
      %p409 = scmp.eq.s32.totalorder %s25, 0
      %p410 = por %p408, %p409
      %p411 = scmp.ne.s32.totalorder %s400, %s403
      %p412 = scmp.eq.s32.totalorder %s30, 1
      %p413 = por %p411, %p412
      %p414 = scmp.ne.s32.totalorder %s403, %s404
      %p415 = scmp.eq.s32.totalorder %s30, 0
      %p416 = por %p414, %p415
      %p417 = scmp.ne.s32.totalorder %s403, %s404
      %p418 = scmp.eq.s32.totalorder %s31, 1
      %p419 = por %p417, %p418
      %p421 = scmp.ne.s32.totalorder %s404, %s420
      %p422 = scmp.eq.s32.totalorder %s31, 0
      %p423 = por %p421, %p422
      %s424 = ssub.s32 %s32, %s44
      %s425 = ssub.s32 %s33, %s40
      %s426 = sor.u32 %s424, %s425
      %p427 = scmp.eq.s32.totalorder %s426, 0
      %s429 = sadd.s32 %s428, 1
      %s430 = scalar_select %p427, %s428, %s429
      %p433 = pneg %p427
      %p434 = scmp.eq.s32.totalorder %s25, 1
      %p435 = por %p433, %p434
      %p436 = scmp.ne.s32.totalorder %s428, %s431
      %p437 = scmp.eq.s32.totalorder %s25, 0
      %p438 = por %p436, %p437
      %p439 = scmp.ne.s32.totalorder %s428, %s431
      %p440 = scmp.eq.s32.totalorder %s30, 1
      %p441 = por %p439, %p440
      %p442 = scmp.ne.s32.totalorder %s431, %s432
      %p443 = scmp.eq.s32.totalorder %s30, 0
      %p444 = por %p442, %p443
      %p445 = scmp.ne.s32.totalorder %s431, %s432
      %p446 = scmp.eq.s32.totalorder %s31, 1
      %p447 = por %p445, %p446
      %p449 = scmp.ne.s32.totalorder %s432, %s448
      %p450 = scmp.eq.s32.totalorder %s31, 0
      %p451 = por %p449, %p450
      %p452 = scmp.le.s32.totalorder 1, %s25
      %p453 = scmp.lt.s32.totalorder %s25, 3
      %p454 = pnand %p452, %p453
      %p455 = pneg %p454
      // Predicated region
      $region9: #{gegnn_layer_pallas.2} parent=5 // pred_check
        _
      $region10: #{gegnn_layer_pallas.2} parent=5 // pred_check_branch
        %457 = sbr.rel (%p454) target = $region12
      $region11: #{gegnn_layer_pallas.2} parent=5 // pred_region
        %s458 = ssub.s32 %s25, 1
        // Predicated region
        $region13: #{gegnn_layer_pallas.2} parent=11 // pred_check
          %p459 = pneg %p276
        $region14: #{gegnn_layer_pallas.2} parent=11 // pred_check_branch
          %461 = sbr.rel (%p459) target = $region16
        $region15: #{gegnn_layer_pallas.2} parent=11 // pred_region
          _
        $region16: #{gegnn_layer_pallas.2} parent=11 // pred_fallthru
          _
        // Predicated region
        $region17: #{gegnn_layer_pallas.2} parent=11 // pred_check
          %p462 = pneg %p297
        $region18: #{gegnn_layer_pallas.2} parent=11 // pred_check_branch
          %464 = sbr.rel (%p462) target = $region20
        $region19: #{gegnn_layer_pallas.2} parent=11 // pred_region
          _
        $region20: #{gegnn_layer_pallas.2} parent=11 // pred_fallthru
          _
        // Predicated region
        $region21: #{gegnn_layer_pallas.2} parent=11 // pred_check
          %p465 = pneg %p318
        $region22: #{gegnn_layer_pallas.2} parent=11 // pred_check_branch
          %467 = sbr.rel (%p465) target = $region24
        $region23: #{gegnn_layer_pallas.2} parent=11 // pred_region
          _
        $region24: #{gegnn_layer_pallas.2} parent=11 // pred_fallthru
          _
        // Predicated region
        $region25: #{gegnn_layer_pallas.2} parent=11 // pred_check
          %p468 = pneg %p339
        $region26: #{gegnn_layer_pallas.2} parent=11 // pred_check_branch
          %470 = sbr.rel (%p468) target = $region28
        $region27: #{gegnn_layer_pallas.2} parent=11 // pred_region
          _
        $region28: #{gegnn_layer_pallas.2} parent=11 // pred_fallthru
          _
        // Predicated region
        $region29: #{gegnn_layer_pallas.2} parent=11 // pred_check
          %p471 = pneg %p360
        $region30: #{gegnn_layer_pallas.2} parent=11 // pred_check_branch
          %473 = sbr.rel (%p471) target = $region32
        $region31: #{gegnn_layer_pallas.2} parent=11 // pred_region
          _
        $region32: #{gegnn_layer_pallas.2} parent=11 // pred_fallthru
          _
      $region12: #{gegnn_layer_pallas.2} parent=5 // pred_fallthru
        _
      %p474 = scmp.lt.s32.totalorder %s25, 2
      // Predicated region
      $region33: #{gegnn_layer_pallas.2} parent=5 // pred_check
        %p475 = pneg %p474
      $region34: #{gegnn_layer_pallas.2} parent=5 // pred_check_branch
        %477 = sbr.rel (%p475) target = $region36
      $region35: #{gegnn_layer_pallas.2} parent=5 // pred_region
        // Predicated region
        $region37: #{gegnn_layer_pallas.2} parent=35 // pred_check
          %p478 = pneg %p57
        $region38: #{gegnn_layer_pallas.2} parent=35 // pred_check_branch
          %480 = sbr.rel (%p478) target = $region40
        $region39: #{gegnn_layer_pallas.2} parent=35 // pred_region
          %p481 = scmp.lt.s32.totalorder %s32, 1
          %s482 = scalar_select %p481, %s32, 1
          %s483 = smul.addr %s482, 8
          %s484 = scalar_lea.vmem %s0, %s483
        $region40: #{gegnn_layer_pallas.2} parent=35 // pred_fallthru
          _
        // Predicated region
        $region41: #{gegnn_layer_pallas.2} parent=35 // pred_check
          %p485 = pneg %p85
        $region42: #{gegnn_layer_pallas.2} parent=35 // pred_check_branch
          %487 = sbr.rel (%p485) target = $region44
        $region43: #{gegnn_layer_pallas.2} parent=35 // pred_region
          %p488 = scmp.lt.s32.totalorder %s32, 1
          %s489 = scalar_select %p488, %s32, 1
          %p490 = scmp.lt.s32.totalorder %s33, 0
          %s491 = scalar_select %p490, %s33, 0
          %s492 = sadd.s32 %s491, %s489
          %s493 = smul.addr %s492, 8
          %s494 = scalar_lea.vmem %s1, %s493
        $region44: #{gegnn_layer_pallas.2} parent=35 // pred_fallthru
          _
        // Predicated region
        $region45: #{gegnn_layer_pallas.2} parent=35 // pred_check
          %p495 = pneg %p113
        $region46: #{gegnn_layer_pallas.2} parent=35 // pred_check_branch
          %497 = sbr.rel (%p495) target = $region48
        $region47: #{gegnn_layer_pallas.2} parent=35 // pred_region
          %s498 = sand.u32 %s103, 1
          %s499 = scalar_lea.sflag [#allocation3], %s498
          %s500 = sand.u32 %s103, 1
          %s501 = smul.addr %s500, 64
          %s502 = scalar_lea.vmem [#allocation2], %s501
          %s503 = smul.u32 8, %s33
          %505 = vsyncadd %s499, 0
          %s506 = smul.addr %s32, 8
          %s507 = sadd.s32 %s503, %s506
          %s508 = smul.addr %s507, 8
          %s509 = scalar_lea.hbm %s2, %s508
          %s510 = sshll.u32 %s509, 4
          %s511 = int_to_ptr.hbm [resolvable:$true] %s510
          %s512 = sshll.u32 %s502, 4
          %s513 = int_to_ptr.vmem [resolvable:$true] %s512
          %518 = dma.hbm_to_vmem [thread:$0]  %s511, 1024, %s513, %s499, 128, 128, 8
        $region48: #{gegnn_layer_pallas.2} parent=35 // pred_fallthru
          _
        // Predicated region
        $region49: #{gegnn_layer_pallas.2} parent=35 // pred_check
          %p519 = pneg %p139
        $region50: #{gegnn_layer_pallas.2} parent=35 // pred_check_branch
          %521 = sbr.rel (%p519) target = $region52
        $region51: #{gegnn_layer_pallas.2} parent=35 // pred_region
          %p522 = scmp.lt.s32.totalorder %s32, 1
          %s523 = scalar_select %p522, %s32, 1
          %s524 = smul.addr %s523, 8
          %s525 = scalar_lea.vmem %s3, %s524
        $region52: #{gegnn_layer_pallas.2} parent=35 // pred_fallthru
          _
        // Predicated region
        $region53: #{gegnn_layer_pallas.2} parent=35 // pred_check
          %p526 = pneg %p165
        $region54: #{gegnn_layer_pallas.2} parent=35 // pred_check_branch
          %528 = sbr.rel (%p526) target = $region56
        $region55: #{gegnn_layer_pallas.2} parent=35 // pred_region
          %p529 = scmp.lt.s32.totalorder %s32, 1
          %s530 = scalar_select %p529, %s32, 1
          %s531 = smul.addr %s530, 8
          %s532 = scalar_lea.vmem %s4, %s531
        $region56: #{gegnn_layer_pallas.2} parent=35 // pred_fallthru
          _
        // Predicated region
        $region57: #{gegnn_layer_pallas.2} parent=35 // pred_check
          %p533 = pneg %p193
        $region58: #{gegnn_layer_pallas.2} parent=35 // pred_check_branch
          %535 = sbr.rel (%p533) target = $region60
        $region59: #{gegnn_layer_pallas.2} parent=35 // pred_region
          %p536 = scmp.lt.s32.totalorder %s32, 1
          %s537 = scalar_select %p536, %s32, 1
          %p538 = scmp.lt.s32.totalorder %s33, 0
          %s539 = scalar_select %p538, %s33, 0
          %s540 = sadd.s32 %s539, %s537
          %s541 = smul.addr %s540, 8
          %s542 = scalar_lea.vmem %s5, %s541
        $region60: #{gegnn_layer_pallas.2} parent=35 // pred_fallthru
          _
        // Predicated region
        $region61: #{gegnn_layer_pallas.2} parent=35 // pred_check
          %p543 = pneg %p221
        $region62: #{gegnn_layer_pallas.2} parent=35 // pred_check_branch
          %545 = sbr.rel (%p543) target = $region64
        $region63: #{gegnn_layer_pallas.2} parent=35 // pred_region
          %p546 = scmp.lt.s32.totalorder %s32, 1
          %s547 = scalar_select %p546, %s32, 1
          %p548 = scmp.lt.s32.totalorder %s33, 0
          %s549 = scalar_select %p548, %s33, 0
          %s550 = sadd.s32 %s549, %s547
          %s551 = smul.addr %s550, 8
          %s552 = scalar_lea.vmem %s6, %s551
        $region64: #{gegnn_layer_pallas.2} parent=35 // pred_fallthru
          _
        // Predicated region
        $region65: #{gegnn_layer_pallas.2} parent=35 // pred_check
          %p553 = pneg %p249
        $region66: #{gegnn_layer_pallas.2} parent=35 // pred_check_branch
          %555 = sbr.rel (%p553) target = $region68
        $region67: #{gegnn_layer_pallas.2} parent=35 // pred_region
          %p556 = scmp.lt.s32.totalorder %s32, 1
          %s557 = scalar_select %p556, %s32, 1
          %p558 = scmp.lt.s32.totalorder %s33, 0
          %s559 = scalar_select %p558, %s33, 0
          %s560 = sadd.s32 %s559, %s557
          %s561 = smul.addr %s560, 8
          %s562 = scalar_lea.vmem %s7, %s561
        $region68: #{gegnn_layer_pallas.2} parent=35 // pred_fallthru
          _
      $region36: #{gegnn_layer_pallas.2} parent=5 // pred_fallthru
        _
      %p563 = scmp.le.s32.totalorder 1, %s25
      %p564 = scmp.lt.s32.totalorder %s25, 3
      %p565 = pnand %p563, %p564
      %p566 = pneg %p565
      // Predicated region
      $region69: #{gegnn_layer_pallas.2} parent=5 // pred_check
        _
      $region70: #{gegnn_layer_pallas.2} parent=5 // pred_check_branch
        %568 = sbr.rel (%p565) target = $region72
      $region71: #{gegnn_layer_pallas.2} parent=5 // pred_region
        %s569 = ssub.s32 %s25, 1
        %s570 = sand.u32 %s106, 1
        %s571 = scalar_lea.sflag [#allocation3], %s570
        %s572 = sand.u32 %s106, 1
        %s573 = smul.addr %s572, 64
        %s574 = scalar_lea.vmem [#allocation2], %s573
        // Predicated region
        $region73: #{gegnn_layer_pallas.2} parent=71 // pred_check
          %p575 = pneg %p119
        $region74: #{gegnn_layer_pallas.2} parent=71 // pred_check_branch
          %577 = sbr.rel (%p575) target = $region76
        $region75: #{gegnn_layer_pallas.2} parent=71 // pred_region
          %579 = dma.done %s571, 1024
        $region76: #{gegnn_layer_pallas.2} parent=71 // pred_fallthru
          _
        %p580 = scmp.lt.s32.totalorder %s34, 1
        %s581 = scalar_select %p580, %s34, 1
        %s582 = smul.addr %s581, 8
        %s583 = scalar_lea.vmem %s0, %s582
        %p584 = pneg %p63
        %p585 = pneg %p60
        %p586 = scmp.lt.s32.totalorder %s34, 1
        %s587 = scalar_select %p586, %s34, 1
        %p588 = scmp.lt.s32.totalorder %s35, 0
        %s589 = scalar_select %p588, %s35, 0
        %s590 = sadd.s32 %s589, %s587
        %s591 = smul.addr %s590, 8
        %s592 = scalar_lea.vmem %s1, %s591
        %p593 = pneg %p91
        %p594 = pneg %p88
        %s595 = sand.u32 %s106, 1
        %s596 = scalar_lea.sflag [#allocation3], %s595
        %s597 = sand.u32 %s106, 1
        %s598 = smul.addr %s597, 64
        %s599 = scalar_lea.vmem [#allocation2], %s598
        %p600 = pneg %p119
        %p601 = pneg %p116
        %p602 = scmp.lt.s32.totalorder %s34, 1
        %s603 = scalar_select %p602, %s34, 1
        %s604 = smul.addr %s603, 8
        %s605 = scalar_lea.vmem %s3, %s604
        %p606 = pneg %p145
        %p607 = pneg %p142
        %p608 = scmp.lt.s32.totalorder %s34, 1
        %s609 = scalar_select %p608, %s34, 1
        %s610 = smul.addr %s609, 8
        %s611 = scalar_lea.vmem %s4, %s610
        %p612 = pneg %p171
        %p613 = pneg %p168
        %p614 = scmp.lt.s32.totalorder %s34, 1
        %s615 = scalar_select %p614, %s34, 1
        %p616 = scmp.lt.s32.totalorder %s35, 0
        %s617 = scalar_select %p616, %s35, 0
        %s618 = sadd.s32 %s617, %s615
        %s619 = smul.addr %s618, 8
        %s620 = scalar_lea.vmem %s5, %s619
        %p621 = pneg %p199
        %p622 = pneg %p196
        %p623 = scmp.lt.s32.totalorder %s34, 1
        %s624 = scalar_select %p623, %s34, 1
        %p625 = scmp.lt.s32.totalorder %s35, 0
        %s626 = scalar_select %p625, %s35, 0
        %s627 = sadd.s32 %s626, %s624
        %s628 = smul.addr %s627, 8
        %s629 = scalar_lea.vmem %s6, %s628
        %p630 = pneg %p227
        %p631 = pneg %p224
        %p632 = scmp.lt.s32.totalorder %s34, 1
        %s633 = scalar_select %p632, %s34, 1
        %p634 = scmp.lt.s32.totalorder %s35, 0
        %s635 = scalar_select %p634, %s35, 0
        %s636 = sadd.s32 %s635, %s633
        %s637 = smul.addr %s636, 8
        %s638 = scalar_lea.vmem %s7, %s637
        %p639 = pneg %p255
        %p640 = pneg %p252
        %p641 = pneg %p276
        %p642 = pneg %p273
        %p643 = pneg %p297
        %p644 = pneg %p294
        %p645 = pneg %p318
        %p646 = pneg %p315
        %p647 = pneg %p339
        %p648 = pneg %p336
        %p649 = pneg %p360
        %p650 = pneg %p357
        %p651 = pneg %p388
        %p652 = pneg %p385
        %p653 = scmp.lt.s32.totalorder %s34, 1
        %s654 = scalar_select %p653, %s34, 1
        %p655 = scmp.lt.s32.totalorder %s35, 0
        %s656 = scalar_select %p655, %s35, 0
        %s657 = sadd.s32 %s656, %s654
        %s658 = smul.addr %s657, 8
        %s659 = scalar_lea.vmem %s13, %s658
        %p660 = pneg %p416
        %p661 = pneg %p413
        %p662 = scmp.lt.s32.totalorder %s34, 1
        %s663 = scalar_select %p662, %s34, 1
        %p664 = scmp.lt.s32.totalorder %s35, 0
        %s665 = scalar_select %p664, %s35, 0
        %s666 = smul.addr %s663, 2
        %s667 = sadd.s32 %s665, %s666
        %s668 = smul.addr %s667, 8
        %s669 = scalar_lea.vmem %s14, %s668
        %p670 = pneg %p444
        %p671 = pneg %p441
        %p672 = scmp.lt.s32.totalorder %s34, 1
        %s673 = scalar_select %p672, %s34, 1
        %p674 = scmp.lt.s32.totalorder %s35, 0
        %s675 = scalar_select %p674, %s35, 0
        %s676 = sadd.s32 %s675, %s673
        %s677 = smul.addr %s676, 2
        %s678 = scalar_lea.vmem %s15, %s677
        %p679 = scmp.lt.s32.totalorder %s34, 1
        %s680 = scalar_select %p679, %s34, 1
        %s681 = smul.addr %s680, 8
        %s682 = scalar_lea.vmem %s0, %s681
        %p683 = scmp.lt.s32.totalorder %s34, 1
        %s684 = scalar_select %p683, %s34, 1
        %p685 = scmp.lt.s32.totalorder %s35, 0
        %s686 = scalar_select %p685, %s35, 0
        %s687 = sadd.s32 %s686, %s684
        %s688 = smul.addr %s687, 8
        %s689 = scalar_lea.vmem %s1, %s688
        %s690 = smul.u32 8, %s35
        %p691 = scmp.lt.s32.totalorder %s34, 1
        %s692 = scalar_select %p691, %s34, 1
        %s693 = smul.addr %s692, 8
        %s694 = scalar_lea.vmem %s3, %s693
        %p695 = scmp.lt.s32.totalorder %s34, 1
        %s696 = scalar_select %p695, %s34, 1
        %s697 = smul.addr %s696, 8
        %s698 = scalar_lea.vmem %s4, %s697
        %p699 = scmp.lt.s32.totalorder %s34, 1
        %s700 = scalar_select %p699, %s34, 1
        %p701 = scmp.lt.s32.totalorder %s35, 0
        %s702 = scalar_select %p701, %s35, 0
        %s703 = sadd.s32 %s702, %s700
        %s704 = smul.addr %s703, 8
        %s705 = scalar_lea.vmem %s5, %s704
        %p706 = scmp.lt.s32.totalorder %s34, 1
        %s707 = scalar_select %p706, %s34, 1
        %p708 = scmp.lt.s32.totalorder %s35, 0
        %s709 = scalar_select %p708, %s35, 0
        %s710 = sadd.s32 %s709, %s707
        %s711 = smul.addr %s710, 8
        %s712 = scalar_lea.vmem %s6, %s711
        %p713 = scmp.lt.s32.totalorder %s34, 1
        %s714 = scalar_select %p713, %s34, 1
        %p715 = scmp.lt.s32.totalorder %s35, 0
        %s716 = scalar_select %p715, %s35, 0
        %s717 = sadd.s32 %s716, %s714
        %s718 = smul.addr %s717, 8
        %s719 = scalar_lea.vmem %s7, %s718
        %p720 = scmp.lt.s32.totalorder %s34, 1
        %s721 = scalar_select %p720, %s34, 1
        %p722 = scmp.lt.s32.totalorder %s35, 0
        %s723 = scalar_select %p722, %s35, 0
        %s724 = sadd.s32 %s723, %s721
        %s725 = smul.addr %s724, 8
        %s726 = scalar_lea.vmem %s13, %s725
        %p727 = scmp.lt.s32.totalorder %s34, 1
        %s728 = scalar_select %p727, %s34, 1
        %p729 = scmp.lt.s32.totalorder %s35, 0
        %s730 = scalar_select %p729, %s35, 0
        %s731 = smul.addr %s728, 2
        %s732 = sadd.s32 %s730, %s731
        %s733 = smul.addr %s732, 8
        %s734 = scalar_lea.vmem %s14, %s733
        %p735 = scmp.lt.s32.totalorder %s34, 1
        %s736 = scalar_select %p735, %s34, 1
        %p737 = scmp.lt.s32.totalorder %s35, 0
        %s738 = scalar_select %p737, %s35, 0
        %s739 = sadd.s32 %s738, %s736
        %s740 = smul.addr %s739, 2
        %s741 = scalar_lea.vmem %s15, %s740
        %v742 = vld [vmem:[%s682] sm:$0xff]
        %v743 = vld [vmem:[%s689] sm:$0xff]
        %v744 = vld [vmem:[%s719] sm:$0xff]
        %v745 = vld [vmem:[%s694] sm:$0xff]
        %v746 = vld [vmem:[%s698] sm:$0xff]
        %v747 = vld [vmem:[%s705] sm:$0xff]
        %v748 = vld [vmem:[%s712] sm:$0xff]
        %v750 = vrot.slane %v747, 1
        %v751 = vrot.slane %v747, 2
        %v752 = vrot.slane %v747, 3
        %v753 = vrot.slane %v747, 4
        %v754 = vrot.slane %v747, 5
        %v755 = vrot.slane %v747, 6
        %v756 = vrot.slane %v747, 7
        %v757 = vperm.slane %v747, 0
        %v758 = vperm.slane %v750, 0
        %v759 = vperm.slane %v751, 0
        %v760 = vperm.slane %v752, 0
        %v761 = vperm.slane %v753, 0
        %v762 = vperm.slane %v754, 0
        %v763 = vperm.slane %v755, 0
        %v764 = vperm.slane %v756, 0
        %v773 = vsub.f32 %v745, %v757
        %v774 = vsub.f32 %v745, %v758
        %v775 = vsub.f32 %v745, %v759
        %v776 = vsub.f32 %v745, %v760
        %v777 = vsub.f32 %v745, %v761
        %v778 = vsub.f32 %v745, %v762
        %v779 = vsub.f32 %v745, %v763
        %v780 = vsub.f32 %v745, %v764
        %v782 = vrot.slane %v748, 1
        %v783 = vrot.slane %v748, 2
        %v784 = vrot.slane %v748, 3
        %v785 = vrot.slane %v748, 4
        %v786 = vrot.slane %v748, 5
        %v787 = vrot.slane %v748, 6
        %v788 = vrot.slane %v748, 7
        %v789 = vperm.slane %v748, 0
        %v790 = vperm.slane %v782, 0
        %v791 = vperm.slane %v783, 0
        %v792 = vperm.slane %v784, 0
        %v793 = vperm.slane %v785, 0
        %v794 = vperm.slane %v786, 0
        %v795 = vperm.slane %v787, 0
        %v796 = vperm.slane %v788, 0
        %v805 = vsub.f32 %v746, %v789
        %v806 = vsub.f32 %v746, %v790
        %v807 = vsub.f32 %v746, %v791
        %v808 = vsub.f32 %v746, %v792
        %v809 = vsub.f32 %v746, %v793
        %v810 = vsub.f32 %v746, %v794
        %v811 = vsub.f32 %v746, %v795
        %v812 = vsub.f32 %v746, %v796
        %v813 = vmul.f32 %v773, %v773
        %v814 = vmul.f32 %v774, %v774
        %v815 = vmul.f32 %v775, %v775
        %v816 = vmul.f32 %v776, %v776
        %v817 = vmul.f32 %v777, %v777
        %v818 = vmul.f32 %v778, %v778
        %v819 = vmul.f32 %v779, %v779
        %v820 = vmul.f32 %v780, %v780
        %v821 = vadd.f32 %v813, 2e-08
        %v822 = vadd.f32 %v814, 2e-08
        %v823 = vadd.f32 %v815, 2e-08
        %v824 = vadd.f32 %v816, 2e-08
        %v825 = vadd.f32 %v817, 2e-08
        %v826 = vadd.f32 %v818, 2e-08
        %v827 = vadd.f32 %v819, 2e-08
        %v828 = vadd.f32 %v820, 2e-08
        %v829 = vmul.f32 %v805, %v805
        %v830 = vmul.f32 %v806, %v806
        %v831 = vmul.f32 %v807, %v807
        %v832 = vmul.f32 %v808, %v808
        %v833 = vmul.f32 %v809, %v809
        %v834 = vmul.f32 %v810, %v810
        %v835 = vmul.f32 %v811, %v811
        %v836 = vmul.f32 %v812, %v812
        %v837 = vadd.f32 %v821, %v829
        %v838 = vadd.f32 %v822, %v830
        %v839 = vadd.f32 %v823, %v831
        %v840 = vadd.f32 %v824, %v832
        %v841 = vadd.f32 %v825, %v833
        %v842 = vadd.f32 %v826, %v834
        %v843 = vadd.f32 %v827, %v835
        %v844 = vadd.f32 %v828, %v836
        %v845 = vrsqrt.pop %v837
        %v846 = vmul.f32 %v845, %v837
        %v847 = vmul.f32 %v846, %v845
        %v848 = vmul.f32 0.5, %v847
        %v849 = vsub.f32 1.5, %v848
        %v850 = vmul.f32 %v845, %v849
        %v851 = vmul.f32 %v837, %v850
        %vm852 = vcmp.eq.f32.partialorder %v837, inf
        %v853 = vsel %vm852, %v837, %v851
        %vm854 = vcmp.eq.f32.partialorder %v837, 0.0
        %v855 = vand.u32 %v837, 2147483648
        %v856 = vsel %vm854, %v855, %v853
        %v857 = vrsqrt.pop %v838
        %v858 = vmul.f32 %v857, %v838
        %v859 = vmul.f32 %v858, %v857
        %v860 = vmul.f32 0.5, %v859
        %v861 = vsub.f32 1.5, %v860
        %v862 = vmul.f32 %v857, %v861
        %v863 = vmul.f32 %v838, %v862
        %vm864 = vcmp.eq.f32.partialorder %v838, inf
        %v865 = vsel %vm864, %v838, %v863
        %vm866 = vcmp.eq.f32.partialorder %v838, 0.0
        %v867 = vand.u32 %v838, 2147483648
        %v868 = vsel %vm866, %v867, %v865
        %v869 = vrsqrt.pop %v839
        %v870 = vmul.f32 %v869, %v839
        %v871 = vmul.f32 %v870, %v869
        %v872 = vmul.f32 0.5, %v871
        %v873 = vsub.f32 1.5, %v872
        %v874 = vmul.f32 %v869, %v873
        %v875 = vmul.f32 %v839, %v874
        %vm876 = vcmp.eq.f32.partialorder %v839, inf
        %v877 = vsel %vm876, %v839, %v875
        %vm878 = vcmp.eq.f32.partialorder %v839, 0.0
        %v879 = vand.u32 %v839, 2147483648
        %v880 = vsel %vm878, %v879, %v877
        %v881 = vrsqrt.pop %v840
        %v882 = vmul.f32 %v881, %v840
        %v883 = vmul.f32 %v882, %v881
        %v884 = vmul.f32 0.5, %v883
        %v885 = vsub.f32 1.5, %v884
        %v886 = vmul.f32 %v881, %v885
        %v887 = vmul.f32 %v840, %v886
        %vm888 = vcmp.eq.f32.partialorder %v840, inf
        %v889 = vsel %vm888, %v840, %v887
        %vm890 = vcmp.eq.f32.partialorder %v840, 0.0
        %v891 = vand.u32 %v840, 2147483648
        %v892 = vsel %vm890, %v891, %v889
        %v893 = vrsqrt.pop %v841
        %v894 = vmul.f32 %v893, %v841
        %v895 = vmul.f32 %v894, %v893
        %v896 = vmul.f32 0.5, %v895
        %v897 = vsub.f32 1.5, %v896
        %v898 = vmul.f32 %v893, %v897
        %v899 = vmul.f32 %v841, %v898
        %vm900 = vcmp.eq.f32.partialorder %v841, inf
        %v901 = vsel %vm900, %v841, %v899
        %vm902 = vcmp.eq.f32.partialorder %v841, 0.0
        %v903 = vand.u32 %v841, 2147483648
        %v904 = vsel %vm902, %v903, %v901
        %v905 = vrsqrt.pop %v842
        %v906 = vmul.f32 %v905, %v842
        %v907 = vmul.f32 %v906, %v905
        %v908 = vmul.f32 0.5, %v907
        %v909 = vsub.f32 1.5, %v908
        %v910 = vmul.f32 %v905, %v909
        %v911 = vmul.f32 %v842, %v910
        %vm912 = vcmp.eq.f32.partialorder %v842, inf
        %v913 = vsel %vm912, %v842, %v911
        %vm914 = vcmp.eq.f32.partialorder %v842, 0.0
        %v915 = vand.u32 %v842, 2147483648
        %v916 = vsel %vm914, %v915, %v913
        %v917 = vrsqrt.pop %v843
        %v918 = vmul.f32 %v917, %v843
        %v919 = vmul.f32 %v918, %v917
        %v920 = vmul.f32 0.5, %v919
        %v921 = vsub.f32 1.5, %v920
        %v922 = vmul.f32 %v917, %v921
        %v923 = vmul.f32 %v843, %v922
        %vm924 = vcmp.eq.f32.partialorder %v843, inf
        %v925 = vsel %vm924, %v843, %v923
        %vm926 = vcmp.eq.f32.partialorder %v843, 0.0
        %v927 = vand.u32 %v843, 2147483648
        %v928 = vsel %vm926, %v927, %v925
        %v929 = vrsqrt.pop %v844
        %v930 = vmul.f32 %v929, %v844
        %v931 = vmul.f32 %v930, %v929
        %v932 = vmul.f32 0.5, %v931
        %v933 = vsub.f32 1.5, %v932
        %v934 = vmul.f32 %v929, %v933
        %v935 = vmul.f32 %v844, %v934
        %vm936 = vcmp.eq.f32.partialorder %v844, inf
        %v937 = vsel %vm936, %v844, %v935
        %vm938 = vcmp.eq.f32.partialorder %v844, 0.0
        %v939 = vand.u32 %v844, 2147483648
        %v940 = vsel %vm938, %v939, %v937
        %v941 = vld [vmem:[%s574] sm:$0xff]
        %v942 = vld [vmem:[%s574 + $0x8] sm:$0xff]
        %v943 = vld [vmem:[%s574 + $0x10] sm:$0xff]
        %v944 = vld [vmem:[%s574 + $0x18] sm:$0xff]
        %v945 = vld [vmem:[%s574 + $0x20] sm:$0xff]
        %v946 = vld [vmem:[%s574 + $0x28] sm:$0xff]
        %v947 = vld [vmem:[%s574 + $0x30] sm:$0xff]
        %v948 = vld [vmem:[%s574 + $0x38] sm:$0xff]
        %v949 = vld [vmem:[%s8] sm:$0xff]
        %v950 = vld [vmem:[%s8 + $0x8] sm:$0xff]
        %v951 = vld [vmem:[%s8 + $0x10] sm:$0xff]
        %v952 = vld [vmem:[%s8 + $0x18] sm:$0xff]
        %v953 = vld [vmem:[%s10] sm:$0x3]
        %vm954 = vcmask 15360
        %v956 = vsel %vm954, %v856, 0
        %v959 = vsel %vm954, %v868, 0
        %v962 = vsel %vm954, %v880, 0
        %v965 = vsel %vm954, %v892, 0
        %v968 = vsel %vm954, %v904, 0
        %v971 = vsel %vm954, %v916, 0
        %v974 = vsel %vm954, %v928, 0
        %v977 = vsel %vm954, %v940, 0
        %vm979 = vcmask 1041408
        %v981 = vsel %vm979, %v953, 0
        %983 = vmatpush.msra.mxu0 0.0
        %984 = vmatpush.msra.mxu0 0.0
        %985 = vmatpush.msra.mxu0 0.0
        %986 = vmatpush.msra.mxu0 0.0
        %987 = vmatpush.msra.mxu0 0.0
        %988 = vmatpush.msra.mxu0 0.0
        %989 = vmatpush.msra.mxu0 0.0
        %990 = vmatpush.msra.mxu0 0.0
        %991 = vmatpush.msra.mxu0 0.0
        %992 = vmatpush.msra.mxu0 0.0
        %993 = vmatpush.msra.mxu0 0.0
        %994 = vmatpush.msra.mxu0 0.0
        %995 = vmatpush.msra.mxu0 0.0
        %996 = vmatpush.msra.mxu0 0.0
        %997 = vmatpush.msra.mxu0 0.0
        %998 = vmatpush.msra.mxu0 %v981
        %999 = vmatmul.f32.gmra.mxu0 %v956
        %v1000 = vpop.f32.mrf.mxu0
        %v1001 = vadd.f32 0.0, %v1000
        %1002 = vmatmul.f32.gmra.mxu0 %v959
        %v1003 = vpop.f32.mrf.mxu0
        %v1004 = vadd.f32 0.0, %v1003
        %1005 = vmatmul.f32.gmra.mxu0 %v962
        %v1006 = vpop.f32.mrf.mxu0
        %v1007 = vadd.f32 0.0, %v1006
        %1008 = vmatmul.f32.gmra.mxu0 %v965
        %v1009 = vpop.f32.mrf.mxu0
        %v1010 = vadd.f32 0.0, %v1009
        %1011 = vmatmul.f32.gmra.mxu0 %v968
        %v1012 = vpop.f32.mrf.mxu0
        %v1013 = vadd.f32 0.0, %v1012
        %1014 = vmatmul.f32.gmra.mxu0 %v971
        %v1015 = vpop.f32.mrf.mxu0
        %v1016 = vadd.f32 0.0, %v1015
        %1017 = vmatmul.f32.gmra.mxu0 %v974
        %v1018 = vpop.f32.mrf.mxu0
        %v1019 = vadd.f32 0.0, %v1018
        %1020 = vmatmul.f32.gmra.mxu0 %v977
        %v1021 = vpop.f32.mrf.mxu0
        %v1022 = vadd.f32 0.0, %v1021
        %1023 = vdwg.mxu0
        %vm1024 = vcmask 261120
        %v1026 = vsel %vm1024, %v941, 0
        %v1029 = vsel %vm1024, %v942, 0
        %v1032 = vsel %vm1024, %v943, 0
        %v1035 = vsel %vm1024, %v944, 0
        %v1038 = vsel %vm1024, %v945, 0
        %v1041 = vsel %vm1024, %v946, 0
        %v1044 = vsel %vm1024, %v947, 0
        %v1047 = vsel %vm1024, %v948, 0
        %1049 = vmatpush.msra.mxu0 0.0
        %1050 = vmatpush.msra.mxu0 0.0
        %1051 = vmatpush.msra.mxu0 0.0
        %1052 = vmatpush.msra.mxu0 0.0
        %1053 = vmatpush.msra.mxu0 0.0
        %1054 = vmatpush.msra.mxu0 0.0
        %1055 = vmatpush.msra.mxu0 0.0
        %1056 = vmatpush.msra.mxu0 0.0
        %1057 = vmatpush.msra.mxu0 0.0
        %1058 = vmatpush.msra.mxu0 0.0
        %1059 = vmatpush.msra.mxu0 0.0
        %1060 = vmatpush.msra.mxu0 0.0
        %1061 = vmatpush.msra.mxu0 %v952
        %1062 = vmatpush.msra.mxu0 %v951
        %1063 = vmatpush.msra.mxu0 %v950
        %1064 = vmatpush.msra.mxu0 %v949
        %1065 = vmatmul.f32.gmra.mxu0 %v1026
        %v1066 = vpop.f32.mrf.mxu0
        %v1067 = vadd.f32 %v1001, %v1066
        %1068 = vmatmul.f32.gmra.mxu0 %v1029
        %v1069 = vpop.f32.mrf.mxu0
        %v1070 = vadd.f32 %v1004, %v1069
        %1071 = vmatmul.f32.gmra.mxu0 %v1032
        %v1072 = vpop.f32.mrf.mxu0
        %v1073 = vadd.f32 %v1007, %v1072
        %1074 = vmatmul.f32.gmra.mxu0 %v1035
        %v1075 = vpop.f32.mrf.mxu0
        %v1076 = vadd.f32 %v1010, %v1075
        %1077 = vmatmul.f32.gmra.mxu0 %v1038
        %v1078 = vpop.f32.mrf.mxu0
        %v1079 = vadd.f32 %v1013, %v1078
        %1080 = vmatmul.f32.gmra.mxu0 %v1041
        %v1081 = vpop.f32.mrf.mxu0
        %v1082 = vadd.f32 %v1016, %v1081
        %1083 = vmatmul.f32.gmra.mxu0 %v1044
        %v1084 = vpop.f32.mrf.mxu0
        %v1085 = vadd.f32 %v1019, %v1084
        %1086 = vmatmul.f32.gmra.mxu0 %v1047
        %v1087 = vpop.f32.mrf.mxu0
        %v1088 = vadd.f32 %v1022, %v1087
        %1089 = vdwg.mxu0
        %v1090 = vld [vmem:[%s9] sm:$0x1]
        %v1092 = vperm.slane %v1090, 0
        %v1094 = vadd.f32 %v1067, %v1092
        %v1095 = vadd.f32 %v1070, %v1092
        %v1096 = vadd.f32 %v1073, %v1092
        %v1097 = vadd.f32 %v1076, %v1092
        %v1098 = vadd.f32 %v1079, %v1092
        %v1099 = vadd.f32 %v1082, %v1092
        %v1100 = vadd.f32 %v1085, %v1092
        %v1101 = vadd.f32 %v1088, %v1092
        %v1103 = vrot.slane %v743, 1
        %v1104 = vrot.slane %v743, 2
        %v1105 = vrot.slane %v743, 3
        %v1106 = vrot.slane %v743, 4
        %v1107 = vrot.slane %v743, 5
        %v1108 = vrot.slane %v743, 6
        %v1109 = vrot.slane %v743, 7
        %v1110 = vperm.slane %v743, 0
        %v1111 = vperm.slane %v1103, 0
        %v1112 = vperm.slane %v1104, 0
        %v1113 = vperm.slane %v1105, 0
        %v1114 = vperm.slane %v1106, 0
        %v1115 = vperm.slane %v1107, 0
        %v1116 = vperm.slane %v1108, 0
        %v1117 = vperm.slane %v1109, 0
        %1118 = vrot.lane.b32.xlu0 %v1110, 96
        %v1119 = vpop.permute.xlu0 %1118
        %1120 = vrot.lane.b32.xlu0 %v1111, 96
        %v1121 = vpop.permute.xlu0 %1120
        %1122 = vrot.lane.b32.xlu0 %v1112, 96
        %v1123 = vpop.permute.xlu0 %1122
        %1124 = vrot.lane.b32.xlu0 %v1113, 96
        %v1125 = vpop.permute.xlu0 %1124
        %1126 = vrot.lane.b32.xlu0 %v1114, 96
        %v1127 = vpop.permute.xlu0 %1126
        %1128 = vrot.lane.b32.xlu0 %v1115, 96
        %v1129 = vpop.permute.xlu0 %1128
        %1130 = vrot.lane.b32.xlu0 %v1116, 96
        %v1131 = vpop.permute.xlu0 %1130
        %1132 = vrot.lane.b32.xlu0 %v1117, 96
        %v1133 = vpop.permute.xlu0 %1132
        %v1142 = vadd.f32 %v742, %v1119
        %v1143 = vadd.f32 %v742, %v1121
        %v1144 = vadd.f32 %v742, %v1123
        %v1145 = vadd.f32 %v742, %v1125
        %v1146 = vadd.f32 %v742, %v1127
        %v1147 = vadd.f32 %v742, %v1129
        %v1148 = vadd.f32 %v742, %v1131
        %v1149 = vadd.f32 %v742, %v1133
        %v1150 = vadd.f32 %v1142, %v1094
        %v1151 = vadd.f32 %v1143, %v1095
        %v1152 = vadd.f32 %v1144, %v1096
        %v1153 = vadd.f32 %v1145, %v1097
        %v1154 = vadd.f32 %v1146, %v1098
        %v1155 = vadd.f32 %v1147, %v1099
        %v1156 = vadd.f32 %v1148, %v1100
        %v1157 = vadd.f32 %v1149, %v1101
        %v1158 = vxor.u32 %v1150, 2147483648
        %v1159 = vxor.u32 %v1151, 2147483648
        %v1160 = vxor.u32 %v1152, 2147483648
        %v1161 = vxor.u32 %v1153, 2147483648
        %v1162 = vxor.u32 %v1154, 2147483648
        %v1163 = vxor.u32 %v1155, 2147483648
        %v1164 = vxor.u32 %v1156, 2147483648
        %v1165 = vxor.u32 %v1157, 2147483648
        %v1166 = vmul.f32 %v1158, 1.442695
        %v1167 = vpow.pop %v1166
        %v1168 = vmul.f32 %v1159, 1.442695
        %v1169 = vpow.pop %v1168
        %v1170 = vmul.f32 %v1160, 1.442695
        %v1171 = vpow.pop %v1170
        %v1172 = vmul.f32 %v1161, 1.442695
        %v1173 = vpow.pop %v1172
        %v1174 = vmul.f32 %v1162, 1.442695
        %v1175 = vpow.pop %v1174
        %v1176 = vmul.f32 %v1163, 1.442695
        %v1177 = vpow.pop %v1176
        %v1178 = vmul.f32 %v1164, 1.442695
        %v1179 = vpow.pop %v1178
        %v1180 = vmul.f32 %v1165, 1.442695
        %v1181 = vpow.pop %v1180
        %v1182 = vadd.f32 %v1167, 1.0
        %v1183 = vadd.f32 %v1169, 1.0
        %v1184 = vadd.f32 %v1171, 1.0
        %v1185 = vadd.f32 %v1173, 1.0
        %v1186 = vadd.f32 %v1175, 1.0
        %v1187 = vadd.f32 %v1177, 1.0
        %v1188 = vadd.f32 %v1179, 1.0
        %v1189 = vadd.f32 %v1181, 1.0
        %v1190 = vrcp.pop %v1182
        %v1191 = vmul.f32 %v1182, %v1190
        %v1192 = vsub.f32 1.0, %v1191
        %v1193 = vmul.f32 %v1190, %v1192
        %v1194 = vadd.f32 %v1190, %v1193
        %vm1195 = vweird.f32 %v1182
        %vm1196 = vweird.f32 %v1190
        %vm1197 = vmor %vm1195, %vm1196
        %v1198 = vsel %vm1197, %v1190, %v1194
        %v1199 = vand.u32 2147483647, %v1182
        %vm1200 = vcmp.eq.f32.partialorder %v1199, 8.507059e+37
        %v1201 = vand.u32 %v1182, 2147483648
        %v1202 = vor.u32 1.1754944e-38, %v1201
        %v1203 = vsel %vm1200, %v1202, %v1198
        %v1204 = vmul.f32 1.0, %v1203
        %v1205 = vrcp.pop %v1183
        %v1206 = vmul.f32 %v1183, %v1205
        %v1207 = vsub.f32 1.0, %v1206
        %v1208 = vmul.f32 %v1205, %v1207
        %v1209 = vadd.f32 %v1205, %v1208
        %vm1210 = vweird.f32 %v1183
        %vm1211 = vweird.f32 %v1205
        %vm1212 = vmor %vm1210, %vm1211
        %v1213 = vsel %vm1212, %v1205, %v1209
        %v1214 = vand.u32 2147483647, %v1183
        %vm1215 = vcmp.eq.f32.partialorder %v1214, 8.507059e+37
        %v1216 = vand.u32 %v1183, 2147483648
        %v1217 = vor.u32 1.1754944e-38, %v1216
        %v1218 = vsel %vm1215, %v1217, %v1213
        %v1219 = vmul.f32 1.0, %v1218
        %v1220 = vrcp.pop %v1184
        %v1221 = vmul.f32 %v1184, %v1220
        %v1222 = vsub.f32 1.0, %v1221
        %v1223 = vmul.f32 %v1220, %v1222
        %v1224 = vadd.f32 %v1220, %v1223
        %vm1225 = vweird.f32 %v1184
        %vm1226 = vweird.f32 %v1220
        %vm1227 = vmor %vm1225, %vm1226
        %v1228 = vsel %vm1227, %v1220, %v1224
        %v1229 = vand.u32 2147483647, %v1184
        %vm1230 = vcmp.eq.f32.partialorder %v1229, 8.507059e+37
        %v1231 = vand.u32 %v1184, 2147483648
        %v1232 = vor.u32 1.1754944e-38, %v1231
        %v1233 = vsel %vm1230, %v1232, %v1228
        %v1234 = vmul.f32 1.0, %v1233
        %v1235 = vrcp.pop %v1185
        %v1236 = vmul.f32 %v1185, %v1235
        %v1237 = vsub.f32 1.0, %v1236
        %v1238 = vmul.f32 %v1235, %v1237
        %v1239 = vadd.f32 %v1235, %v1238
        %vm1240 = vweird.f32 %v1185
        %vm1241 = vweird.f32 %v1235
        %vm1242 = vmor %vm1240, %vm1241
        %v1243 = vsel %vm1242, %v1235, %v1239
        %v1244 = vand.u32 2147483647, %v1185
        %vm1245 = vcmp.eq.f32.partialorder %v1244, 8.507059e+37
        %v1246 = vand.u32 %v1185, 2147483648
        %v1247 = vor.u32 1.1754944e-38, %v1246
        %v1248 = vsel %vm1245, %v1247, %v1243
        %v1249 = vmul.f32 1.0, %v1248
        %v1250 = vrcp.pop %v1186
        %v1251 = vmul.f32 %v1186, %v1250
        %v1252 = vsub.f32 1.0, %v1251
        %v1253 = vmul.f32 %v1250, %v1252
        %v1254 = vadd.f32 %v1250, %v1253
        %vm1255 = vweird.f32 %v1186
        %vm1256 = vweird.f32 %v1250
        %vm1257 = vmor %vm1255, %vm1256
        %v1258 = vsel %vm1257, %v1250, %v1254
        %v1259 = vand.u32 2147483647, %v1186
        %vm1260 = vcmp.eq.f32.partialorder %v1259, 8.507059e+37
        %v1261 = vand.u32 %v1186, 2147483648
        %v1262 = vor.u32 1.1754944e-38, %v1261
        %v1263 = vsel %vm1260, %v1262, %v1258
        %v1264 = vmul.f32 1.0, %v1263
        %v1265 = vrcp.pop %v1187
        %v1266 = vmul.f32 %v1187, %v1265
        %v1267 = vsub.f32 1.0, %v1266
        %v1268 = vmul.f32 %v1265, %v1267
        %v1269 = vadd.f32 %v1265, %v1268
        %vm1270 = vweird.f32 %v1187
        %vm1271 = vweird.f32 %v1265
        %vm1272 = vmor %vm1270, %vm1271
        %v1273 = vsel %vm1272, %v1265, %v1269
        %v1274 = vand.u32 2147483647, %v1187
        %vm1275 = vcmp.eq.f32.partialorder %v1274, 8.507059e+37
        %v1276 = vand.u32 %v1187, 2147483648
        %v1277 = vor.u32 1.1754944e-38, %v1276
        %v1278 = vsel %vm1275, %v1277, %v1273
        %v1279 = vmul.f32 1.0, %v1278
        %v1280 = vrcp.pop %v1188
        %v1281 = vmul.f32 %v1188, %v1280
        %v1282 = vsub.f32 1.0, %v1281
        %v1283 = vmul.f32 %v1280, %v1282
        %v1284 = vadd.f32 %v1280, %v1283
        %vm1285 = vweird.f32 %v1188
        %vm1286 = vweird.f32 %v1280
        %vm1287 = vmor %vm1285, %vm1286
        %v1288 = vsel %vm1287, %v1280, %v1284
        %v1289 = vand.u32 2147483647, %v1188
        %vm1290 = vcmp.eq.f32.partialorder %v1289, 8.507059e+37
        %v1291 = vand.u32 %v1188, 2147483648
        %v1292 = vor.u32 1.1754944e-38, %v1291
        %v1293 = vsel %vm1290, %v1292, %v1288
        %v1294 = vmul.f32 1.0, %v1293
        %v1295 = vrcp.pop %v1189
        %v1296 = vmul.f32 %v1189, %v1295
        %v1297 = vsub.f32 1.0, %v1296
        %v1298 = vmul.f32 %v1295, %v1297
        %v1299 = vadd.f32 %v1295, %v1298
        %vm1300 = vweird.f32 %v1189
        %vm1301 = vweird.f32 %v1295
        %vm1302 = vmor %vm1300, %vm1301
        %v1303 = vsel %vm1302, %v1295, %v1299
        %v1304 = vand.u32 2147483647, %v1189
        %vm1305 = vcmp.eq.f32.partialorder %v1304, 8.507059e+37
        %v1306 = vand.u32 %v1189, 2147483648
        %v1307 = vor.u32 1.1754944e-38, %v1306
        %v1308 = vsel %vm1305, %v1307, %v1303
        %v1309 = vmul.f32 1.0, %v1308
        %v1310 = vperm.slane %v744, 0
        %v1311 = vlaneseq
        %v1312 = vshrl.u32 %v1311, 7
        %1314 = vset.pattern.permute.xlu0 %v1312
        %1315 = vperm.xlu0 %1314, %v1310
        %v1316 = vpop.permute.xlu0 %1315
        %v1317 = vperm.slane %v744, 1
        %v1318 = vlaneseq
        %v1319 = vshrl.u32 %v1318, 7
        %1321 = vset.pattern.permute.xlu0 %v1319
        %1322 = vperm.xlu0 %1321, %v1317
        %v1323 = vpop.permute.xlu0 %1322
        %v1324 = vperm.slane %v744, 2
        %v1325 = vlaneseq
        %v1326 = vshrl.u32 %v1325, 7
        %1328 = vset.pattern.permute.xlu0 %v1326
        %1329 = vperm.xlu0 %1328, %v1324
        %v1330 = vpop.permute.xlu0 %1329
        %v1331 = vperm.slane %v744, 3
        %v1332 = vlaneseq
        %v1333 = vshrl.u32 %v1332, 7
        %1335 = vset.pattern.permute.xlu0 %v1333
        %1336 = vperm.xlu0 %1335, %v1331
        %v1337 = vpop.permute.xlu0 %1336
        %v1338 = vperm.slane %v744, 4
        %v1339 = vlaneseq
        %v1340 = vshrl.u32 %v1339, 7
        %1342 = vset.pattern.permute.xlu0 %v1340
        %1343 = vperm.xlu0 %1342, %v1338
        %v1344 = vpop.permute.xlu0 %1343
        %v1345 = vperm.slane %v744, 5
        %v1346 = vlaneseq
        %v1347 = vshrl.u32 %v1346, 7
        %1349 = vset.pattern.permute.xlu0 %v1347
        %1350 = vperm.xlu0 %1349, %v1345
        %v1351 = vpop.permute.xlu0 %1350
        %v1352 = vperm.slane %v744, 6
        %v1353 = vlaneseq
        %v1354 = vshrl.u32 %v1353, 7
        %1356 = vset.pattern.permute.xlu0 %v1354
        %1357 = vperm.xlu0 %1356, %v1352
        %v1358 = vpop.permute.xlu0 %1357
        %v1359 = vperm.slane %v744, 7
        %v1360 = vlaneseq
        %v1361 = vshrl.u32 %v1360, 7
        %1363 = vset.pattern.permute.xlu0 %v1361
        %1364 = vperm.xlu0 %1363, %v1359
        %v1365 = vpop.permute.xlu0 %1364
        %v1366 = vmul.f32 %v1316, %v1204
        %v1367 = vmul.f32 %v1323, %v1219
        %v1368 = vmul.f32 %v1330, %v1234
        %v1369 = vmul.f32 %v1337, %v1249
        %v1370 = vmul.f32 %v1344, %v1264
        %v1371 = vmul.f32 %v1351, %v1279
        %v1372 = vmul.f32 %v1358, %v1294
        %v1373 = vmul.f32 %v1365, %v1309
        %1375 = vrot.lane.b32.xlu0 %v742, 96
        %v1376 = vpop.permute.xlu0 %1375
        %v1378 = vmul.f32 %v1366, %v1376
        %v1379 = vmul.f32 %v1367, %v1376
        %v1380 = vmul.f32 %v1368, %v1376
        %v1381 = vmul.f32 %v1369, %v1376
        %v1382 = vmul.f32 %v1370, %v1376
        %v1383 = vmul.f32 %v1371, %v1376
        %v1384 = vmul.f32 %v1372, %v1376
        %v1385 = vmul.f32 %v1373, %v1376
        %v1386 = vsel %vm1024, %v1378, 0.0
        %v1387 = vrot.slane %v1386, 4
        %v1388 = vadd.f32 %v1386, %v1387
        %v1389 = vrot.slane %v1388, 2
        %v1390 = vadd.f32 %v1388, %v1389
        %v1391 = vrot.slane %v1390, 1
        %v1392 = vadd.f32 %v1390, %v1391
        %v1393 = vsel %vm1024, %v1379, 0.0
        %v1394 = vrot.slane %v1393, 4
        %v1395 = vadd.f32 %v1393, %v1394
        %v1396 = vrot.slane %v1395, 2
        %v1397 = vadd.f32 %v1395, %v1396
        %v1398 = vrot.slane %v1397, 1
        %v1399 = vadd.f32 %v1397, %v1398
        %v1400 = vsel %vm1024, %v1380, 0.0
        %v1401 = vrot.slane %v1400, 4
        %v1402 = vadd.f32 %v1400, %v1401
        %v1403 = vrot.slane %v1402, 2
        %v1404 = vadd.f32 %v1402, %v1403
        %v1405 = vrot.slane %v1404, 1
        %v1406 = vadd.f32 %v1404, %v1405
        %v1407 = vsel %vm1024, %v1381, 0.0
        %v1408 = vrot.slane %v1407, 4
        %v1409 = vadd.f32 %v1407, %v1408
        %v1410 = vrot.slane %v1409, 2
        %v1411 = vadd.f32 %v1409, %v1410
        %v1412 = vrot.slane %v1411, 1
        %v1413 = vadd.f32 %v1411, %v1412
        %v1414 = vsel %vm1024, %v1382, 0.0
        %v1415 = vrot.slane %v1414, 4
        %v1416 = vadd.f32 %v1414, %v1415
        %v1417 = vrot.slane %v1416, 2
        %v1418 = vadd.f32 %v1416, %v1417
        %v1419 = vrot.slane %v1418, 1
        %v1420 = vadd.f32 %v1418, %v1419
        %v1421 = vsel %vm1024, %v1383, 0.0
        %v1422 = vrot.slane %v1421, 4
        %v1423 = vadd.f32 %v1421, %v1422
        %v1424 = vrot.slane %v1423, 2
        %v1425 = vadd.f32 %v1423, %v1424
        %v1426 = vrot.slane %v1425, 1
        %v1427 = vadd.f32 %v1425, %v1426
        %v1428 = vsel %vm1024, %v1384, 0.0
        %v1429 = vrot.slane %v1428, 4
        %v1430 = vadd.f32 %v1428, %v1429
        %v1431 = vrot.slane %v1430, 2
        %v1432 = vadd.f32 %v1430, %v1431
        %v1433 = vrot.slane %v1432, 1
        %v1434 = vadd.f32 %v1432, %v1433
        %v1435 = vsel %vm1024, %v1385, 0.0
        %v1436 = vrot.slane %v1435, 4
        %v1437 = vadd.f32 %v1435, %v1436
        %v1438 = vrot.slane %v1437, 2
        %v1439 = vadd.f32 %v1437, %v1438
        %v1440 = vrot.slane %v1439, 1
        %v1441 = vadd.f32 %v1439, %v1440
        %vm1450 = vcmask 1041409
        %v1451 = vsel %vm1450, %v1399, %v1392
        %vm1452 = vcmask 1042434
        %v1453 = vsel %vm1452, %v1406, %v1451
        %vm1454 = vcmask 1043459
        %v1455 = vsel %vm1454, %v1413, %v1453
        %vm1456 = vcmask 1044484
        %v1457 = vsel %vm1456, %v1420, %v1455
        %vm1458 = vcmask 1045509
        %v1459 = vsel %vm1458, %v1427, %v1457
        %vm1460 = vcmask 1046534
        %v1461 = vsel %vm1460, %v1434, %v1459
        %vm1462 = vcmask 1047559
        %v1463 = vsel %vm1462, %v1441, %v1461
        %v1465 = vadd.f32 %v743, %v1463
        %1466 = vst.msk [vmem:[%s726] sm:$0xff] %vm1024, %v1465
        %v1467 = vld [vmem:[%s11] sm:$0xff]
        %v1468 = vld [vmem:[%s11 + $0x8] sm:$0xff]
        %v1469 = vld [vmem:[%s11 + $0x10] sm:$0xff]
        %v1470 = vld [vmem:[%s11 + $0x18] sm:$0xff]
        %v1471 = vld [vmem:[%s12] sm:$0x1]
        %v1473 = vperm.slane %v1471, 0
        %v1476 = vsel %vm1024, %v1150, 0
        %v1479 = vsel %vm1024, %v1151, 0
        %v1482 = vsel %vm1024, %v1152, 0
        %v1485 = vsel %vm1024, %v1153, 0
        %v1488 = vsel %vm1024, %v1154, 0
        %v1491 = vsel %vm1024, %v1155, 0
        %v1494 = vsel %vm1024, %v1156, 0
        %v1497 = vsel %vm1024, %v1157, 0
        %1499 = vmatpush.msra.mxu0 0.0
        %1500 = vmatpush.msra.mxu0 0.0
        %1501 = vmatpush.msra.mxu0 0.0
        %1502 = vmatpush.msra.mxu0 0.0
        %1503 = vmatpush.msra.mxu0 0.0
        %1504 = vmatpush.msra.mxu0 0.0
        %1505 = vmatpush.msra.mxu0 0.0
        %1506 = vmatpush.msra.mxu0 0.0
        %1507 = vmatpush.msra.mxu0 0.0
        %1508 = vmatpush.msra.mxu0 0.0
        %1509 = vmatpush.msra.mxu0 0.0
        %1510 = vmatpush.msra.mxu0 0.0
        %1511 = vmatpush.msra.mxu0 %v1470
        %1512 = vmatpush.msra.mxu0 %v1469
        %1513 = vmatpush.msra.mxu0 %v1468
        %1514 = vmatpush.msra.mxu0 %v1467
        %1515 = vmatmul.f32.gmra.mxu0 %v1476
        %v1516 = vpop.f32.mrf.mxu0
        %v1517 = vadd.f32 %v1473, %v1516
        %1518 = vmatmul.f32.gmra.mxu0 %v1479
        %v1519 = vpop.f32.mrf.mxu0
        %v1520 = vadd.f32 %v1473, %v1519
        %1521 = vmatmul.f32.gmra.mxu0 %v1482
        %v1522 = vpop.f32.mrf.mxu0
        %v1523 = vadd.f32 %v1473, %v1522
        %1524 = vmatmul.f32.gmra.mxu0 %v1485
        %v1525 = vpop.f32.mrf.mxu0
        %v1526 = vadd.f32 %v1473, %v1525
        %1527 = vmatmul.f32.gmra.mxu0 %v1488
        %v1528 = vpop.f32.mrf.mxu0
        %v1529 = vadd.f32 %v1473, %v1528
        %1530 = vmatmul.f32.gmra.mxu0 %v1491
        %v1531 = vpop.f32.mrf.mxu0
        %v1532 = vadd.f32 %v1473, %v1531
        %1533 = vmatmul.f32.gmra.mxu0 %v1494
        %v1534 = vpop.f32.mrf.mxu0
        %v1535 = vadd.f32 %v1473, %v1534
        %1536 = vmatmul.f32.gmra.mxu0 %v1497
        %v1537 = vpop.f32.mrf.mxu0
        %v1538 = vadd.f32 %v1473, %v1537
        %1539 = vdwg.mxu0
        %v1540 = vxor.u32 %v1517, 2147483648
        %v1541 = vxor.u32 %v1520, 2147483648
        %v1542 = vxor.u32 %v1523, 2147483648
        %v1543 = vxor.u32 %v1526, 2147483648
        %v1544 = vxor.u32 %v1529, 2147483648
        %v1545 = vxor.u32 %v1532, 2147483648
        %v1546 = vxor.u32 %v1535, 2147483648
        %v1547 = vxor.u32 %v1538, 2147483648
        %v1548 = vmul.f32 %v1540, 1.442695
        %v1549 = vpow.pop %v1548
        %v1550 = vmul.f32 %v1541, 1.442695
        %v1551 = vpow.pop %v1550
        %v1552 = vmul.f32 %v1542, 1.442695
        %v1553 = vpow.pop %v1552
        %v1554 = vmul.f32 %v1543, 1.442695
        %v1555 = vpow.pop %v1554
        %v1556 = vmul.f32 %v1544, 1.442695
        %v1557 = vpow.pop %v1556
        %v1558 = vmul.f32 %v1545, 1.442695
        %v1559 = vpow.pop %v1558
        %v1560 = vmul.f32 %v1546, 1.442695
        %v1561 = vpow.pop %v1560
        %v1562 = vmul.f32 %v1547, 1.442695
        %v1563 = vpow.pop %v1562
        %v1564 = vadd.f32 %v1549, 1.0
        %v1565 = vadd.f32 %v1551, 1.0
        %v1566 = vadd.f32 %v1553, 1.0
        %v1567 = vadd.f32 %v1555, 1.0
        %v1568 = vadd.f32 %v1557, 1.0
        %v1569 = vadd.f32 %v1559, 1.0
        %v1570 = vadd.f32 %v1561, 1.0
        %v1571 = vadd.f32 %v1563, 1.0
        %v1572 = vrcp.pop %v1564
        %v1573 = vmul.f32 %v1564, %v1572
        %v1574 = vsub.f32 1.0, %v1573
        %v1575 = vmul.f32 %v1572, %v1574
        %v1576 = vadd.f32 %v1572, %v1575
        %vm1577 = vweird.f32 %v1564
        %vm1578 = vweird.f32 %v1572
        %vm1579 = vmor %vm1577, %vm1578
        %v1580 = vsel %vm1579, %v1572, %v1576
        %v1581 = vand.u32 2147483647, %v1564
        %vm1582 = vcmp.eq.f32.partialorder %v1581, 8.507059e+37
        %v1583 = vand.u32 %v1564, 2147483648
        %v1584 = vor.u32 1.1754944e-38, %v1583
        %v1585 = vsel %vm1582, %v1584, %v1580
        %v1586 = vmul.f32 1.0, %v1585
        %v1587 = vrcp.pop %v1565
        %v1588 = vmul.f32 %v1565, %v1587
        %v1589 = vsub.f32 1.0, %v1588
        %v1590 = vmul.f32 %v1587, %v1589
        %v1591 = vadd.f32 %v1587, %v1590
        %vm1592 = vweird.f32 %v1565
        %vm1593 = vweird.f32 %v1587
        %vm1594 = vmor %vm1592, %vm1593
        %v1595 = vsel %vm1594, %v1587, %v1591
        %v1596 = vand.u32 2147483647, %v1565
        %vm1597 = vcmp.eq.f32.partialorder %v1596, 8.507059e+37
        %v1598 = vand.u32 %v1565, 2147483648
        %v1599 = vor.u32 1.1754944e-38, %v1598
        %v1600 = vsel %vm1597, %v1599, %v1595
        %v1601 = vmul.f32 1.0, %v1600
        %v1602 = vrcp.pop %v1566
        %v1603 = vmul.f32 %v1566, %v1602
        %v1604 = vsub.f32 1.0, %v1603
        %v1605 = vmul.f32 %v1602, %v1604
        %v1606 = vadd.f32 %v1602, %v1605
        %vm1607 = vweird.f32 %v1566
        %vm1608 = vweird.f32 %v1602
        %vm1609 = vmor %vm1607, %vm1608
        %v1610 = vsel %vm1609, %v1602, %v1606
        %v1611 = vand.u32 2147483647, %v1566
        %vm1612 = vcmp.eq.f32.partialorder %v1611, 8.507059e+37
        %v1613 = vand.u32 %v1566, 2147483648
        %v1614 = vor.u32 1.1754944e-38, %v1613
        %v1615 = vsel %vm1612, %v1614, %v1610
        %v1616 = vmul.f32 1.0, %v1615
        %v1617 = vrcp.pop %v1567
        %v1618 = vmul.f32 %v1567, %v1617
        %v1619 = vsub.f32 1.0, %v1618
        %v1620 = vmul.f32 %v1617, %v1619
        %v1621 = vadd.f32 %v1617, %v1620
        %vm1622 = vweird.f32 %v1567
        %vm1623 = vweird.f32 %v1617
        %vm1624 = vmor %vm1622, %vm1623
        %v1625 = vsel %vm1624, %v1617, %v1621
        %v1626 = vand.u32 2147483647, %v1567
        %vm1627 = vcmp.eq.f32.partialorder %v1626, 8.507059e+37
        %v1628 = vand.u32 %v1567, 2147483648
        %v1629 = vor.u32 1.1754944e-38, %v1628
        %v1630 = vsel %vm1627, %v1629, %v1625
        %v1631 = vmul.f32 1.0, %v1630
        %v1632 = vrcp.pop %v1568
        %v1633 = vmul.f32 %v1568, %v1632
        %v1634 = vsub.f32 1.0, %v1633
        %v1635 = vmul.f32 %v1632, %v1634
        %v1636 = vadd.f32 %v1632, %v1635
        %vm1637 = vweird.f32 %v1568
        %vm1638 = vweird.f32 %v1632
        %vm1639 = vmor %vm1637, %vm1638
        %v1640 = vsel %vm1639, %v1632, %v1636
        %v1641 = vand.u32 2147483647, %v1568
        %vm1642 = vcmp.eq.f32.partialorder %v1641, 8.507059e+37
        %v1643 = vand.u32 %v1568, 2147483648
        %v1644 = vor.u32 1.1754944e-38, %v1643
        %v1645 = vsel %vm1642, %v1644, %v1640
        %v1646 = vmul.f32 1.0, %v1645
        %v1647 = vrcp.pop %v1569
        %v1648 = vmul.f32 %v1569, %v1647
        %v1649 = vsub.f32 1.0, %v1648
        %v1650 = vmul.f32 %v1647, %v1649
        %v1651 = vadd.f32 %v1647, %v1650
        %vm1652 = vweird.f32 %v1569
        %vm1653 = vweird.f32 %v1647
        %vm1654 = vmor %vm1652, %vm1653
        %v1655 = vsel %vm1654, %v1647, %v1651
        %v1656 = vand.u32 2147483647, %v1569
        %vm1657 = vcmp.eq.f32.partialorder %v1656, 8.507059e+37
        %v1658 = vand.u32 %v1569, 2147483648
        %v1659 = vor.u32 1.1754944e-38, %v1658
        %v1660 = vsel %vm1657, %v1659, %v1655
        %v1661 = vmul.f32 1.0, %v1660
        %v1662 = vrcp.pop %v1570
        %v1663 = vmul.f32 %v1570, %v1662
        %v1664 = vsub.f32 1.0, %v1663
        %v1665 = vmul.f32 %v1662, %v1664
        %v1666 = vadd.f32 %v1662, %v1665
        %vm1667 = vweird.f32 %v1570
        %vm1668 = vweird.f32 %v1662
        %vm1669 = vmor %vm1667, %vm1668
        %v1670 = vsel %vm1669, %v1662, %v1666
        %v1671 = vand.u32 2147483647, %v1570
        %vm1672 = vcmp.eq.f32.partialorder %v1671, 8.507059e+37
        %v1673 = vand.u32 %v1570, 2147483648
        %v1674 = vor.u32 1.1754944e-38, %v1673
        %v1675 = vsel %vm1672, %v1674, %v1670
        %v1676 = vmul.f32 1.0, %v1675
        %v1677 = vrcp.pop %v1571
        %v1678 = vmul.f32 %v1571, %v1677
        %v1679 = vsub.f32 1.0, %v1678
        %v1680 = vmul.f32 %v1677, %v1679
        %v1681 = vadd.f32 %v1677, %v1680
        %vm1682 = vweird.f32 %v1571
        %vm1683 = vweird.f32 %v1677
        %vm1684 = vmor %vm1682, %vm1683
        %v1685 = vsel %vm1684, %v1677, %v1681
        %v1686 = vand.u32 2147483647, %v1571
        %vm1687 = vcmp.eq.f32.partialorder %v1686, 8.507059e+37
        %v1688 = vand.u32 %v1571, 2147483648
        %v1689 = vor.u32 1.1754944e-38, %v1688
        %v1690 = vsel %vm1687, %v1689, %v1685
        %v1691 = vmul.f32 1.0, %v1690
        %v1692 = vmul.f32 %v1586, %v1316
        %v1693 = vmul.f32 %v1601, %v1323
        %v1694 = vmul.f32 %v1616, %v1330
        %v1695 = vmul.f32 %v1631, %v1337
        %v1696 = vmul.f32 %v1646, %v1344
        %v1697 = vmul.f32 %v1661, %v1351
        %v1698 = vmul.f32 %v1676, %v1358
        %v1699 = vmul.f32 %v1691, %v1365
        %v1700 = vsub.f32 0.0, %v773
        %v1701 = vsub.f32 0.0, %v774
        %v1702 = vsub.f32 0.0, %v775
        %v1703 = vsub.f32 0.0, %v776
        %v1704 = vsub.f32 0.0, %v777
        %v1705 = vsub.f32 0.0, %v778
        %v1706 = vsub.f32 0.0, %v779
        %v1707 = vsub.f32 0.0, %v780
        %v1708 = vmul.f32 %v1692, %v1700
        %v1709 = vmul.f32 %v1693, %v1701
        %v1710 = vmul.f32 %v1694, %v1702
        %v1711 = vmul.f32 %v1695, %v1703
        %v1712 = vmul.f32 %v1696, %v1704
        %v1713 = vmul.f32 %v1697, %v1705
        %v1714 = vmul.f32 %v1698, %v1706
        %v1715 = vmul.f32 %v1699, %v1707
        %v1716 = vsel %vm954, %v1708, 0.0
        %v1717 = vrot.slane %v1716, 4
        %v1718 = vadd.f32 %v1716, %v1717
        %v1719 = vrot.slane %v1718, 2
        %v1720 = vadd.f32 %v1718, %v1719
        %v1721 = vrot.slane %v1720, 1
        %v1722 = vadd.f32 %v1720, %v1721
        %v1723 = vsel %vm954, %v1709, 0.0
        %v1724 = vrot.slane %v1723, 4
        %v1725 = vadd.f32 %v1723, %v1724
        %v1726 = vrot.slane %v1725, 2
        %v1727 = vadd.f32 %v1725, %v1726
        %v1728 = vrot.slane %v1727, 1
        %v1729 = vadd.f32 %v1727, %v1728
        %v1730 = vsel %vm954, %v1710, 0.0
        %v1731 = vrot.slane %v1730, 4
        %v1732 = vadd.f32 %v1730, %v1731
        %v1733 = vrot.slane %v1732, 2
        %v1734 = vadd.f32 %v1732, %v1733
        %v1735 = vrot.slane %v1734, 1
        %v1736 = vadd.f32 %v1734, %v1735
        %v1737 = vsel %vm954, %v1711, 0.0
        %v1738 = vrot.slane %v1737, 4
        %v1739 = vadd.f32 %v1737, %v1738
        %v1740 = vrot.slane %v1739, 2
        %v1741 = vadd.f32 %v1739, %v1740
        %v1742 = vrot.slane %v1741, 1
        %v1743 = vadd.f32 %v1741, %v1742
        %v1744 = vsel %vm954, %v1712, 0.0
        %v1745 = vrot.slane %v1744, 4
        %v1746 = vadd.f32 %v1744, %v1745
        %v1747 = vrot.slane %v1746, 2
        %v1748 = vadd.f32 %v1746, %v1747
        %v1749 = vrot.slane %v1748, 1
        %v1750 = vadd.f32 %v1748, %v1749
        %v1751 = vsel %vm954, %v1713, 0.0
        %v1752 = vrot.slane %v1751, 4
        %v1753 = vadd.f32 %v1751, %v1752
        %v1754 = vrot.slane %v1753, 2
        %v1755 = vadd.f32 %v1753, %v1754
        %v1756 = vrot.slane %v1755, 1
        %v1757 = vadd.f32 %v1755, %v1756
        %v1758 = vsel %vm954, %v1714, 0.0
        %v1759 = vrot.slane %v1758, 4
        %v1760 = vadd.f32 %v1758, %v1759
        %v1761 = vrot.slane %v1760, 2
        %v1762 = vadd.f32 %v1760, %v1761
        %v1763 = vrot.slane %v1762, 1
        %v1764 = vadd.f32 %v1762, %v1763
        %v1765 = vsel %vm954, %v1715, 0.0
        %v1766 = vrot.slane %v1765, 4
        %v1767 = vadd.f32 %v1765, %v1766
        %v1768 = vrot.slane %v1767, 2
        %v1769 = vadd.f32 %v1767, %v1768
        %v1770 = vrot.slane %v1769, 1
        %v1771 = vadd.f32 %v1769, %v1770
        %v1780 = vsel %vm1450, %v1729, %v1722
        %v1781 = vsel %vm1452, %v1736, %v1780
        %v1782 = vsel %vm1454, %v1743, %v1781
        %v1783 = vsel %vm1456, %v1750, %v1782
        %v1784 = vsel %vm1458, %v1757, %v1783
        %v1785 = vsel %vm1460, %v1764, %v1784
        %v1786 = vsel %vm1462, %v1771, %v1785
        %1788 = vst.msk [vmem:[%s734] sm:$0xff] %vm954, %v1786
        %v1789 = vsub.f32 0.0, %v805
        %v1790 = vsub.f32 0.0, %v806
        %v1791 = vsub.f32 0.0, %v807
        %v1792 = vsub.f32 0.0, %v808
        %v1793 = vsub.f32 0.0, %v809
        %v1794 = vsub.f32 0.0, %v810
        %v1795 = vsub.f32 0.0, %v811
        %v1796 = vsub.f32 0.0, %v812
        %v1797 = vmul.f32 %v1692, %v1789
        %v1798 = vmul.f32 %v1693, %v1790
        %v1799 = vmul.f32 %v1694, %v1791
        %v1800 = vmul.f32 %v1695, %v1792
        %v1801 = vmul.f32 %v1696, %v1793
        %v1802 = vmul.f32 %v1697, %v1794
        %v1803 = vmul.f32 %v1698, %v1795
        %v1804 = vmul.f32 %v1699, %v1796
        %v1805 = vsel %vm954, %v1797, 0.0
        %v1806 = vrot.slane %v1805, 4
        %v1807 = vadd.f32 %v1805, %v1806
        %v1808 = vrot.slane %v1807, 2
        %v1809 = vadd.f32 %v1807, %v1808
        %v1810 = vrot.slane %v1809, 1
        %v1811 = vadd.f32 %v1809, %v1810
        %v1812 = vsel %vm954, %v1798, 0.0
        %v1813 = vrot.slane %v1812, 4
        %v1814 = vadd.f32 %v1812, %v1813
        %v1815 = vrot.slane %v1814, 2
        %v1816 = vadd.f32 %v1814, %v1815
        %v1817 = vrot.slane %v1816, 1
        %v1818 = vadd.f32 %v1816, %v1817
        %v1819 = vsel %vm954, %v1799, 0.0
        %v1820 = vrot.slane %v1819, 4
        %v1821 = vadd.f32 %v1819, %v1820
        %v1822 = vrot.slane %v1821, 2
        %v1823 = vadd.f32 %v1821, %v1822
        %v1824 = vrot.slane %v1823, 1
        %v1825 = vadd.f32 %v1823, %v1824
        %v1826 = vsel %vm954, %v1800, 0.0
        %v1827 = vrot.slane %v1826, 4
        %v1828 = vadd.f32 %v1826, %v1827
        %v1829 = vrot.slane %v1828, 2
        %v1830 = vadd.f32 %v1828, %v1829
        %v1831 = vrot.slane %v1830, 1
        %v1832 = vadd.f32 %v1830, %v1831
        %v1833 = vsel %vm954, %v1801, 0.0
        %v1834 = vrot.slane %v1833, 4
        %v1835 = vadd.f32 %v1833, %v1834
        %v1836 = vrot.slane %v1835, 2
        %v1837 = vadd.f32 %v1835, %v1836
        %v1838 = vrot.slane %v1837, 1
        %v1839 = vadd.f32 %v1837, %v1838
        %v1840 = vsel %vm954, %v1802, 0.0
        %v1841 = vrot.slane %v1840, 4
        %v1842 = vadd.f32 %v1840, %v1841
        %v1843 = vrot.slane %v1842, 2
        %v1844 = vadd.f32 %v1842, %v1843
        %v1845 = vrot.slane %v1844, 1
        %v1846 = vadd.f32 %v1844, %v1845
        %v1847 = vsel %vm954, %v1803, 0.0
        %v1848 = vrot.slane %v1847, 4
        %v1849 = vadd.f32 %v1847, %v1848
        %v1850 = vrot.slane %v1849, 2
        %v1851 = vadd.f32 %v1849, %v1850
        %v1852 = vrot.slane %v1851, 1
        %v1853 = vadd.f32 %v1851, %v1852
        %v1854 = vsel %vm954, %v1804, 0.0
        %v1855 = vrot.slane %v1854, 4
        %v1856 = vadd.f32 %v1854, %v1855
        %v1857 = vrot.slane %v1856, 2
        %v1858 = vadd.f32 %v1856, %v1857
        %v1859 = vrot.slane %v1858, 1
        %v1860 = vadd.f32 %v1858, %v1859
        %v1869 = vsel %vm1450, %v1818, %v1811
        %v1870 = vsel %vm1452, %v1825, %v1869
        %v1871 = vsel %vm1454, %v1832, %v1870
        %v1872 = vsel %vm1456, %v1839, %v1871
        %v1873 = vsel %vm1458, %v1846, %v1872
        %v1874 = vsel %vm1460, %v1853, %v1873
        %v1875 = vsel %vm1462, %v1860, %v1874
        %s1877 = scalar_lea.vmem %s734, 8
        %1878 = vst.msk [vmem:[%s1877] sm:$0xff] %vm954, %v1875
        %v1879 = vsel %vm1024, %v1150, 0.0
        %v1880 = vsel %vm1024, %v1151, 0.0
        %v1881 = vadd.f32 %v1879, %v1880
        %v1882 = vsel %vm1024, %v1152, 0.0
        %v1883 = vadd.f32 %v1881, %v1882
        %v1884 = vsel %vm1024, %v1153, 0.0
        %v1885 = vadd.f32 %v1883, %v1884
        %v1886 = vsel %vm1024, %v1154, 0.0
        %v1887 = vadd.f32 %v1885, %v1886
        %v1888 = vsel %vm1024, %v1155, 0.0
        %v1889 = vadd.f32 %v1887, %v1888
        %v1890 = vsel %vm1024, %v1156, 0.0
        %v1891 = vadd.f32 %v1889, %v1890
        %v1892 = vsel %vm1024, %v1157, 0.0
        %v1893 = vadd.f32 %v1891, %v1892
        %v1894 = vrot.slane %v1893, 4
        %v1895 = vadd.f32 %v1893, %v1894
        %v1896 = vrot.slane %v1895, 2
        %v1897 = vadd.f32 %v1895, %v1896
        %v1898 = vrot.slane %v1897, 1
        %v1899 = vadd.f32 %v1897, %v1898
        %v1900 = vrcp.pop 64.0
        %v1901 = vmul.f32 64.0, %v1900
        %v1902 = vsub.f32 1.0, %v1901
        %v1903 = vmul.f32 %v1900, %v1902
        %v1904 = vadd.f32 %v1900, %v1903
        %vm1905 = vweird.f32 %v1900
        %v1906 = vsel %vm1905, %v1900, %v1904
        %v1907 = vmul.f32 %v1899, %v1906
        %v1908 = vsub.f32 %v1150, %v1907
        %v1909 = vsub.f32 %v1151, %v1907
        %v1910 = vsub.f32 %v1152, %v1907
        %v1911 = vsub.f32 %v1153, %v1907
        %v1912 = vsub.f32 %v1154, %v1907
        %v1913 = vsub.f32 %v1155, %v1907
        %v1914 = vsub.f32 %v1156, %v1907
        %v1915 = vsub.f32 %v1157, %v1907
        %v1916 = vmul.f32 %v1908, %v1908
        %v1917 = vmul.f32 %v1909, %v1909
        %v1918 = vmul.f32 %v1910, %v1910
        %v1919 = vmul.f32 %v1911, %v1911
        %v1920 = vmul.f32 %v1912, %v1912
        %v1921 = vmul.f32 %v1913, %v1913
        %v1922 = vmul.f32 %v1914, %v1914
        %v1923 = vmul.f32 %v1915, %v1915
        %v1924 = vsel %vm1024, %v1916, 0.0
        %v1925 = vsel %vm1024, %v1917, 0.0
        %v1926 = vadd.f32 %v1924, %v1925
        %v1927 = vsel %vm1024, %v1918, 0.0
        %v1928 = vadd.f32 %v1926, %v1927
        %v1929 = vsel %vm1024, %v1919, 0.0
        %v1930 = vadd.f32 %v1928, %v1929
        %v1931 = vsel %vm1024, %v1920, 0.0
        %v1932 = vadd.f32 %v1930, %v1931
        %v1933 = vsel %vm1024, %v1921, 0.0
        %v1934 = vadd.f32 %v1932, %v1933
        %v1935 = vsel %vm1024, %v1922, 0.0
        %v1936 = vadd.f32 %v1934, %v1935
        %v1937 = vsel %vm1024, %v1923, 0.0
        %v1938 = vadd.f32 %v1936, %v1937
        %v1939 = vrot.slane %v1938, 4
        %v1940 = vadd.f32 %v1938, %v1939
        %v1941 = vrot.slane %v1940, 2
        %v1942 = vadd.f32 %v1940, %v1941
        %v1943 = vrot.slane %v1942, 1
        %v1944 = vadd.f32 %v1942, %v1943
        %vm1945 = vcmask 253952
        %1946 = vst.msk [vmem:[%s741] sm:$0x1] %vm1945, %v1907
        %1947 = vst.msk [vmem:[%s741 + $0x1] sm:$0x1] %vm1945, %v1944
        %p1948 = scmp.lt.s32.totalorder %s34, 1
        %s1949 = scalar_select %p1948, %s34, 1
        %p1950 = scmp.lt.s32.totalorder %s35, 0
        %s1951 = scalar_select %p1950, %s35, 0
        %s1952 = sadd.s32 %s1951, %s1949
        %s1953 = smul.addr %s1952, 8
        %s1954 = scalar_lea.vmem %s13, %s1953
        %p1955 = scmp.lt.s32.totalorder %s34, 1
        %s1956 = scalar_select %p1955, %s34, 1
        %p1957 = scmp.lt.s32.totalorder %s35, 0
        %s1958 = scalar_select %p1957, %s35, 0
        %s1959 = smul.addr %s1956, 2
        %s1960 = sadd.s32 %s1958, %s1959
        %s1961 = smul.addr %s1960, 8
        %s1962 = scalar_lea.vmem %s14, %s1961
        %p1963 = scmp.lt.s32.totalorder %s34, 1
        %s1964 = scalar_select %p1963, %s34, 1
        %p1965 = scmp.lt.s32.totalorder %s35, 0
        %s1966 = scalar_select %p1965, %s35, 0
        %s1967 = sadd.s32 %s1966, %s1964
        %s1968 = smul.addr %s1967, 2
        %s1969 = scalar_lea.vmem %s15, %s1968
        // Predicated region
        $region77: #{gegnn_layer_pallas.2} parent=71 // pred_check
          %p1970 = pneg %p385
        $region78: #{gegnn_layer_pallas.2} parent=71 // pred_check_branch
          %1972 = sbr.rel (%p1970) target = $region80
        $region79: #{gegnn_layer_pallas.2} parent=71 // pred_region
          _
        $region80: #{gegnn_layer_pallas.2} parent=71 // pred_fallthru
          _
        // Predicated region
        $region81: #{gegnn_layer_pallas.2} parent=71 // pred_check
          %p1973 = pneg %p413
        $region82: #{gegnn_layer_pallas.2} parent=71 // pred_check_branch
          %1975 = sbr.rel (%p1973) target = $region84
        $region83: #{gegnn_layer_pallas.2} parent=71 // pred_region
          _
        $region84: #{gegnn_layer_pallas.2} parent=71 // pred_fallthru
          _
        // Predicated region
        $region85: #{gegnn_layer_pallas.2} parent=71 // pred_check
          %p1976 = pneg %p441
        $region86: #{gegnn_layer_pallas.2} parent=71 // pred_check_branch
          %1978 = sbr.rel (%p1976) target = $region88
        $region87: #{gegnn_layer_pallas.2} parent=71 // pred_region
          _
        $region88: #{gegnn_layer_pallas.2} parent=71 // pred_fallthru
          _
      $region72: #{gegnn_layer_pallas.2} parent=5 // pred_fallthru
        _
      %p1979 = scmp.le.s32.totalorder 2, %s25
      // Predicated region
      $region89: #{gegnn_layer_pallas.2} parent=5 // pred_check
        %p1980 = pneg %p1979
      $region90: #{gegnn_layer_pallas.2} parent=5 // pred_check_branch
        %1982 = sbr.rel (%p1980) target = $region92
      $region91: #{gegnn_layer_pallas.2} parent=5 // pred_region
        %s1983 = ssub.s32 %s25, 2
        // Predicated region
        $region93: #{gegnn_layer_pallas.2} parent=91 // pred_check
          %p1984 = pneg %p391
        $region94: #{gegnn_layer_pallas.2} parent=91 // pred_check_branch
          %1986 = sbr.rel (%p1984) target = $region96
        $region95: #{gegnn_layer_pallas.2} parent=91 // pred_region
          %p1987 = scmp.lt.s32.totalorder %s36, 1
          %s1988 = scalar_select %p1987, %s36, 1
          %p1989 = scmp.lt.s32.totalorder %s37, 0
          %s1990 = scalar_select %p1989, %s37, 0
          %s1991 = sadd.s32 %s1990, %s1988
          %s1992 = smul.addr %s1991, 8
          %s1993 = scalar_lea.vmem %s13, %s1992
        $region96: #{gegnn_layer_pallas.2} parent=91 // pred_fallthru
          _
        // Predicated region
        $region97: #{gegnn_layer_pallas.2} parent=91 // pred_check
          %p1994 = pneg %p419
        $region98: #{gegnn_layer_pallas.2} parent=91 // pred_check_branch
          %1996 = sbr.rel (%p1994) target = $region100
        $region99: #{gegnn_layer_pallas.2} parent=91 // pred_region
          %p1997 = scmp.lt.s32.totalorder %s36, 1
          %s1998 = scalar_select %p1997, %s36, 1
          %p1999 = scmp.lt.s32.totalorder %s37, 0
          %s2000 = scalar_select %p1999, %s37, 0
          %s2001 = smul.addr %s1998, 2
          %s2002 = sadd.s32 %s2000, %s2001
          %s2003 = smul.addr %s2002, 8
          %s2004 = scalar_lea.vmem %s14, %s2003
        $region100: #{gegnn_layer_pallas.2} parent=91 // pred_fallthru
          _
        // Predicated region
        $region101: #{gegnn_layer_pallas.2} parent=91 // pred_check
          %p2005 = pneg %p447
        $region102: #{gegnn_layer_pallas.2} parent=91 // pred_check_branch
          %2007 = sbr.rel (%p2005) target = $region104
        $region103: #{gegnn_layer_pallas.2} parent=91 // pred_region
          %p2008 = scmp.lt.s32.totalorder %s36, 1
          %s2009 = scalar_select %p2008, %s36, 1
          %p2010 = scmp.lt.s32.totalorder %s37, 0
          %s2011 = scalar_select %p2010, %s37, 0
          %s2012 = sadd.s32 %s2011, %s2009
          %s2013 = smul.addr %s2012, 2
          %s2014 = scalar_lea.vmem %s15, %s2013
        $region104: #{gegnn_layer_pallas.2} parent=91 // pred_fallthru
          _
      $region92: #{gegnn_layer_pallas.2} parent=5 // pred_fallthru
        _
    $region6: #{gegnn_layer_pallas.2} parent=1 // loop_footer
      %s29 = sadd.s32 1, %s25
    $region7: #{gegnn_layer_pallas.2} parent=1 // loop_footer_branch
      %24 = sbr.rel target = $region3
    $region8: #{gegnn_layer_pallas.2} parent=1 // loop_exit
      _
    %2015 = vsyncpa [#allocation3], 1
    %s2016 = scalar_lea.sflag [#allocation3], 1
    %2017 = vsyncpa %s2016, 1

</llo_original>
